<compile_context>
chip_gen: v7x
topology: tpu7x:2x2x1
jax: 0.10.0
libtpu: 0.0.40
codegen_flags: <defaults>
</compile_context>

<pallas_src>
import functools

import jax
import jax.numpy as jnp
from jax.experimental import pallas as pl
from jax.experimental.pallas import tpu as pltpu


# ----------------------------------------------------------------------------
# Kernels
# ----------------------------------------------------------------------------
def _ffn_resident_kernel(x_ref, w1_ref, b1_ref, w2_ref, b2_ref, o_ref):
    # x_ref  : (tm, C)  f32  -> cast to bf16 in-register (free VPU filler)
    # w1_ref : (C, H)   bf16 (VMEM-resident: constant index_map, DMA'd once)
    # b1_ref : (1, H)   f32
    # w2_ref : (H, C)   bf16 (VMEM-resident)
    # b2_ref : (1, C)   f32
    # o_ref  : (tm, C)  output dtype
    x = x_ref[...].astype(jnp.bfloat16)
    h = jnp.dot(x, w1_ref[...], preferred_element_type=jnp.float32)
    h = jnp.maximum(h + b1_ref[...], 0.0)
    out = jnp.dot(h.astype(jnp.bfloat16), w2_ref[...],
                  preferred_element_type=jnp.float32)
    # Dropout(p=0.2): identity in eval mode.
    o_ref[...] = (out + b2_ref[...]).astype(o_ref.dtype)


def _ffn_tiled_kernel(x_ref, w1_ref, b1_ref, w2_ref, b2_ref, o_ref, acc_ref):
    # Fallback path for very large n_embed: hidden dim tiled on grid axis 1.
    # x_ref  : (tm, C)   f32
    # w1_ref : (C, th)   bf16
    # b1_ref : (1, th)   f32
    # w2_ref : (th, C)   bf16
    # b2_ref : (1, C)    f32
    # acc_ref: (tm, C)   f32 accumulator, persists across the H grid axis
    h_idx = pl.program_id(1)

    @pl.when(h_idx == 0)
    def _():
        acc_ref[...] = jnp.zeros_like(acc_ref)

    x = x_ref[...].astype(jnp.bfloat16)
    h = jnp.dot(x, w1_ref[...], preferred_element_type=jnp.float32)
    h = jnp.maximum(h + b1_ref[...], 0.0)
    acc_ref[...] += jnp.dot(h.astype(jnp.bfloat16), w2_ref[...],
                            preferred_element_type=jnp.float32)

    @pl.when(h_idx == pl.num_programs(1) - 1)
    def _():
        # Dropout(p=0.2): identity in eval mode.
        o_ref[...] = (acc_ref[...] + b2_ref[...]).astype(o_ref.dtype)


# ----------------------------------------------------------------------------
# Wrapper
# ----------------------------------------------------------------------------
def _round_up(a, b):
    return ((a + b - 1) // b) * b


def _choose_row_tile(M, tm):
    """Row tile: multiple of 16, >=2 steps and an even step count when M>16
    (v7x megacore gets equal work on the parallel axis)."""
    tm_eff = max(16, min(tm, _round_up(M, 16)))
    if M > 16:
        steps = pl.cdiv(M, tm_eff)
        if steps < 2:
            steps = 2
        if steps > 1 and steps % 2 == 1:
            steps += 1
        tm_eff = max(16, _round_up(pl.cdiv(M, steps), 16))
    M_pad = _round_up(M, tm_eff)
    return tm_eff, M_pad


def _choose_hidden_tile(H, th):
    """Largest tile <= th that divides H (prefer multiples of 128)."""
    th_eff = min(th, H)
    if H % th_eff == 0:
        return th_eff
    cands = [d for d in range(min(th, H), 127, -128) if H % d == 0]
    return cands[0] if cands else H


def _resident_fits(tm, C, H, budget_bytes=40 * 1024 * 1024):
    weight_bytes = 2 * (C * H * 2) * 2          # W1+W2 bf16, x2 buffering slack
    io_bytes = 2 * 2 * tm * C * 4               # x + out f32 blocks, double-buffered
    hidden_bytes = tm * H * (4 + 2)             # f32 hidden + bf16 downcast temp
    bias_bytes = 2 * (H + C) * 4
    return (weight_bytes + io_bytes + hidden_bytes + bias_bytes) < budget_bytes


@functools.partial(jax.jit, static_argnames=("tm", "th"))
def feed_forward(x, w1, b1, w2, b2, *, tm=512, th=2048):
    """x: (B, T, C) float32. Returns (B, T, C)."""
    B, T, C = x.shape
    H = w1.shape[1]                             # 4 * n_embed
    M = B * T

    tm_eff, M_pad = _choose_row_tile(M, tm)

    # ---- operand prep: x stays f32 (cast fused into kernel); bf16 weights ---
    x2d = x.reshape(M, C)
    if M_pad != M:
        x2d = jnp.pad(x2d, ((0, M_pad - M), (0, 0)))
    w1b = w1.astype(jnp.bfloat16)
    w2b = w2.astype(jnp.bfloat16)
    b1_2d = b1.reshape(1, H).astype(jnp.float32)
    b2_2d = b2.reshape(1, C).astype(jnp.float32)

    compiler_params_1d = pltpu.CompilerParams(
        dimension_semantics=("parallel",),
        vmem_limit_bytes=48 * 1024 * 1024,
    )

    if _resident_fits(tm_eff, C, H):
        # -------- weights-resident fast path: 1-D grid over row tiles --------
        grid = (M_pad // tm_eff,)
        out2d = pl.pallas_call(
            _ffn_resident_kernel,
            out_shape=jax.ShapeDtypeStruct((M_pad, C), x.dtype),
            grid_spec=pltpu.PrefetchScalarGridSpec(
                num_scalar_prefetch=0,
                grid=grid,
                in_specs=[
                    pl.BlockSpec((tm_eff, C), lambda i: (i, 0)),  # x rows
                    pl.BlockSpec((C, H), lambda i: (0, 0)),       # W1 (resident)
                    pl.BlockSpec((1, H), lambda i: (0, 0)),       # b1 (resident)
                    pl.BlockSpec((H, C), lambda i: (0, 0)),       # W2 (resident)
                    pl.BlockSpec((1, C), lambda i: (0, 0)),       # b2 (resident)
                ],
                out_specs=pl.BlockSpec((tm_eff, C), lambda i: (i, 0)),
            ),
            compiler_params=compiler_params_1d,
        )(x2d, w1b, b1_2d, w2b, b2_2d)
    else:
        # -------- fallback: hidden dim tiled (innermost, "arbitrary") --------
        th_eff = _choose_hidden_tile(H, th)
        grid = (M_pad // tm_eff, H // th_eff)
        out2d = pl.pallas_call(
            _ffn_tiled_kernel,
            out_shape=jax.ShapeDtypeStruct((M_pad, C), x.dtype),
            grid_spec=pltpu.PrefetchScalarGridSpec(
                num_scalar_prefetch=0,
                grid=grid,
                in_specs=[
                    pl.BlockSpec((tm_eff, C), lambda i, h: (i, 0)),   # x rows
                    pl.BlockSpec((C, th_eff), lambda i, h: (0, h)),   # W1 H-tile
                    pl.BlockSpec((1, th_eff), lambda i, h: (0, h)),   # b1 H-tile
                    pl.BlockSpec((th_eff, C), lambda i, h: (h, 0)),   # W2 H-tile
                    pl.BlockSpec((1, C), lambda i, h: (0, 0)),        # b2
                ],
                out_specs=pl.BlockSpec((tm_eff, C), lambda i, h: (i, 0)),
                scratch_shapes=[pltpu.VMEM((tm_eff, C), jnp.float32)],
            ),
            compiler_params=pltpu.CompilerParams(
                dimension_semantics=("parallel", "arbitrary"),
                vmem_limit_bytes=48 * 1024 * 1024,
            ),
        )(x2d, w1b, b1_2d, w2b, b2_2d)

    return out2d[:M].reshape(B, T, C)


def init_feed_forward_params(key, n_embed, dtype=jnp.float32):
    """Deterministic init mimicking torch.nn.Linear (uniform +-1/sqrt(fan_in))."""
    k1, k2, k3, k4 = jax.random.split(key, 4)
    hidden = 4 * n_embed
    bound1 = 1.0 / (n_embed ** 0.5)
    bound2 = 1.0 / (hidden ** 0.5)
    # Stored as (in, out) so the kernel does x @ W (equivalent to torch's
    # x @ W.T with W of shape (out, in)).
    w1 = jax.random.uniform(k1, (n_embed, hidden), dtype, -bound1, bound1)
    b1 = jax.random.uniform(k2, (hidden,), dtype, -bound1, bound1)
    w2 = jax.random.uniform(k3, (hidden, n_embed), dtype, -bound2, bound2)
    b2 = jax.random.uniform(k4, (n_embed,), dtype, -bound2, bound2)
    return w1, b1, w2, b2


if __name__ == "__main__":
    # Small shapes consistent with the module: batch=2, seq=8, n_embed=384.
    B, T, n_embed = 2, 8, 384
    key = jax.random.PRNGKey(0)
    kx, kp = jax.random.split(key)

    x = jax.random.normal(kx, (B, T, n_embed), dtype=jnp.float32)
    w1, b1, w2, b2 = init_feed_forward_params(kp, n_embed)

    out = feed_forward(x, w1, b1, w2, b2)
    out = jax.block_until_ready(out)

    # Pure-JAX f32 reference check (bf16 matmul operands -> wider tolerance).
    ref = jnp.maximum(x.reshape(-1, n_embed) @ w1 + b1, 0.0) @ w2 + b2
    ref = ref.reshape(B, T, n_embed)
    assert out.shape == (B, T, n_embed)
    assert jnp.allclose(out, ref, atol=2e-2, rtol=2e-2), "mismatch vs reference"

    print("KERNEL_OK")
</pallas_src>

<mosaic_0001>
module attributes {stable_mosaic.version = 11 : i64} {
  func.func @_ffn_resident_kernel(%arg0: i32, %arg1: memref<16x384xf32, #tpu.memory_space<vmem>>, %arg2: memref<384x1536xbf16, #tpu.memory_space<vmem>>, %arg3: memref<1x1536xf32, #tpu.memory_space<vmem>>, %arg4: memref<1536x384xbf16, #tpu.memory_space<vmem>>, %arg5: memref<1x384xf32, #tpu.memory_space<vmem>>, %arg6: memref<16x384xf32, #tpu.memory_space<vmem>>) attributes {dimension_semantics = [#tpu.dimension_semantics<parallel>], iteration_bounds = array<i64: 1>, scalar_prefetch = 0 : i64, scratch_operands = 0 : i64, tpu.core_type = #tpu.core_type<tc>, window_params = [{transform_indices = @transform_0, window_bounds = array<i64: 16, 384>}, {pipeline_mode = #tpu.pipeline_mode<synchronous>, transform_indices = @transform_1, window_bounds = array<i64: 384, 1536>}, {pipeline_mode = #tpu.pipeline_mode<synchronous>, transform_indices = @transform_2, window_bounds = array<i64: 1, 1536>}, {pipeline_mode = #tpu.pipeline_mode<synchronous>, transform_indices = @transform_3, window_bounds = array<i64: 1536, 384>}, {pipeline_mode = #tpu.pipeline_mode<synchronous>, transform_indices = @transform_4, window_bounds = array<i64: 1, 384>}, {transform_indices = @transform_5, window_bounds = array<i64: 16, 384>}]} {
    %c0 = arith.constant 0 : index
    %c0_0 = arith.constant 0 : index
    %0 = vector.load %arg1[%c0, %c0_0] : memref<16x384xf32, #tpu.memory_space<vmem>>, vector<16x384xf32>
    %1 = arith.truncf %0 : vector<16x384xf32> to vector<16x384xbf16>
    %c0_1 = arith.constant 0 : index
    %c0_2 = arith.constant 0 : index
    %2 = vector.load %arg2[%c0_1, %c0_2] : memref<384x1536xbf16, #tpu.memory_space<vmem>>, vector<384x1536xbf16>
    %cst = arith.constant dense<0.000000e+00> : vector<16x1536xf32>
    %3 = tpu.matmul %1, %2, %cst {dimension_numbers = #tpu.dot_dimension_numbers<[1], [0], [0], [1], [0, 0, 1, 1], [], []>} : vector<16x384xbf16>, vector<384x1536xbf16>, vector<16x1536xf32> -> vector<16x1536xf32>
    %c0_3 = arith.constant 0 : index
    %c0_4 = arith.constant 0 : index
    %4 = vector.load %arg3[%c0_3, %c0_4] : memref<1x1536xf32, #tpu.memory_space<vmem>>, vector<1x1536xf32>
    %5 = vector.broadcast %4 : vector<1x1536xf32> to vector<16x1536xf32>
    %6 = arith.addf %3, %5 : vector<16x1536xf32>
    %cst_5 = arith.constant 0.000000e+00 : f32
    %7 = vector.broadcast %cst_5 : f32 to vector<16x1536xf32>
    %8 = arith.maximumf %6, %7 : vector<16x1536xf32>
    %9 = arith.truncf %8 : vector<16x1536xf32> to vector<16x1536xbf16>
    %c0_6 = arith.constant 0 : index
    %c0_7 = arith.constant 0 : index
    %10 = vector.load %arg4[%c0_6, %c0_7] : memref<1536x384xbf16, #tpu.memory_space<vmem>>, vector<1536x384xbf16>
    %cst_8 = arith.constant dense<0.000000e+00> : vector<16x384xf32>
    %11 = tpu.matmul %9, %10, %cst_8 {dimension_numbers = #tpu.dot_dimension_numbers<[1], [0], [0], [1], [0, 0, 1, 1], [], []>} : vector<16x1536xbf16>, vector<1536x384xbf16>, vector<16x384xf32> -> vector<16x384xf32>
    %c0_9 = arith.constant 0 : index
    %c0_10 = arith.constant 0 : index
    %12 = vector.load %arg5[%c0_9, %c0_10] : memref<1x384xf32, #tpu.memory_space<vmem>>, vector<1x384xf32>
    %13 = vector.broadcast %12 : vector<1x384xf32> to vector<16x384xf32>
    %14 = arith.addf %11, %13 : vector<16x384xf32>
    %c0_11 = arith.constant 0 : index
    %c0_12 = arith.constant 0 : index
    %15 = vector.load %arg6[%c0_11, %c0_12] : memref<16x384xf32, #tpu.memory_space<vmem>>, vector<16x384xf32>
    tpu.vector_store %arg6[%c0_11, %c0_12], %14 {strides = array<i32>} : memref<16x384xf32, #tpu.memory_space<vmem>>, vector<16x384xf32>,
    return
  }
  func.func @transform_0(%arg0: i32) -> (i32, i32) {
    %c0_i32 = arith.constant 0 : i32
    %c0_i32_0 = arith.constant 0 : i32
    return %arg0, %c0_i32 : i32, i32
  }
  func.func @transform_1(%arg0: i32) -> (i32, i32) {
    %c0_i32 = arith.constant 0 : i32
    %c0_i32_0 = arith.constant 0 : i32
    %c0_i32_1 = arith.constant 0 : i32
    return %c0_i32, %c0_i32_0 : i32, i32
  }
  func.func @transform_2(%arg0: i32) -> (i32, i32) {
    %c0_i32 = arith.constant 0 : i32
    %c0_i32_0 = arith.constant 0 : i32
    %c0_i32_1 = arith.constant 0 : i32
    return %c0_i32, %c0_i32_0 : i32, i32
  }
  func.func @transform_3(%arg0: i32) -> (i32, i32) {
    %c0_i32 = arith.constant 0 : i32
    %c0_i32_0 = arith.constant 0 : i32
    %c0_i32_1 = arith.constant 0 : i32
    return %c0_i32, %c0_i32_0 : i32, i32
  }
  func.func @transform_4(%arg0: i32) -> (i32, i32) {
    %c0_i32 = arith.constant 0 : i32
    %c0_i32_0 = arith.constant 0 : i32
    %c0_i32_1 = arith.constant 0 : i32
    return %c0_i32, %c0_i32_0 : i32, i32
  }
  func.func @transform_5(%arg0: i32) -> (i32, i32) {
    %c0_i32 = arith.constant 0 : i32
    %c0_i32_0 = arith.constant 0 : i32
    return %arg0, %c0_i32 : i32, i32
  }
}

</mosaic_0001>

<llo_original>
// kernel: feed_forward.1
$region0: #{feed_forward.1}
  #allocation0 [shape = 'u32[]', space=smem, size = 0x4, offset = 0x4, fixed_abs, tag = 'smem constant byte address 0x4 - core index']
  #allocation1 [shape = 'u32[144,128]{1,0:T(1,128)}', space=vmem, size = 0x12000, scoped, tag = 'internal scratch']
  %s0 = inlined_call_operand.vmem [shape: f32[16,384], index: 0, kind: input, shape index: {}]
  %s1 = inlined_call_operand.vmem [shape: bf16[384,1536], index: 1, kind: input, shape index: {}]
  %s2 = inlined_call_operand.vmem [shape: f32[1,1536], index: 2, kind: input, shape index: {}]
  %s3 = inlined_call_operand.vmem [shape: bf16[1536,384], index: 3, kind: input, shape index: {}]
  %s4 = inlined_call_operand.vmem [shape: f32[1,384], index: 4, kind: input, shape index: {}]
  %s5 = inlined_call_operand.hbm [shape: f32[16,384], index: 5, kind: output, shape index: {}]
  %s6 = sld [smem:[#allocation0]]
  $region30: #{feed_forward.1} parent=0
    _
  %s8 = ssub.s32 1, %s6
  %s9 = scalar_select 0, %s8, %s6
  $region1: #{feed_forward.1} parent=0
    #allocation2 [shape = 'u8[24576]{0}', space=vmem, size = 0x6000, scoped, tag = 'output window, operand 0, single buffered']
    #allocation3 [shape = 's32[1]{0}', space=sflag, size = 0x4, scoped, tag = 'scoped memory for feed_forward.1']
    %10 = vsyncpa [#allocation3], 0
    // Predicated region
    $region2: #{feed_forward.1} parent=1 // pred_check
      _
    $region3: #{feed_forward.1} parent=1 // pred_check_branch
      %12 = sbr.rel (0) target = $region5
    $region4: #{feed_forward.1} parent=1 // pred_region
      _
    $region5: #{feed_forward.1} parent=1 // pred_fallthru
      _
    // Predicated region
    $region6: #{feed_forward.1} parent=1 // pred_check
      _
    $region7: #{feed_forward.1} parent=1 // pred_check_branch
      %14 = sbr.rel (0) target = $region9
    $region8: #{feed_forward.1} parent=1 // pred_region
      _
    $region9: #{feed_forward.1} parent=1 // pred_fallthru
      _
    // Predicated region
    $region10: #{feed_forward.1} parent=1 // pred_check
      _
    $region11: #{feed_forward.1} parent=1 // pred_check_branch
      %16 = sbr.rel (0) target = $region13
    $region12: #{feed_forward.1} parent=1 // pred_region
      _
    $region13: #{feed_forward.1} parent=1 // pred_fallthru
      _
    // Predicated region
    $region14: #{feed_forward.1} parent=1 // pred_check
      _
    $region15: #{feed_forward.1} parent=1 // pred_check_branch
      %18 = sbr.rel (0) target = $region17
    $region16: #{feed_forward.1} parent=1 // pred_region
      _
    $region17: #{feed_forward.1} parent=1 // pred_fallthru
      _
    // Predicated region
    $region18: #{feed_forward.1} parent=1 // pred_check
      _
    $region19: #{feed_forward.1} parent=1 // pred_check_branch
      %20 = sbr.rel (0) target = $region21
    $region20: #{feed_forward.1} parent=1 // pred_region
      _
    $region21: #{feed_forward.1} parent=1 // pred_fallthru
      _
    %v22 = vld [vmem:[%s0] sm:$0xff]
    %v23 = vld [vmem:[%s0 + $0x8] sm:$0xff]
    %v24 = vld [vmem:[%s0 + $0x10] sm:$0xff]
    %v25 = vld [vmem:[%s0 + $0x18] sm:$0xff]
    %v26 = vld [vmem:[%s0 + $0x20] sm:$0xff]
    %v27 = vld [vmem:[%s0 + $0x28] sm:$0xff]
    %v28 = vpack.c.bf16 %v25, %v22
    %v29 = vpack.c.bf16 %v26, %v23
    %v30 = vpack.c.bf16 %v27, %v24
    %v31 = vld [vmem:[%s1] sm:$0xff]
    %v32 = vld [vmem:[%s1 + $0x8] sm:$0xff]
    %v33 = vld [vmem:[%s1 + $0x10] sm:$0xff]
    %v34 = vld [vmem:[%s1 + $0x18] sm:$0xff]
    %v35 = vld [vmem:[%s1 + $0x20] sm:$0xff]
    %v36 = vld [vmem:[%s1 + $0x28] sm:$0xff]
    %v37 = vld [vmem:[%s1 + $0x30] sm:$0xff]
    %v38 = vld [vmem:[%s1 + $0x38] sm:$0xff]
    %v39 = vld [vmem:[%s1 + $0x40] sm:$0xff]
    %v40 = vld [vmem:[%s1 + $0x48] sm:$0xff]
    %v41 = vld [vmem:[%s1 + $0x50] sm:$0xff]
    %v42 = vld [vmem:[%s1 + $0x58] sm:$0xff]
    %v43 = vld [vmem:[%s1 + $0x60] sm:$0xff]
    %v44 = vld [vmem:[%s1 + $0x68] sm:$0xff]
    %v45 = vld [vmem:[%s1 + $0x70] sm:$0xff]
    %v46 = vld [vmem:[%s1 + $0x78] sm:$0xff]
    %v47 = vld [vmem:[%s1 + $0x80] sm:$0xff]
    %v48 = vld [vmem:[%s1 + $0x88] sm:$0xff]
    %v49 = vld [vmem:[%s1 + $0x90] sm:$0xff]
    %v50 = vld [vmem:[%s1 + $0x98] sm:$0xff]
    %v51 = vld [vmem:[%s1 + $0xa0] sm:$0xff]
    %v52 = vld [vmem:[%s1 + $0xa8] sm:$0xff]
    %v53 = vld [vmem:[%s1 + $0xb0] sm:$0xff]
    %v54 = vld [vmem:[%s1 + $0xb8] sm:$0xff]
    %v55 = vld [vmem:[%s1 + $0xc0] sm:$0xff]
    %v56 = vld [vmem:[%s1 + $0xc8] sm:$0xff]
    %v57 = vld [vmem:[%s1 + $0xd0] sm:$0xff]
    %v58 = vld [vmem:[%s1 + $0xd8] sm:$0xff]
    %v59 = vld [vmem:[%s1 + $0xe0] sm:$0xff]
    %v60 = vld [vmem:[%s1 + $0xe8] sm:$0xff]
    %v61 = vld [vmem:[%s1 + $0xf0] sm:$0xff]
    %v62 = vld [vmem:[%s1 + $0xf8] sm:$0xff]
    %v63 = vld [vmem:[%s1 + $0x100] sm:$0xff]
    %v64 = vld [vmem:[%s1 + $0x108] sm:$0xff]
    %v65 = vld [vmem:[%s1 + $0x110] sm:$0xff]
    %v66 = vld [vmem:[%s1 + $0x118] sm:$0xff]
    %v67 = vld [vmem:[%s1 + $0x120] sm:$0xff]
    %v68 = vld [vmem:[%s1 + $0x128] sm:$0xff]
    %v69 = vld [vmem:[%s1 + $0x130] sm:$0xff]
    %v70 = vld [vmem:[%s1 + $0x138] sm:$0xff]
    %v71 = vld [vmem:[%s1 + $0x140] sm:$0xff]
    %v72 = vld [vmem:[%s1 + $0x148] sm:$0xff]
    %v73 = vld [vmem:[%s1 + $0x150] sm:$0xff]
    %v74 = vld [vmem:[%s1 + $0x158] sm:$0xff]
    %v75 = vld [vmem:[%s1 + $0x160] sm:$0xff]
    %v76 = vld [vmem:[%s1 + $0x168] sm:$0xff]
    %v77 = vld [vmem:[%s1 + $0x170] sm:$0xff]
    %v78 = vld [vmem:[%s1 + $0x178] sm:$0xff]
    %v79 = vld [vmem:[%s1 + $0x180] sm:$0xff]
    %v80 = vld [vmem:[%s1 + $0x188] sm:$0xff]
    %v81 = vld [vmem:[%s1 + $0x190] sm:$0xff]
    %v82 = vld [vmem:[%s1 + $0x198] sm:$0xff]
    %v83 = vld [vmem:[%s1 + $0x1a0] sm:$0xff]
    %v84 = vld [vmem:[%s1 + $0x1a8] sm:$0xff]
    %v85 = vld [vmem:[%s1 + $0x1b0] sm:$0xff]
    %v86 = vld [vmem:[%s1 + $0x1b8] sm:$0xff]
    %v87 = vld [vmem:[%s1 + $0x1c0] sm:$0xff]
    %v88 = vld [vmem:[%s1 + $0x1c8] sm:$0xff]
    %v89 = vld [vmem:[%s1 + $0x1d0] sm:$0xff]
    %v90 = vld [vmem:[%s1 + $0x1d8] sm:$0xff]
    %v91 = vld [vmem:[%s1 + $0x1e0] sm:$0xff]
    %v92 = vld [vmem:[%s1 + $0x1e8] sm:$0xff]
    %v93 = vld [vmem:[%s1 + $0x1f0] sm:$0xff]
    %v94 = vld [vmem:[%s1 + $0x1f8] sm:$0xff]
    %v95 = vld [vmem:[%s1 + $0x200] sm:$0xff]
    %v96 = vld [vmem:[%s1 + $0x208] sm:$0xff]
    %v97 = vld [vmem:[%s1 + $0x210] sm:$0xff]
    %v98 = vld [vmem:[%s1 + $0x218] sm:$0xff]
    %v99 = vld [vmem:[%s1 + $0x220] sm:$0xff]
    %v100 = vld [vmem:[%s1 + $0x228] sm:$0xff]
    %v101 = vld [vmem:[%s1 + $0x230] sm:$0xff]
    %v102 = vld [vmem:[%s1 + $0x238] sm:$0xff]
    %v103 = vld [vmem:[%s1 + $0x240] sm:$0xff]
    %v104 = vld [vmem:[%s1 + $0x248] sm:$0xff]
    %v105 = vld [vmem:[%s1 + $0x250] sm:$0xff]
    %v106 = vld [vmem:[%s1 + $0x258] sm:$0xff]
    %v107 = vld [vmem:[%s1 + $0x260] sm:$0xff]
    %v108 = vld [vmem:[%s1 + $0x268] sm:$0xff]
    %v109 = vld [vmem:[%s1 + $0x270] sm:$0xff]
    %v110 = vld [vmem:[%s1 + $0x278] sm:$0xff]
    %v111 = vld [vmem:[%s1 + $0x280] sm:$0xff]
    %v112 = vld [vmem:[%s1 + $0x288] sm:$0xff]
    %v113 = vld [vmem:[%s1 + $0x290] sm:$0xff]
    %v114 = vld [vmem:[%s1 + $0x298] sm:$0xff]
    %v115 = vld [vmem:[%s1 + $0x2a0] sm:$0xff]
    %v116 = vld [vmem:[%s1 + $0x2a8] sm:$0xff]
    %v117 = vld [vmem:[%s1 + $0x2b0] sm:$0xff]
    %v118 = vld [vmem:[%s1 + $0x2b8] sm:$0xff]
    %v119 = vld [vmem:[%s1 + $0x2c0] sm:$0xff]
    %v120 = vld [vmem:[%s1 + $0x2c8] sm:$0xff]
    %v121 = vld [vmem:[%s1 + $0x2d0] sm:$0xff]
    %v122 = vld [vmem:[%s1 + $0x2d8] sm:$0xff]
    %v123 = vld [vmem:[%s1 + $0x2e0] sm:$0xff]
    %v124 = vld [vmem:[%s1 + $0x2e8] sm:$0xff]
    %v125 = vld [vmem:[%s1 + $0x2f0] sm:$0xff]
    %v126 = vld [vmem:[%s1 + $0x2f8] sm:$0xff]
    %v127 = vld [vmem:[%s1 + $0x300] sm:$0xff]
    %v128 = vld [vmem:[%s1 + $0x308] sm:$0xff]
    %v129 = vld [vmem:[%s1 + $0x310] sm:$0xff]
    %v130 = vld [vmem:[%s1 + $0x318] sm:$0xff]
    %v131 = vld [vmem:[%s1 + $0x320] sm:$0xff]
    %v132 = vld [vmem:[%s1 + $0x328] sm:$0xff]
    %v133 = vld [vmem:[%s1 + $0x330] sm:$0xff]
    %v134 = vld [vmem:[%s1 + $0x338] sm:$0xff]
    %v135 = vld [vmem:[%s1 + $0x340] sm:$0xff]
    %v136 = vld [vmem:[%s1 + $0x348] sm:$0xff]
    %v137 = vld [vmem:[%s1 + $0x350] sm:$0xff]
    %v138 = vld [vmem:[%s1 + $0x358] sm:$0xff]
    %v139 = vld [vmem:[%s1 + $0x360] sm:$0xff]
    %v140 = vld [vmem:[%s1 + $0x368] sm:$0xff]
    %v141 = vld [vmem:[%s1 + $0x370] sm:$0xff]
    %v142 = vld [vmem:[%s1 + $0x378] sm:$0xff]
    %v143 = vld [vmem:[%s1 + $0x380] sm:$0xff]
    %v144 = vld [vmem:[%s1 + $0x388] sm:$0xff]
    %v145 = vld [vmem:[%s1 + $0x390] sm:$0xff]
    %v146 = vld [vmem:[%s1 + $0x398] sm:$0xff]
    %v147 = vld [vmem:[%s1 + $0x3a0] sm:$0xff]
    %v148 = vld [vmem:[%s1 + $0x3a8] sm:$0xff]
    %v149 = vld [vmem:[%s1 + $0x3b0] sm:$0xff]
    %v150 = vld [vmem:[%s1 + $0x3b8] sm:$0xff]
    %v151 = vld [vmem:[%s1 + $0x3c0] sm:$0xff]
    %v152 = vld [vmem:[%s1 + $0x3c8] sm:$0xff]
    %v153 = vld [vmem:[%s1 + $0x3d0] sm:$0xff]
    %v154 = vld [vmem:[%s1 + $0x3d8] sm:$0xff]
    %v155 = vld [vmem:[%s1 + $0x3e0] sm:$0xff]
    %v156 = vld [vmem:[%s1 + $0x3e8] sm:$0xff]
    %v157 = vld [vmem:[%s1 + $0x3f0] sm:$0xff]
    %v158 = vld [vmem:[%s1 + $0x3f8] sm:$0xff]
    %v159 = vld [vmem:[%s1 + $0x400] sm:$0xff]
    %v160 = vld [vmem:[%s1 + $0x408] sm:$0xff]
    %v161 = vld [vmem:[%s1 + $0x410] sm:$0xff]
    %v162 = vld [vmem:[%s1 + $0x418] sm:$0xff]
    %v163 = vld [vmem:[%s1 + $0x420] sm:$0xff]
    %v164 = vld [vmem:[%s1 + $0x428] sm:$0xff]
    %v165 = vld [vmem:[%s1 + $0x430] sm:$0xff]
    %v166 = vld [vmem:[%s1 + $0x438] sm:$0xff]
    %v167 = vld [vmem:[%s1 + $0x440] sm:$0xff]
    %v168 = vld [vmem:[%s1 + $0x448] sm:$0xff]
    %v169 = vld [vmem:[%s1 + $0x450] sm:$0xff]
    %v170 = vld [vmem:[%s1 + $0x458] sm:$0xff]
    %v171 = vld [vmem:[%s1 + $0x460] sm:$0xff]
    %v172 = vld [vmem:[%s1 + $0x468] sm:$0xff]
    %v173 = vld [vmem:[%s1 + $0x470] sm:$0xff]
    %v174 = vld [vmem:[%s1 + $0x478] sm:$0xff]
    %v175 = vld [vmem:[%s1 + $0x480] sm:$0xff]
    %v176 = vld [vmem:[%s1 + $0x488] sm:$0xff]
    %v177 = vld [vmem:[%s1 + $0x490] sm:$0xff]
    %v178 = vld [vmem:[%s1 + $0x498] sm:$0xff]
    %v179 = vld [vmem:[%s1 + $0x4a0] sm:$0xff]
    %v180 = vld [vmem:[%s1 + $0x4a8] sm:$0xff]
    %v181 = vld [vmem:[%s1 + $0x4b0] sm:$0xff]
    %v182 = vld [vmem:[%s1 + $0x4b8] sm:$0xff]
    %v183 = vld [vmem:[%s1 + $0x4c0] sm:$0xff]
    %v184 = vld [vmem:[%s1 + $0x4c8] sm:$0xff]
    %v185 = vld [vmem:[%s1 + $0x4d0] sm:$0xff]
    %v186 = vld [vmem:[%s1 + $0x4d8] sm:$0xff]
    %v187 = vld [vmem:[%s1 + $0x4e0] sm:$0xff]
    %v188 = vld [vmem:[%s1 + $0x4e8] sm:$0xff]
    %v189 = vld [vmem:[%s1 + $0x4f0] sm:$0xff]
    %v190 = vld [vmem:[%s1 + $0x4f8] sm:$0xff]
    %v191 = vld [vmem:[%s1 + $0x500] sm:$0xff]
    %v192 = vld [vmem:[%s1 + $0x508] sm:$0xff]
    %v193 = vld [vmem:[%s1 + $0x510] sm:$0xff]
    %v194 = vld [vmem:[%s1 + $0x518] sm:$0xff]
    %v195 = vld [vmem:[%s1 + $0x520] sm:$0xff]
    %v196 = vld [vmem:[%s1 + $0x528] sm:$0xff]
    %v197 = vld [vmem:[%s1 + $0x530] sm:$0xff]
    %v198 = vld [vmem:[%s1 + $0x538] sm:$0xff]
    %v199 = vld [vmem:[%s1 + $0x540] sm:$0xff]
    %v200 = vld [vmem:[%s1 + $0x548] sm:$0xff]
    %v201 = vld [vmem:[%s1 + $0x550] sm:$0xff]
    %v202 = vld [vmem:[%s1 + $0x558] sm:$0xff]
    %v203 = vld [vmem:[%s1 + $0x560] sm:$0xff]
    %v204 = vld [vmem:[%s1 + $0x568] sm:$0xff]
    %v205 = vld [vmem:[%s1 + $0x570] sm:$0xff]
    %v206 = vld [vmem:[%s1 + $0x578] sm:$0xff]
    %v207 = vld [vmem:[%s1 + $0x580] sm:$0xff]
    %v208 = vld [vmem:[%s1 + $0x588] sm:$0xff]
    %v209 = vld [vmem:[%s1 + $0x590] sm:$0xff]
    %v210 = vld [vmem:[%s1 + $0x598] sm:$0xff]
    %v211 = vld [vmem:[%s1 + $0x5a0] sm:$0xff]
    %v212 = vld [vmem:[%s1 + $0x5a8] sm:$0xff]
    %v213 = vld [vmem:[%s1 + $0x5b0] sm:$0xff]
    %v214 = vld [vmem:[%s1 + $0x5b8] sm:$0xff]
    %v215 = vld [vmem:[%s1 + $0x5c0] sm:$0xff]
    %v216 = vld [vmem:[%s1 + $0x5c8] sm:$0xff]
    %v217 = vld [vmem:[%s1 + $0x5d0] sm:$0xff]
    %v218 = vld [vmem:[%s1 + $0x5d8] sm:$0xff]
    %v219 = vld [vmem:[%s1 + $0x5e0] sm:$0xff]
    %v220 = vld [vmem:[%s1 + $0x5e8] sm:$0xff]
    %v221 = vld [vmem:[%s1 + $0x5f0] sm:$0xff]
    %v222 = vld [vmem:[%s1 + $0x5f8] sm:$0xff]
    %v223 = vld [vmem:[%s1 + $0x600] sm:$0xff]
    %v224 = vld [vmem:[%s1 + $0x608] sm:$0xff]
    %v225 = vld [vmem:[%s1 + $0x610] sm:$0xff]
    %v226 = vld [vmem:[%s1 + $0x618] sm:$0xff]
    %v227 = vld [vmem:[%s1 + $0x620] sm:$0xff]
    %v228 = vld [vmem:[%s1 + $0x628] sm:$0xff]
    %v229 = vld [vmem:[%s1 + $0x630] sm:$0xff]
    %v230 = vld [vmem:[%s1 + $0x638] sm:$0xff]
    %v231 = vld [vmem:[%s1 + $0x640] sm:$0xff]
    %v232 = vld [vmem:[%s1 + $0x648] sm:$0xff]
    %v233 = vld [vmem:[%s1 + $0x650] sm:$0xff]
    %v234 = vld [vmem:[%s1 + $0x658] sm:$0xff]
    %v235 = vld [vmem:[%s1 + $0x660] sm:$0xff]
    %v236 = vld [vmem:[%s1 + $0x668] sm:$0xff]
    %v237 = vld [vmem:[%s1 + $0x670] sm:$0xff]
    %v238 = vld [vmem:[%s1 + $0x678] sm:$0xff]
    %v239 = vld [vmem:[%s1 + $0x680] sm:$0xff]
    %v240 = vld [vmem:[%s1 + $0x688] sm:$0xff]
    %v241 = vld [vmem:[%s1 + $0x690] sm:$0xff]
    %v242 = vld [vmem:[%s1 + $0x698] sm:$0xff]
    %v243 = vld [vmem:[%s1 + $0x6a0] sm:$0xff]
    %v244 = vld [vmem:[%s1 + $0x6a8] sm:$0xff]
    %v245 = vld [vmem:[%s1 + $0x6b0] sm:$0xff]
    %v246 = vld [vmem:[%s1 + $0x6b8] sm:$0xff]
    %v247 = vld [vmem:[%s1 + $0x6c0] sm:$0xff]
    %v248 = vld [vmem:[%s1 + $0x6c8] sm:$0xff]
    %v249 = vld [vmem:[%s1 + $0x6d0] sm:$0xff]
    %v250 = vld [vmem:[%s1 + $0x6d8] sm:$0xff]
    %v251 = vld [vmem:[%s1 + $0x6e0] sm:$0xff]
    %v252 = vld [vmem:[%s1 + $0x6e8] sm:$0xff]
    %v253 = vld [vmem:[%s1 + $0x6f0] sm:$0xff]
    %v254 = vld [vmem:[%s1 + $0x6f8] sm:$0xff]
    %v255 = vld [vmem:[%s1 + $0x700] sm:$0xff]
    %v256 = vld [vmem:[%s1 + $0x708] sm:$0xff]
    %v257 = vld [vmem:[%s1 + $0x710] sm:$0xff]
    %v258 = vld [vmem:[%s1 + $0x718] sm:$0xff]
    %v259 = vld [vmem:[%s1 + $0x720] sm:$0xff]
    %v260 = vld [vmem:[%s1 + $0x728] sm:$0xff]
    %v261 = vld [vmem:[%s1 + $0x730] sm:$0xff]
    %v262 = vld [vmem:[%s1 + $0x738] sm:$0xff]
    %v263 = vld [vmem:[%s1 + $0x740] sm:$0xff]
    %v264 = vld [vmem:[%s1 + $0x748] sm:$0xff]
    %v265 = vld [vmem:[%s1 + $0x750] sm:$0xff]
    %v266 = vld [vmem:[%s1 + $0x758] sm:$0xff]
    %v267 = vld [vmem:[%s1 + $0x760] sm:$0xff]
    %v268 = vld [vmem:[%s1 + $0x768] sm:$0xff]
    %v269 = vld [vmem:[%s1 + $0x770] sm:$0xff]
    %v270 = vld [vmem:[%s1 + $0x778] sm:$0xff]
    %v271 = vld [vmem:[%s1 + $0x780] sm:$0xff]
    %v272 = vld [vmem:[%s1 + $0x788] sm:$0xff]
    %v273 = vld [vmem:[%s1 + $0x790] sm:$0xff]
    %v274 = vld [vmem:[%s1 + $0x798] sm:$0xff]
    %v275 = vld [vmem:[%s1 + $0x7a0] sm:$0xff]
    %v276 = vld [vmem:[%s1 + $0x7a8] sm:$0xff]
    %v277 = vld [vmem:[%s1 + $0x7b0] sm:$0xff]
    %v278 = vld [vmem:[%s1 + $0x7b8] sm:$0xff]
    %v279 = vld [vmem:[%s1 + $0x7c0] sm:$0xff]
    %v280 = vld [vmem:[%s1 + $0x7c8] sm:$0xff]
    %v281 = vld [vmem:[%s1 + $0x7d0] sm:$0xff]
    %v282 = vld [vmem:[%s1 + $0x7d8] sm:$0xff]
    %v283 = vld [vmem:[%s1 + $0x7e0] sm:$0xff]
    %v284 = vld [vmem:[%s1 + $0x7e8] sm:$0xff]
    %v285 = vld [vmem:[%s1 + $0x7f0] sm:$0xff]
    %v286 = vld [vmem:[%s1 + $0x7f8] sm:$0xff]
    %v287 = vld [vmem:[%s1 + $0x800] sm:$0xff]
    %v288 = vld [vmem:[%s1 + $0x808] sm:$0xff]
    %v289 = vld [vmem:[%s1 + $0x810] sm:$0xff]
    %v290 = vld [vmem:[%s1 + $0x818] sm:$0xff]
    %v291 = vld [vmem:[%s1 + $0x820] sm:$0xff]
    %v292 = vld [vmem:[%s1 + $0x828] sm:$0xff]
    %v293 = vld [vmem:[%s1 + $0x830] sm:$0xff]
    %v294 = vld [vmem:[%s1 + $0x838] sm:$0xff]
    %v295 = vld [vmem:[%s1 + $0x840] sm:$0xff]
    %v296 = vld [vmem:[%s1 + $0x848] sm:$0xff]
    %v297 = vld [vmem:[%s1 + $0x850] sm:$0xff]
    %v298 = vld [vmem:[%s1 + $0x858] sm:$0xff]
    %v299 = vld [vmem:[%s1 + $0x860] sm:$0xff]
    %v300 = vld [vmem:[%s1 + $0x868] sm:$0xff]
    %v301 = vld [vmem:[%s1 + $0x870] sm:$0xff]
    %v302 = vld [vmem:[%s1 + $0x878] sm:$0xff]
    %v303 = vld [vmem:[%s1 + $0x880] sm:$0xff]
    %v304 = vld [vmem:[%s1 + $0x888] sm:$0xff]
    %v305 = vld [vmem:[%s1 + $0x890] sm:$0xff]
    %v306 = vld [vmem:[%s1 + $0x898] sm:$0xff]
    %v307 = vld [vmem:[%s1 + $0x8a0] sm:$0xff]
    %v308 = vld [vmem:[%s1 + $0x8a8] sm:$0xff]
    %v309 = vld [vmem:[%s1 + $0x8b0] sm:$0xff]
    %v310 = vld [vmem:[%s1 + $0x8b8] sm:$0xff]
    %v311 = vld [vmem:[%s1 + $0x8c0] sm:$0xff]
    %v312 = vld [vmem:[%s1 + $0x8c8] sm:$0xff]
    %v313 = vld [vmem:[%s1 + $0x8d0] sm:$0xff]
    %v314 = vld [vmem:[%s1 + $0x8d8] sm:$0xff]
    %v315 = vld [vmem:[%s1 + $0x8e0] sm:$0xff]
    %v316 = vld [vmem:[%s1 + $0x8e8] sm:$0xff]
    %v317 = vld [vmem:[%s1 + $0x8f0] sm:$0xff]
    %v318 = vld [vmem:[%s1 + $0x8f8] sm:$0xff]
    %v319 = vld [vmem:[%s2] sm:$0xff]
    %v320 = vld [vmem:[%s2 + $0x8] sm:$0xf]
    %v323 = vlaneseq
    %v324 = vshrl.u32 %v323, 7
    %v325 = vsub.s32 0, %v324
    %v326 = vrot.slane %v319, %v325
    %v327 = vlaneseq
    %v328 = vshrl.u32 %v327, 7
    %v329 = vsub.s32 1, %v328
    %v330 = vrot.slane %v319, %v329
    %v331 = vlaneseq
    %v332 = vshrl.u32 %v331, 7
    %v333 = vsub.s32 2, %v332
    %v334 = vrot.slane %v319, %v333
    %v335 = vlaneseq
    %v336 = vshrl.u32 %v335, 7
    %v337 = vsub.s32 3, %v336
    %v338 = vrot.slane %v319, %v337
    %v339 = vlaneseq
    %v340 = vshrl.u32 %v339, 7
    %v341 = vsub.s32 4, %v340
    %v342 = vrot.slane %v319, %v341
    %v343 = vlaneseq
    %v344 = vshrl.u32 %v343, 7
    %v345 = vsub.s32 5, %v344
    %v346 = vrot.slane %v319, %v345
    %v347 = vlaneseq
    %v348 = vshrl.u32 %v347, 7
    %v349 = vsub.s32 6, %v348
    %v350 = vrot.slane %v319, %v349
    %v351 = vlaneseq
    %v352 = vshrl.u32 %v351, 7
    %v353 = vsub.s32 7, %v352
    %v354 = vrot.slane %v319, %v353
    %v355 = vlaneseq
    %v356 = vshrl.u32 %v355, 7
    %v357 = vsub.s32 0, %v356
    %v358 = vrot.slane %v320, %v357
    %v359 = vlaneseq
    %v360 = vshrl.u32 %v359, 7
    %v361 = vsub.s32 1, %v360
    %v362 = vrot.slane %v320, %v361
    %v363 = vlaneseq
    %v364 = vshrl.u32 %v363, 7
    %v365 = vsub.s32 2, %v364
    %v366 = vrot.slane %v320, %v365
    %v367 = vlaneseq
    %v368 = vshrl.u32 %v367, 7
    %v369 = vsub.s32 3, %v368
    %v370 = vrot.slane %v320, %v369
    %v671 = vunpack.c.l.b16 %v31
    %v672 = vunpack.c.h.b16 %v31
    %v673 = vunpack.c.l.b16 %v32
    %v674 = vunpack.c.h.b16 %v32
    %v675 = vunpack.c.l.b16 %v33
    %v676 = vunpack.c.h.b16 %v33
    %v677 = vunpack.c.l.b16 %v34
    %v678 = vunpack.c.h.b16 %v34
    %v679 = vunpack.c.l.b16 %v35
    %v680 = vunpack.c.h.b16 %v35
    %v681 = vunpack.c.l.b16 %v36
    %v682 = vunpack.c.h.b16 %v36
    %v683 = vunpack.c.l.b16 %v37
    %v684 = vunpack.c.h.b16 %v37
    %v685 = vunpack.c.l.b16 %v38
    %v686 = vunpack.c.h.b16 %v38
    %v687 = vunpack.c.l.b16 %v39
    %v688 = vunpack.c.h.b16 %v39
    %v689 = vunpack.c.l.b16 %v40
    %v690 = vunpack.c.h.b16 %v40
    %v691 = vunpack.c.l.b16 %v41
    %v692 = vunpack.c.h.b16 %v41
    %v693 = vunpack.c.l.b16 %v42
    %v694 = vunpack.c.h.b16 %v42
    %v695 = vunpack.c.l.b16 %v43
    %v696 = vunpack.c.h.b16 %v43
    %v697 = vunpack.c.l.b16 %v44
    %v698 = vunpack.c.h.b16 %v44
    %v699 = vunpack.c.l.b16 %v45
    %v700 = vunpack.c.h.b16 %v45
    %v701 = vunpack.c.l.b16 %v46
    %v702 = vunpack.c.h.b16 %v46
    %v703 = vunpack.c.l.b16 %v47
    %v704 = vunpack.c.h.b16 %v47
    %v705 = vunpack.c.l.b16 %v48
    %v706 = vunpack.c.h.b16 %v48
    %v707 = vunpack.c.l.b16 %v49
    %v708 = vunpack.c.h.b16 %v49
    %v709 = vunpack.c.l.b16 %v50
    %v710 = vunpack.c.h.b16 %v50
    %v711 = vunpack.c.l.b16 %v51
    %v712 = vunpack.c.h.b16 %v51
    %v713 = vunpack.c.l.b16 %v52
    %v714 = vunpack.c.h.b16 %v52
    %v715 = vunpack.c.l.b16 %v53
    %v716 = vunpack.c.h.b16 %v53
    %v717 = vunpack.c.l.b16 %v54
    %v718 = vunpack.c.h.b16 %v54
    %v719 = vunpack.c.l.b16 %v55
    %v720 = vunpack.c.h.b16 %v55
    %v721 = vunpack.c.l.b16 %v56
    %v722 = vunpack.c.h.b16 %v56
    %v723 = vunpack.c.l.b16 %v57
    %v724 = vunpack.c.h.b16 %v57
    %v725 = vunpack.c.l.b16 %v58
    %v726 = vunpack.c.h.b16 %v58
    %v727 = vunpack.c.l.b16 %v59
    %v728 = vunpack.c.h.b16 %v59
    %v729 = vunpack.c.l.b16 %v60
    %v730 = vunpack.c.h.b16 %v60
    %v731 = vunpack.c.l.b16 %v61
    %v732 = vunpack.c.h.b16 %v61
    %v733 = vunpack.c.l.b16 %v62
    %v734 = vunpack.c.h.b16 %v62
    %v735 = vunpack.c.l.b16 %v63
    %v736 = vunpack.c.h.b16 %v63
    %v737 = vunpack.c.l.b16 %v64
    %v738 = vunpack.c.h.b16 %v64
    %v739 = vunpack.c.l.b16 %v65
    %v740 = vunpack.c.h.b16 %v65
    %v741 = vunpack.c.l.b16 %v66
    %v742 = vunpack.c.h.b16 %v66
    %v743 = vunpack.c.l.b16 %v67
    %v744 = vunpack.c.h.b16 %v67
    %v745 = vunpack.c.l.b16 %v68
    %v746 = vunpack.c.h.b16 %v68
    %v747 = vunpack.c.l.b16 %v69
    %v748 = vunpack.c.h.b16 %v69
    %v749 = vunpack.c.l.b16 %v70
    %v750 = vunpack.c.h.b16 %v70
    %v751 = vunpack.c.l.b16 %v71
    %v752 = vunpack.c.h.b16 %v71
    %v753 = vunpack.c.l.b16 %v72
    %v754 = vunpack.c.h.b16 %v72
    %v755 = vunpack.c.l.b16 %v73
    %v756 = vunpack.c.h.b16 %v73
    %v757 = vunpack.c.l.b16 %v74
    %v758 = vunpack.c.h.b16 %v74
    %v759 = vunpack.c.l.b16 %v75
    %v760 = vunpack.c.h.b16 %v75
    %v761 = vunpack.c.l.b16 %v76
    %v762 = vunpack.c.h.b16 %v76
    %v763 = vunpack.c.l.b16 %v77
    %v764 = vunpack.c.h.b16 %v77
    %v765 = vunpack.c.l.b16 %v78
    %v766 = vunpack.c.h.b16 %v78
    %v767 = vunpack.c.l.b16 %v79
    %v768 = vunpack.c.h.b16 %v79
    %v769 = vunpack.c.l.b16 %v80
    %v770 = vunpack.c.h.b16 %v80
    %v771 = vunpack.c.l.b16 %v81
    %v772 = vunpack.c.h.b16 %v81
    %v773 = vunpack.c.l.b16 %v82
    %v774 = vunpack.c.h.b16 %v82
    %v775 = vunpack.c.l.b16 %v83
    %v776 = vunpack.c.h.b16 %v83
    %v777 = vunpack.c.l.b16 %v84
    %v778 = vunpack.c.h.b16 %v84
    %v779 = vunpack.c.l.b16 %v85
    %v780 = vunpack.c.h.b16 %v85
    %v781 = vunpack.c.l.b16 %v86
    %v782 = vunpack.c.h.b16 %v86
    %v783 = vunpack.c.l.b16 %v87
    %v784 = vunpack.c.h.b16 %v87
    %v785 = vunpack.c.l.b16 %v88
    %v786 = vunpack.c.h.b16 %v88
    %v787 = vunpack.c.l.b16 %v89
    %v788 = vunpack.c.h.b16 %v89
    %v789 = vunpack.c.l.b16 %v90
    %v790 = vunpack.c.h.b16 %v90
    %v791 = vunpack.c.l.b16 %v91
    %v792 = vunpack.c.h.b16 %v91
    %v793 = vunpack.c.l.b16 %v92
    %v794 = vunpack.c.h.b16 %v92
    %v795 = vunpack.c.l.b16 %v93
    %v796 = vunpack.c.h.b16 %v93
    %v797 = vunpack.c.l.b16 %v94
    %v798 = vunpack.c.h.b16 %v94
    %v799 = vunpack.c.l.b16 %v95
    %v800 = vunpack.c.h.b16 %v95
    %v801 = vunpack.c.l.b16 %v96
    %v802 = vunpack.c.h.b16 %v96
    %v803 = vunpack.c.l.b16 %v97
    %v804 = vunpack.c.h.b16 %v97
    %v805 = vunpack.c.l.b16 %v98
    %v806 = vunpack.c.h.b16 %v98
    %v807 = vunpack.c.l.b16 %v99
    %v808 = vunpack.c.h.b16 %v99
    %v809 = vunpack.c.l.b16 %v100
    %v810 = vunpack.c.h.b16 %v100
    %v811 = vunpack.c.l.b16 %v101
    %v812 = vunpack.c.h.b16 %v101
    %v813 = vunpack.c.l.b16 %v102
    %v814 = vunpack.c.h.b16 %v102
    %v815 = vunpack.c.l.b16 %v103
    %v816 = vunpack.c.h.b16 %v103
    %v817 = vunpack.c.l.b16 %v104
    %v818 = vunpack.c.h.b16 %v104
    %v819 = vunpack.c.l.b16 %v105
    %v820 = vunpack.c.h.b16 %v105
    %v821 = vunpack.c.l.b16 %v106
    %v822 = vunpack.c.h.b16 %v106
    %v823 = vunpack.c.l.b16 %v107
    %v824 = vunpack.c.h.b16 %v107
    %v825 = vunpack.c.l.b16 %v108
    %v826 = vunpack.c.h.b16 %v108
    %v827 = vunpack.c.l.b16 %v109
    %v828 = vunpack.c.h.b16 %v109
    %v829 = vunpack.c.l.b16 %v110
    %v830 = vunpack.c.h.b16 %v110
    %v831 = vunpack.c.l.b16 %v111
    %v832 = vunpack.c.h.b16 %v111
    %v833 = vunpack.c.l.b16 %v112
    %v834 = vunpack.c.h.b16 %v112
    %v835 = vunpack.c.l.b16 %v113
    %v836 = vunpack.c.h.b16 %v113
    %v837 = vunpack.c.l.b16 %v114
    %v838 = vunpack.c.h.b16 %v114
    %v839 = vunpack.c.l.b16 %v115
    %v840 = vunpack.c.h.b16 %v115
    %v841 = vunpack.c.l.b16 %v116
    %v842 = vunpack.c.h.b16 %v116
    %v843 = vunpack.c.l.b16 %v117
    %v844 = vunpack.c.h.b16 %v117
    %v845 = vunpack.c.l.b16 %v118
    %v846 = vunpack.c.h.b16 %v118
    %v847 = vunpack.c.l.b16 %v119
    %v848 = vunpack.c.h.b16 %v119
    %v849 = vunpack.c.l.b16 %v120
    %v850 = vunpack.c.h.b16 %v120
    %v851 = vunpack.c.l.b16 %v121
    %v852 = vunpack.c.h.b16 %v121
    %v853 = vunpack.c.l.b16 %v122
    %v854 = vunpack.c.h.b16 %v122
    %v855 = vunpack.c.l.b16 %v123
    %v856 = vunpack.c.h.b16 %v123
    %v857 = vunpack.c.l.b16 %v124
    %v858 = vunpack.c.h.b16 %v124
    %v859 = vunpack.c.l.b16 %v125
    %v860 = vunpack.c.h.b16 %v125
    %v861 = vunpack.c.l.b16 %v126
    %v862 = vunpack.c.h.b16 %v126
    %v863 = vunpack.c.l.b16 %v127
    %v864 = vunpack.c.h.b16 %v127
    %v865 = vunpack.c.l.b16 %v128
    %v866 = vunpack.c.h.b16 %v128
    %v867 = vunpack.c.l.b16 %v129
    %v868 = vunpack.c.h.b16 %v129
    %v869 = vunpack.c.l.b16 %v130
    %v870 = vunpack.c.h.b16 %v130
    %v871 = vunpack.c.l.b16 %v131
    %v872 = vunpack.c.h.b16 %v131
    %v873 = vunpack.c.l.b16 %v132
    %v874 = vunpack.c.h.b16 %v132
    %v875 = vunpack.c.l.b16 %v133
    %v876 = vunpack.c.h.b16 %v133
    %v877 = vunpack.c.l.b16 %v134
    %v878 = vunpack.c.h.b16 %v134
    %v879 = vunpack.c.l.b16 %v135
    %v880 = vunpack.c.h.b16 %v135
    %v881 = vunpack.c.l.b16 %v136
    %v882 = vunpack.c.h.b16 %v136
    %v883 = vunpack.c.l.b16 %v137
    %v884 = vunpack.c.h.b16 %v137
    %v885 = vunpack.c.l.b16 %v138
    %v886 = vunpack.c.h.b16 %v138
    %v887 = vunpack.c.l.b16 %v139
    %v888 = vunpack.c.h.b16 %v139
    %v889 = vunpack.c.l.b16 %v140
    %v890 = vunpack.c.h.b16 %v140
    %v891 = vunpack.c.l.b16 %v141
    %v892 = vunpack.c.h.b16 %v141
    %v893 = vunpack.c.l.b16 %v142
    %v894 = vunpack.c.h.b16 %v142
    %v895 = vunpack.c.l.b16 %v143
    %v896 = vunpack.c.h.b16 %v143
    %v897 = vunpack.c.l.b16 %v144
    %v898 = vunpack.c.h.b16 %v144
    %v899 = vunpack.c.l.b16 %v145
    %v900 = vunpack.c.h.b16 %v145
    %v901 = vunpack.c.l.b16 %v146
    %v902 = vunpack.c.h.b16 %v146
    %v903 = vunpack.c.l.b16 %v147
    %v904 = vunpack.c.h.b16 %v147
    %v905 = vunpack.c.l.b16 %v148
    %v906 = vunpack.c.h.b16 %v148
    %v907 = vunpack.c.l.b16 %v149
    %v908 = vunpack.c.h.b16 %v149
    %v909 = vunpack.c.l.b16 %v150
    %v910 = vunpack.c.h.b16 %v150
    %v911 = vunpack.c.l.b16 %v151
    %v912 = vunpack.c.h.b16 %v151
    %v913 = vunpack.c.l.b16 %v152
    %v914 = vunpack.c.h.b16 %v152
    %v915 = vunpack.c.l.b16 %v153
    %v916 = vunpack.c.h.b16 %v153
    %v917 = vunpack.c.l.b16 %v154
    %v918 = vunpack.c.h.b16 %v154
    %v919 = vunpack.c.l.b16 %v155
    %v920 = vunpack.c.h.b16 %v155
    %v921 = vunpack.c.l.b16 %v156
    %v922 = vunpack.c.h.b16 %v156
    %v923 = vunpack.c.l.b16 %v157
    %v924 = vunpack.c.h.b16 %v157
    %v925 = vunpack.c.l.b16 %v158
    %v926 = vunpack.c.h.b16 %v158
    %v927 = vunpack.c.l.b16 %v159
    %v928 = vunpack.c.h.b16 %v159
    %v929 = vunpack.c.l.b16 %v160
    %v930 = vunpack.c.h.b16 %v160
    %v931 = vunpack.c.l.b16 %v161
    %v932 = vunpack.c.h.b16 %v161
    %v933 = vunpack.c.l.b16 %v162
    %v934 = vunpack.c.h.b16 %v162
    %v935 = vunpack.c.l.b16 %v163
    %v936 = vunpack.c.h.b16 %v163
    %v937 = vunpack.c.l.b16 %v164
    %v938 = vunpack.c.h.b16 %v164
    %v939 = vunpack.c.l.b16 %v165
    %v940 = vunpack.c.h.b16 %v165
    %v941 = vunpack.c.l.b16 %v166
    %v942 = vunpack.c.h.b16 %v166
    %v943 = vunpack.c.l.b16 %v167
    %v944 = vunpack.c.h.b16 %v167
    %v945 = vunpack.c.l.b16 %v168
    %v946 = vunpack.c.h.b16 %v168
    %v947 = vunpack.c.l.b16 %v169
    %v948 = vunpack.c.h.b16 %v169
    %v949 = vunpack.c.l.b16 %v170
    %v950 = vunpack.c.h.b16 %v170
    %v951 = vunpack.c.l.b16 %v171
    %v952 = vunpack.c.h.b16 %v171
    %v953 = vunpack.c.l.b16 %v172
    %v954 = vunpack.c.h.b16 %v172
    %v955 = vunpack.c.l.b16 %v173
    %v956 = vunpack.c.h.b16 %v173
    %v957 = vunpack.c.l.b16 %v174
    %v958 = vunpack.c.h.b16 %v174
    %v959 = vunpack.c.l.b16 %v175
    %v960 = vunpack.c.h.b16 %v175
    %v961 = vunpack.c.l.b16 %v176
    %v962 = vunpack.c.h.b16 %v176
    %v963 = vunpack.c.l.b16 %v177
    %v964 = vunpack.c.h.b16 %v177
    %v965 = vunpack.c.l.b16 %v178
    %v966 = vunpack.c.h.b16 %v178
    %v967 = vunpack.c.l.b16 %v179
    %v968 = vunpack.c.h.b16 %v179
    %v969 = vunpack.c.l.b16 %v180
    %v970 = vunpack.c.h.b16 %v180
    %v971 = vunpack.c.l.b16 %v181
    %v972 = vunpack.c.h.b16 %v181
    %v973 = vunpack.c.l.b16 %v182
    %v974 = vunpack.c.h.b16 %v182
    %v975 = vunpack.c.l.b16 %v183
    %v976 = vunpack.c.h.b16 %v183
    %v977 = vunpack.c.l.b16 %v184
    %v978 = vunpack.c.h.b16 %v184
    %v979 = vunpack.c.l.b16 %v185
    %v980 = vunpack.c.h.b16 %v185
    %v981 = vunpack.c.l.b16 %v186
    %v982 = vunpack.c.h.b16 %v186
    %v983 = vunpack.c.l.b16 %v187
    %v984 = vunpack.c.h.b16 %v187
    %v985 = vunpack.c.l.b16 %v188
    %v986 = vunpack.c.h.b16 %v188
    %v987 = vunpack.c.l.b16 %v189
    %v988 = vunpack.c.h.b16 %v189
    %v989 = vunpack.c.l.b16 %v190
    %v990 = vunpack.c.h.b16 %v190
    %v991 = vunpack.c.l.b16 %v191
    %v992 = vunpack.c.h.b16 %v191
    %v993 = vunpack.c.l.b16 %v192
    %v994 = vunpack.c.h.b16 %v192
    %v995 = vunpack.c.l.b16 %v193
    %v996 = vunpack.c.h.b16 %v193
    %v997 = vunpack.c.l.b16 %v194
    %v998 = vunpack.c.h.b16 %v194
    %v999 = vunpack.c.l.b16 %v195
    %v1000 = vunpack.c.h.b16 %v195
    %v1001 = vunpack.c.l.b16 %v196
    %v1002 = vunpack.c.h.b16 %v196
    %v1003 = vunpack.c.l.b16 %v197
    %v1004 = vunpack.c.h.b16 %v197
    %v1005 = vunpack.c.l.b16 %v198
    %v1006 = vunpack.c.h.b16 %v198
    %v1007 = vunpack.c.l.b16 %v199
    %v1008 = vunpack.c.h.b16 %v199
    %v1009 = vunpack.c.l.b16 %v200
    %v1010 = vunpack.c.h.b16 %v200
    %v1011 = vunpack.c.l.b16 %v201
    %v1012 = vunpack.c.h.b16 %v201
    %v1013 = vunpack.c.l.b16 %v202
    %v1014 = vunpack.c.h.b16 %v202
    %v1015 = vunpack.c.l.b16 %v203
    %v1016 = vunpack.c.h.b16 %v203
    %v1017 = vunpack.c.l.b16 %v204
    %v1018 = vunpack.c.h.b16 %v204
    %v1019 = vunpack.c.l.b16 %v205
    %v1020 = vunpack.c.h.b16 %v205
    %v1021 = vunpack.c.l.b16 %v206
    %v1022 = vunpack.c.h.b16 %v206
    %v1023 = vunpack.c.l.b16 %v207
    %v1024 = vunpack.c.h.b16 %v207
    %v1025 = vunpack.c.l.b16 %v208
    %v1026 = vunpack.c.h.b16 %v208
    %v1027 = vunpack.c.l.b16 %v209
    %v1028 = vunpack.c.h.b16 %v209
    %v1029 = vunpack.c.l.b16 %v210
    %v1030 = vunpack.c.h.b16 %v210
    %v1031 = vunpack.c.l.b16 %v211
    %v1032 = vunpack.c.h.b16 %v211
    %v1033 = vunpack.c.l.b16 %v212
    %v1034 = vunpack.c.h.b16 %v212
    %v1035 = vunpack.c.l.b16 %v213
    %v1036 = vunpack.c.h.b16 %v213
    %v1037 = vunpack.c.l.b16 %v214
    %v1038 = vunpack.c.h.b16 %v214
    %v1039 = vunpack.c.l.b16 %v215
    %v1040 = vunpack.c.h.b16 %v215
    %v1041 = vunpack.c.l.b16 %v216
    %v1042 = vunpack.c.h.b16 %v216
    %v1043 = vunpack.c.l.b16 %v217
    %v1044 = vunpack.c.h.b16 %v217
    %v1045 = vunpack.c.l.b16 %v218
    %v1046 = vunpack.c.h.b16 %v218
    %v1047 = vunpack.c.l.b16 %v219
    %v1048 = vunpack.c.h.b16 %v219
    %v1049 = vunpack.c.l.b16 %v220
    %v1050 = vunpack.c.h.b16 %v220
    %v1051 = vunpack.c.l.b16 %v221
    %v1052 = vunpack.c.h.b16 %v221
    %v1053 = vunpack.c.l.b16 %v222
    %v1054 = vunpack.c.h.b16 %v222
    %v1055 = vunpack.c.l.b16 %v223
    %v1056 = vunpack.c.h.b16 %v223
    %v1057 = vunpack.c.l.b16 %v224
    %v1058 = vunpack.c.h.b16 %v224
    %v1059 = vunpack.c.l.b16 %v225
    %v1060 = vunpack.c.h.b16 %v225
    %v1061 = vunpack.c.l.b16 %v226
    %v1062 = vunpack.c.h.b16 %v226
    %v1063 = vunpack.c.l.b16 %v227
    %v1064 = vunpack.c.h.b16 %v227
    %v1065 = vunpack.c.l.b16 %v228
    %v1066 = vunpack.c.h.b16 %v228
    %v1067 = vunpack.c.l.b16 %v229
    %v1068 = vunpack.c.h.b16 %v229
    %v1069 = vunpack.c.l.b16 %v230
    %v1070 = vunpack.c.h.b16 %v230
    %v1071 = vunpack.c.l.b16 %v231
    %v1072 = vunpack.c.h.b16 %v231
    %v1073 = vunpack.c.l.b16 %v232
    %v1074 = vunpack.c.h.b16 %v232
    %v1075 = vunpack.c.l.b16 %v233
    %v1076 = vunpack.c.h.b16 %v233
    %v1077 = vunpack.c.l.b16 %v234
    %v1078 = vunpack.c.h.b16 %v234
    %v1079 = vunpack.c.l.b16 %v235
    %v1080 = vunpack.c.h.b16 %v235
    %v1081 = vunpack.c.l.b16 %v236
    %v1082 = vunpack.c.h.b16 %v236
    %v1083 = vunpack.c.l.b16 %v237
    %v1084 = vunpack.c.h.b16 %v237
    %v1085 = vunpack.c.l.b16 %v238
    %v1086 = vunpack.c.h.b16 %v238
    %v1087 = vunpack.c.l.b16 %v239
    %v1088 = vunpack.c.h.b16 %v239
    %v1089 = vunpack.c.l.b16 %v240
    %v1090 = vunpack.c.h.b16 %v240
    %v1091 = vunpack.c.l.b16 %v241
    %v1092 = vunpack.c.h.b16 %v241
    %v1093 = vunpack.c.l.b16 %v242
    %v1094 = vunpack.c.h.b16 %v242
    %v1095 = vunpack.c.l.b16 %v243
    %v1096 = vunpack.c.h.b16 %v243
    %v1097 = vunpack.c.l.b16 %v244
    %v1098 = vunpack.c.h.b16 %v244
    %v1099 = vunpack.c.l.b16 %v245
    %v1100 = vunpack.c.h.b16 %v245
    %v1101 = vunpack.c.l.b16 %v246
    %v1102 = vunpack.c.h.b16 %v246
    %v1103 = vunpack.c.l.b16 %v247
    %v1104 = vunpack.c.h.b16 %v247
    %v1105 = vunpack.c.l.b16 %v248
    %v1106 = vunpack.c.h.b16 %v248
    %v1107 = vunpack.c.l.b16 %v249
    %v1108 = vunpack.c.h.b16 %v249
    %v1109 = vunpack.c.l.b16 %v250
    %v1110 = vunpack.c.h.b16 %v250
    %v1111 = vunpack.c.l.b16 %v251
    %v1112 = vunpack.c.h.b16 %v251
    %v1113 = vunpack.c.l.b16 %v252
    %v1114 = vunpack.c.h.b16 %v252
    %v1115 = vunpack.c.l.b16 %v253
    %v1116 = vunpack.c.h.b16 %v253
    %v1117 = vunpack.c.l.b16 %v254
    %v1118 = vunpack.c.h.b16 %v254
    %v1119 = vunpack.c.l.b16 %v255
    %v1120 = vunpack.c.h.b16 %v255
    %v1121 = vunpack.c.l.b16 %v256
    %v1122 = vunpack.c.h.b16 %v256
    %v1123 = vunpack.c.l.b16 %v257
    %v1124 = vunpack.c.h.b16 %v257
    %v1125 = vunpack.c.l.b16 %v258
    %v1126 = vunpack.c.h.b16 %v258
    %v1127 = vunpack.c.l.b16 %v259
    %v1128 = vunpack.c.h.b16 %v259
    %v1129 = vunpack.c.l.b16 %v260
    %v1130 = vunpack.c.h.b16 %v260
    %v1131 = vunpack.c.l.b16 %v261
    %v1132 = vunpack.c.h.b16 %v261
    %v1133 = vunpack.c.l.b16 %v262
    %v1134 = vunpack.c.h.b16 %v262
    %v1135 = vunpack.c.l.b16 %v263
    %v1136 = vunpack.c.h.b16 %v263
    %v1137 = vunpack.c.l.b16 %v264
    %v1138 = vunpack.c.h.b16 %v264
    %v1139 = vunpack.c.l.b16 %v265
    %v1140 = vunpack.c.h.b16 %v265
    %v1141 = vunpack.c.l.b16 %v266
    %v1142 = vunpack.c.h.b16 %v266
    %v1143 = vunpack.c.l.b16 %v267
    %v1144 = vunpack.c.h.b16 %v267
    %v1145 = vunpack.c.l.b16 %v268
    %v1146 = vunpack.c.h.b16 %v268
    %v1147 = vunpack.c.l.b16 %v269
    %v1148 = vunpack.c.h.b16 %v269
    %v1149 = vunpack.c.l.b16 %v270
    %v1150 = vunpack.c.h.b16 %v270
    %v1151 = vunpack.c.l.b16 %v271
    %v1152 = vunpack.c.h.b16 %v271
    %v1153 = vunpack.c.l.b16 %v272
    %v1154 = vunpack.c.h.b16 %v272
    %v1155 = vunpack.c.l.b16 %v273
    %v1156 = vunpack.c.h.b16 %v273
    %v1157 = vunpack.c.l.b16 %v274
    %v1158 = vunpack.c.h.b16 %v274
    %v1159 = vunpack.c.l.b16 %v275
    %v1160 = vunpack.c.h.b16 %v275
    %v1161 = vunpack.c.l.b16 %v276
    %v1162 = vunpack.c.h.b16 %v276
    %v1163 = vunpack.c.l.b16 %v277
    %v1164 = vunpack.c.h.b16 %v277
    %v1165 = vunpack.c.l.b16 %v278
    %v1166 = vunpack.c.h.b16 %v278
    %v1167 = vunpack.c.l.b16 %v279
    %v1168 = vunpack.c.h.b16 %v279
    %v1169 = vunpack.c.l.b16 %v280
    %v1170 = vunpack.c.h.b16 %v280
    %v1171 = vunpack.c.l.b16 %v281
    %v1172 = vunpack.c.h.b16 %v281
    %v1173 = vunpack.c.l.b16 %v282
    %v1174 = vunpack.c.h.b16 %v282
    %v1175 = vunpack.c.l.b16 %v283
    %v1176 = vunpack.c.h.b16 %v283
    %v1177 = vunpack.c.l.b16 %v284
    %v1178 = vunpack.c.h.b16 %v284
    %v1179 = vunpack.c.l.b16 %v285
    %v1180 = vunpack.c.h.b16 %v285
    %v1181 = vunpack.c.l.b16 %v286
    %v1182 = vunpack.c.h.b16 %v286
    %v1183 = vunpack.c.l.b16 %v287
    %v1184 = vunpack.c.h.b16 %v287
    %v1185 = vunpack.c.l.b16 %v288
    %v1186 = vunpack.c.h.b16 %v288
    %v1187 = vunpack.c.l.b16 %v289
    %v1188 = vunpack.c.h.b16 %v289
    %v1189 = vunpack.c.l.b16 %v290
    %v1190 = vunpack.c.h.b16 %v290
    %v1191 = vunpack.c.l.b16 %v291
    %v1192 = vunpack.c.h.b16 %v291
    %v1193 = vunpack.c.l.b16 %v292
    %v1194 = vunpack.c.h.b16 %v292
    %v1195 = vunpack.c.l.b16 %v293
    %v1196 = vunpack.c.h.b16 %v293
    %v1197 = vunpack.c.l.b16 %v294
    %v1198 = vunpack.c.h.b16 %v294
    %v1199 = vunpack.c.l.b16 %v295
    %v1200 = vunpack.c.h.b16 %v295
    %v1201 = vunpack.c.l.b16 %v296
    %v1202 = vunpack.c.h.b16 %v296
    %v1203 = vunpack.c.l.b16 %v297
    %v1204 = vunpack.c.h.b16 %v297
    %v1205 = vunpack.c.l.b16 %v298
    %v1206 = vunpack.c.h.b16 %v298
    %v1207 = vunpack.c.l.b16 %v299
    %v1208 = vunpack.c.h.b16 %v299
    %v1209 = vunpack.c.l.b16 %v300
    %v1210 = vunpack.c.h.b16 %v300
    %v1211 = vunpack.c.l.b16 %v301
    %v1212 = vunpack.c.h.b16 %v301
    %v1213 = vunpack.c.l.b16 %v302
    %v1214 = vunpack.c.h.b16 %v302
    %v1215 = vunpack.c.l.b16 %v303
    %v1216 = vunpack.c.h.b16 %v303
    %v1217 = vunpack.c.l.b16 %v304
    %v1218 = vunpack.c.h.b16 %v304
    %v1219 = vunpack.c.l.b16 %v305
    %v1220 = vunpack.c.h.b16 %v305
    %v1221 = vunpack.c.l.b16 %v306
    %v1222 = vunpack.c.h.b16 %v306
    %v1223 = vunpack.c.l.b16 %v307
    %v1224 = vunpack.c.h.b16 %v307
    %v1225 = vunpack.c.l.b16 %v308
    %v1226 = vunpack.c.h.b16 %v308
    %v1227 = vunpack.c.l.b16 %v309
    %v1228 = vunpack.c.h.b16 %v309
    %v1229 = vunpack.c.l.b16 %v310
    %v1230 = vunpack.c.h.b16 %v310
    %v1231 = vunpack.c.l.b16 %v311
    %v1232 = vunpack.c.h.b16 %v311
    %v1233 = vunpack.c.l.b16 %v312
    %v1234 = vunpack.c.h.b16 %v312
    %v1235 = vunpack.c.l.b16 %v313
    %v1236 = vunpack.c.h.b16 %v313
    %v1237 = vunpack.c.l.b16 %v314
    %v1238 = vunpack.c.h.b16 %v314
    %v1239 = vunpack.c.l.b16 %v315
    %v1240 = vunpack.c.h.b16 %v315
    %v1241 = vunpack.c.l.b16 %v316
    %v1242 = vunpack.c.h.b16 %v316
    %v1243 = vunpack.c.l.b16 %v317
    %v1244 = vunpack.c.h.b16 %v317
    %v1245 = vunpack.c.l.b16 %v318
    %v1246 = vunpack.c.h.b16 %v318
    %v1247 = vpack.c.b16 %v683, %v671
    %v1248 = vpack.c.b16 %v684, %v672
    %v1249 = vpack.c.b16 %v685, %v673
    %v1250 = vpack.c.b16 %v686, %v674
    %v1251 = vpack.c.b16 %v687, %v675
    %v1252 = vpack.c.b16 %v688, %v676
    %v1253 = vpack.c.b16 %v689, %v677
    %v1254 = vpack.c.b16 %v690, %v678
    %v1255 = vpack.c.b16 %v691, %v679
    %v1256 = vpack.c.b16 %v692, %v680
    %v1257 = vpack.c.b16 %v693, %v681
    %v1258 = vpack.c.b16 %v694, %v682
    %v1259 = vpack.c.b16 %v707, %v695
    %v1260 = vpack.c.b16 %v708, %v696
    %v1261 = vpack.c.b16 %v709, %v697
    %v1262 = vpack.c.b16 %v710, %v698
    %v1263 = vpack.c.b16 %v711, %v699
    %v1264 = vpack.c.b16 %v712, %v700
    %v1265 = vpack.c.b16 %v713, %v701
    %v1266 = vpack.c.b16 %v714, %v702
    %v1267 = vpack.c.b16 %v715, %v703
    %v1268 = vpack.c.b16 %v716, %v704
    %v1269 = vpack.c.b16 %v717, %v705
    %v1270 = vpack.c.b16 %v718, %v706
    %v1271 = vpack.c.b16 %v731, %v719
    %v1272 = vpack.c.b16 %v732, %v720
    %v1273 = vpack.c.b16 %v733, %v721
    %v1274 = vpack.c.b16 %v734, %v722
    %v1275 = vpack.c.b16 %v735, %v723
    %v1276 = vpack.c.b16 %v736, %v724
    %v1277 = vpack.c.b16 %v737, %v725
    %v1278 = vpack.c.b16 %v738, %v726
    %v1279 = vpack.c.b16 %v739, %v727
    %v1280 = vpack.c.b16 %v740, %v728
    %v1281 = vpack.c.b16 %v741, %v729
    %v1282 = vpack.c.b16 %v742, %v730
    %v1283 = vpack.c.b16 %v755, %v743
    %v1284 = vpack.c.b16 %v756, %v744
    %v1285 = vpack.c.b16 %v757, %v745
    %v1286 = vpack.c.b16 %v758, %v746
    %v1287 = vpack.c.b16 %v759, %v747
    %v1288 = vpack.c.b16 %v760, %v748
    %v1289 = vpack.c.b16 %v761, %v749
    %v1290 = vpack.c.b16 %v762, %v750
    %v1291 = vpack.c.b16 %v763, %v751
    %v1292 = vpack.c.b16 %v764, %v752
    %v1293 = vpack.c.b16 %v765, %v753
    %v1294 = vpack.c.b16 %v766, %v754
    %v1295 = vpack.c.b16 %v779, %v767
    %v1296 = vpack.c.b16 %v780, %v768
    %v1297 = vpack.c.b16 %v781, %v769
    %v1298 = vpack.c.b16 %v782, %v770
    %v1299 = vpack.c.b16 %v783, %v771
    %v1300 = vpack.c.b16 %v784, %v772
    %v1301 = vpack.c.b16 %v785, %v773
    %v1302 = vpack.c.b16 %v786, %v774
    %v1303 = vpack.c.b16 %v787, %v775
    %v1304 = vpack.c.b16 %v788, %v776
    %v1305 = vpack.c.b16 %v789, %v777
    %v1306 = vpack.c.b16 %v790, %v778
    %v1307 = vpack.c.b16 %v803, %v791
    %v1308 = vpack.c.b16 %v804, %v792
    %v1309 = vpack.c.b16 %v805, %v793
    %v1310 = vpack.c.b16 %v806, %v794
    %v1311 = vpack.c.b16 %v807, %v795
    %v1312 = vpack.c.b16 %v808, %v796
    %v1313 = vpack.c.b16 %v809, %v797
    %v1314 = vpack.c.b16 %v810, %v798
    %v1315 = vpack.c.b16 %v811, %v799
    %v1316 = vpack.c.b16 %v812, %v800
    %v1317 = vpack.c.b16 %v813, %v801
    %v1318 = vpack.c.b16 %v814, %v802
    %v1319 = vpack.c.b16 %v827, %v815
    %v1320 = vpack.c.b16 %v828, %v816
    %v1321 = vpack.c.b16 %v829, %v817
    %v1322 = vpack.c.b16 %v830, %v818
    %v1323 = vpack.c.b16 %v831, %v819
    %v1324 = vpack.c.b16 %v832, %v820
    %v1325 = vpack.c.b16 %v833, %v821
    %v1326 = vpack.c.b16 %v834, %v822
    %v1327 = vpack.c.b16 %v835, %v823
    %v1328 = vpack.c.b16 %v836, %v824
    %v1329 = vpack.c.b16 %v837, %v825
    %v1330 = vpack.c.b16 %v838, %v826
    %v1331 = vpack.c.b16 %v851, %v839
    %v1332 = vpack.c.b16 %v852, %v840
    %v1333 = vpack.c.b16 %v853, %v841
    %v1334 = vpack.c.b16 %v854, %v842
    %v1335 = vpack.c.b16 %v855, %v843
    %v1336 = vpack.c.b16 %v856, %v844
    %v1337 = vpack.c.b16 %v857, %v845
    %v1338 = vpack.c.b16 %v858, %v846
    %v1339 = vpack.c.b16 %v859, %v847
    %v1340 = vpack.c.b16 %v860, %v848
    %v1341 = vpack.c.b16 %v861, %v849
    %v1342 = vpack.c.b16 %v862, %v850
    %v1343 = vpack.c.b16 %v875, %v863
    %v1344 = vpack.c.b16 %v876, %v864
    %v1345 = vpack.c.b16 %v877, %v865
    %v1346 = vpack.c.b16 %v878, %v866
    %v1347 = vpack.c.b16 %v879, %v867
    %v1348 = vpack.c.b16 %v880, %v868
    %v1349 = vpack.c.b16 %v881, %v869
    %v1350 = vpack.c.b16 %v882, %v870
    %v1351 = vpack.c.b16 %v883, %v871
    %v1352 = vpack.c.b16 %v884, %v872
    %v1353 = vpack.c.b16 %v885, %v873
    %v1354 = vpack.c.b16 %v886, %v874
    %v1355 = vpack.c.b16 %v899, %v887
    %v1356 = vpack.c.b16 %v900, %v888
    %v1357 = vpack.c.b16 %v901, %v889
    %v1358 = vpack.c.b16 %v902, %v890
    %v1359 = vpack.c.b16 %v903, %v891
    %v1360 = vpack.c.b16 %v904, %v892
    %v1361 = vpack.c.b16 %v905, %v893
    %v1362 = vpack.c.b16 %v906, %v894
    %v1363 = vpack.c.b16 %v907, %v895
    %v1364 = vpack.c.b16 %v908, %v896
    %v1365 = vpack.c.b16 %v909, %v897
    %v1366 = vpack.c.b16 %v910, %v898
    %v1367 = vpack.c.b16 %v923, %v911
    %v1368 = vpack.c.b16 %v924, %v912
    %v1369 = vpack.c.b16 %v925, %v913
    %v1370 = vpack.c.b16 %v926, %v914
    %v1371 = vpack.c.b16 %v927, %v915
    %v1372 = vpack.c.b16 %v928, %v916
    %v1373 = vpack.c.b16 %v929, %v917
    %v1374 = vpack.c.b16 %v930, %v918
    %v1375 = vpack.c.b16 %v931, %v919
    %v1376 = vpack.c.b16 %v932, %v920
    %v1377 = vpack.c.b16 %v933, %v921
    %v1378 = vpack.c.b16 %v934, %v922
    %v1379 = vpack.c.b16 %v947, %v935
    %v1380 = vpack.c.b16 %v948, %v936
    %v1381 = vpack.c.b16 %v949, %v937
    %v1382 = vpack.c.b16 %v950, %v938
    %v1383 = vpack.c.b16 %v951, %v939
    %v1384 = vpack.c.b16 %v952, %v940
    %v1385 = vpack.c.b16 %v953, %v941
    %v1386 = vpack.c.b16 %v954, %v942
    %v1387 = vpack.c.b16 %v955, %v943
    %v1388 = vpack.c.b16 %v956, %v944
    %v1389 = vpack.c.b16 %v957, %v945
    %v1390 = vpack.c.b16 %v958, %v946
    %v1391 = vpack.c.b16 %v971, %v959
    %v1392 = vpack.c.b16 %v972, %v960
    %v1393 = vpack.c.b16 %v973, %v961
    %v1394 = vpack.c.b16 %v974, %v962
    %v1395 = vpack.c.b16 %v975, %v963
    %v1396 = vpack.c.b16 %v976, %v964
    %v1397 = vpack.c.b16 %v977, %v965
    %v1398 = vpack.c.b16 %v978, %v966
    %v1399 = vpack.c.b16 %v979, %v967
    %v1400 = vpack.c.b16 %v980, %v968
    %v1401 = vpack.c.b16 %v981, %v969
    %v1402 = vpack.c.b16 %v982, %v970
    %v1403 = vpack.c.b16 %v995, %v983
    %v1404 = vpack.c.b16 %v996, %v984
    %v1405 = vpack.c.b16 %v997, %v985
    %v1406 = vpack.c.b16 %v998, %v986
    %v1407 = vpack.c.b16 %v999, %v987
    %v1408 = vpack.c.b16 %v1000, %v988
    %v1409 = vpack.c.b16 %v1001, %v989
    %v1410 = vpack.c.b16 %v1002, %v990
    %v1411 = vpack.c.b16 %v1003, %v991
    %v1412 = vpack.c.b16 %v1004, %v992
    %v1413 = vpack.c.b16 %v1005, %v993
    %v1414 = vpack.c.b16 %v1006, %v994
    %v1415 = vpack.c.b16 %v1019, %v1007
    %v1416 = vpack.c.b16 %v1020, %v1008
    %v1417 = vpack.c.b16 %v1021, %v1009
    %v1418 = vpack.c.b16 %v1022, %v1010
    %v1419 = vpack.c.b16 %v1023, %v1011
    %v1420 = vpack.c.b16 %v1024, %v1012
    %v1421 = vpack.c.b16 %v1025, %v1013
    %v1422 = vpack.c.b16 %v1026, %v1014
    %v1423 = vpack.c.b16 %v1027, %v1015
    %v1424 = vpack.c.b16 %v1028, %v1016
    %v1425 = vpack.c.b16 %v1029, %v1017
    %v1426 = vpack.c.b16 %v1030, %v1018
    %v1427 = vpack.c.b16 %v1043, %v1031
    %v1428 = vpack.c.b16 %v1044, %v1032
    %v1429 = vpack.c.b16 %v1045, %v1033
    %v1430 = vpack.c.b16 %v1046, %v1034
    %v1431 = vpack.c.b16 %v1047, %v1035
    %v1432 = vpack.c.b16 %v1048, %v1036
    %v1433 = vpack.c.b16 %v1049, %v1037
    %v1434 = vpack.c.b16 %v1050, %v1038
    %v1435 = vpack.c.b16 %v1051, %v1039
    %v1436 = vpack.c.b16 %v1052, %v1040
    %v1437 = vpack.c.b16 %v1053, %v1041
    %v1438 = vpack.c.b16 %v1054, %v1042
    %v1439 = vpack.c.b16 %v1067, %v1055
    %v1440 = vpack.c.b16 %v1068, %v1056
    %v1441 = vpack.c.b16 %v1069, %v1057
    %v1442 = vpack.c.b16 %v1070, %v1058
    %v1443 = vpack.c.b16 %v1071, %v1059
    %v1444 = vpack.c.b16 %v1072, %v1060
    %v1445 = vpack.c.b16 %v1073, %v1061
    %v1446 = vpack.c.b16 %v1074, %v1062
    %v1447 = vpack.c.b16 %v1075, %v1063
    %v1448 = vpack.c.b16 %v1076, %v1064
    %v1449 = vpack.c.b16 %v1077, %v1065
    %v1450 = vpack.c.b16 %v1078, %v1066
    %v1451 = vpack.c.b16 %v1091, %v1079
    %v1452 = vpack.c.b16 %v1092, %v1080
    %v1453 = vpack.c.b16 %v1093, %v1081
    %v1454 = vpack.c.b16 %v1094, %v1082
    %v1455 = vpack.c.b16 %v1095, %v1083
    %v1456 = vpack.c.b16 %v1096, %v1084
    %v1457 = vpack.c.b16 %v1097, %v1085
    %v1458 = vpack.c.b16 %v1098, %v1086
    %v1459 = vpack.c.b16 %v1099, %v1087
    %v1460 = vpack.c.b16 %v1100, %v1088
    %v1461 = vpack.c.b16 %v1101, %v1089
    %v1462 = vpack.c.b16 %v1102, %v1090
    %v1463 = vpack.c.b16 %v1115, %v1103
    %v1464 = vpack.c.b16 %v1116, %v1104
    %v1465 = vpack.c.b16 %v1117, %v1105
    %v1466 = vpack.c.b16 %v1118, %v1106
    %v1467 = vpack.c.b16 %v1119, %v1107
    %v1468 = vpack.c.b16 %v1120, %v1108
    %v1469 = vpack.c.b16 %v1121, %v1109
    %v1470 = vpack.c.b16 %v1122, %v1110
    %v1471 = vpack.c.b16 %v1123, %v1111
    %v1472 = vpack.c.b16 %v1124, %v1112
    %v1473 = vpack.c.b16 %v1125, %v1113
    %v1474 = vpack.c.b16 %v1126, %v1114
    %v1475 = vpack.c.b16 %v1139, %v1127
    %v1476 = vpack.c.b16 %v1140, %v1128
    %v1477 = vpack.c.b16 %v1141, %v1129
    %v1478 = vpack.c.b16 %v1142, %v1130
    %v1479 = vpack.c.b16 %v1143, %v1131
    %v1480 = vpack.c.b16 %v1144, %v1132
    %v1481 = vpack.c.b16 %v1145, %v1133
    %v1482 = vpack.c.b16 %v1146, %v1134
    %v1483 = vpack.c.b16 %v1147, %v1135
    %v1484 = vpack.c.b16 %v1148, %v1136
    %v1485 = vpack.c.b16 %v1149, %v1137
    %v1486 = vpack.c.b16 %v1150, %v1138
    %v1487 = vpack.c.b16 %v1163, %v1151
    %v1488 = vpack.c.b16 %v1164, %v1152
    %v1489 = vpack.c.b16 %v1165, %v1153
    %v1490 = vpack.c.b16 %v1166, %v1154
    %v1491 = vpack.c.b16 %v1167, %v1155
    %v1492 = vpack.c.b16 %v1168, %v1156
    %v1493 = vpack.c.b16 %v1169, %v1157
    %v1494 = vpack.c.b16 %v1170, %v1158
    %v1495 = vpack.c.b16 %v1171, %v1159
    %v1496 = vpack.c.b16 %v1172, %v1160
    %v1497 = vpack.c.b16 %v1173, %v1161
    %v1498 = vpack.c.b16 %v1174, %v1162
    %v1499 = vpack.c.b16 %v1187, %v1175
    %v1500 = vpack.c.b16 %v1188, %v1176
    %v1501 = vpack.c.b16 %v1189, %v1177
    %v1502 = vpack.c.b16 %v1190, %v1178
    %v1503 = vpack.c.b16 %v1191, %v1179
    %v1504 = vpack.c.b16 %v1192, %v1180
    %v1505 = vpack.c.b16 %v1193, %v1181
    %v1506 = vpack.c.b16 %v1194, %v1182
    %v1507 = vpack.c.b16 %v1195, %v1183
    %v1508 = vpack.c.b16 %v1196, %v1184
    %v1509 = vpack.c.b16 %v1197, %v1185
    %v1510 = vpack.c.b16 %v1198, %v1186
    %v1511 = vpack.c.b16 %v1211, %v1199
    %v1512 = vpack.c.b16 %v1212, %v1200
    %v1513 = vpack.c.b16 %v1213, %v1201
    %v1514 = vpack.c.b16 %v1214, %v1202
    %v1515 = vpack.c.b16 %v1215, %v1203
    %v1516 = vpack.c.b16 %v1216, %v1204
    %v1517 = vpack.c.b16 %v1217, %v1205
    %v1518 = vpack.c.b16 %v1218, %v1206
    %v1519 = vpack.c.b16 %v1219, %v1207
    %v1520 = vpack.c.b16 %v1220, %v1208
    %v1521 = vpack.c.b16 %v1221, %v1209
    %v1522 = vpack.c.b16 %v1222, %v1210
    %v1523 = vpack.c.b16 %v1235, %v1223
    %v1524 = vpack.c.b16 %v1236, %v1224
    %v1525 = vpack.c.b16 %v1237, %v1225
    %v1526 = vpack.c.b16 %v1238, %v1226
    %v1527 = vpack.c.b16 %v1239, %v1227
    %v1528 = vpack.c.b16 %v1240, %v1228
    %v1529 = vpack.c.b16 %v1241, %v1229
    %v1530 = vpack.c.b16 %v1242, %v1230
    %v1531 = vpack.c.b16 %v1243, %v1231
    %v1532 = vpack.c.b16 %v1244, %v1232
    %v1533 = vpack.c.b16 %v1245, %v1233
    %v1534 = vpack.c.b16 %v1246, %v1234
    %1823 = vmatprep.subr.bf16.mxu0 %v1248
    %1824 = vmatpush1.bf16.msra.mxu0 %v1247
    %1825 = vmatprep.subr.bf16.mxu0 %v1260
    %1826 = vmatpush1.bf16.msra.mxu0 %v1259
    %1827 = vmatprep.subr.bf16.mxu0 %v1272
    %1828 = vmatpush1.bf16.msra.mxu0 %v1271
    %1829 = vmatprep.subr.bf16.mxu0 %v1284
    %1830 = vmatpush1.bf16.msra.mxu0 %v1283
    %1831 = vmatprep.subr.bf16.mxu0 %v1296
    %1832 = vmatpush1.bf16.msra.mxu0 %v1295
    %1833 = vmatprep.subr.bf16.mxu0 %v1308
    %1834 = vmatpush1.bf16.msra.mxu0 %v1307
    %1835 = vmatprep.subr.bf16.mxu0 %v1320
    %1836 = vmatpush1.bf16.msra.mxu0 %v1319
    %1837 = vmatprep.subr.bf16.mxu0 %v1332
    %1838 = vmatpush1.bf16.msra.mxu0 %v1331
    %1839 = vmatprep.subr.bf16.mxu0 %v1344
    %1840 = vmatpush1.bf16.msra.mxu0 %v1343
    %1841 = vmatprep.subr.bf16.mxu0 %v1356
    %1842 = vmatpush1.bf16.msra.mxu0 %v1355
    %1843 = vmatprep.subr.bf16.mxu0 %v1368
    %1844 = vmatpush1.bf16.msra.mxu0 %v1367
    %1845 = vmatprep.subr.bf16.mxu0 %v1380
    %1846 = vmatpush1.bf16.msra.mxu0 %v1379
    %1847 = vmatprep.subr.bf16.mxu0 %v1392
    %1848 = vmatpush1.bf16.msra.mxu0 %v1391
    %1849 = vmatprep.subr.bf16.mxu0 %v1404
    %1850 = vmatpush1.bf16.msra.mxu0 %v1403
    %1851 = vmatprep.subr.bf16.mxu0 %v1416
    %1852 = vmatpush1.bf16.msra.mxu0 %v1415
    %1853 = vmatprep.subr.bf16.mxu0 %v1428
    %1854 = vmatpush1.bf16.msra.mxu0 %v1427
    %1855 = vmatprep.mubr.bf16.mxu0 %v29
    %1856 = vmatmul.mubr.bf16.gmra.mrb[0].mxu0 %v28
    %v1857 = vpop.f32.mrb[0].mxu0
    %v1858 = vadd.f32 %v326, %v1857
    %v1859 = vpop.f32.mrb[0].mxu0
    %v1860 = vadd.f32 %v330, %v1859
    %v1861 = vpop.f32.mrb[0].mxu0
    %v1862 = vadd.f32 %v326, %v1861
    %v1863 = vpop.f32.mrb[0].mxu0
    %v1864 = vadd.f32 %v330, %v1863
    %1865 = vdwg.mxu0
    %1866 = vmatprep.subr.bf16.mxu0 %v1440
    %1867 = vmatpush1.bf16.msra.mxu0 %v1439
    %1868 = vmatprep.subr.bf16.mxu0 %v1452
    %1869 = vmatpush1.bf16.msra.mxu0 %v1451
    %1870 = vmatprep.subr.bf16.mxu0 %v1464
    %1871 = vmatpush1.bf16.msra.mxu0 %v1463
    %1872 = vmatprep.subr.bf16.mxu0 %v1476
    %1873 = vmatpush1.bf16.msra.mxu0 %v1475
    %1874 = vmatprep.subr.bf16.mxu0 %v1488
    %1875 = vmatpush1.bf16.msra.mxu0 %v1487
    %1876 = vmatprep.subr.bf16.mxu0 %v1500
    %1877 = vmatpush1.bf16.msra.mxu0 %v1499
    %1878 = vmatprep.subr.bf16.mxu0 %v1512
    %1879 = vmatpush1.bf16.msra.mxu0 %v1511
    %1880 = vmatprep.subr.bf16.mxu0 %v1524
    %1881 = vmatpush1.bf16.msra.mxu0 %v1523
    %1882 = vmatprep.subr.bf16.mxu0 0
    %1883 = vmatpush1.bf16.msra.mxu0 0
    %1884 = vmatprep.subr.bf16.mxu0 0
    %1885 = vmatpush1.bf16.msra.mxu0 0
    %1886 = vmatprep.subr.bf16.mxu0 0
    %1887 = vmatpush1.bf16.msra.mxu0 0
    %1888 = vmatprep.subr.bf16.mxu0 0
    %1889 = vmatpush1.bf16.msra.mxu0 0
    %1890 = vmatprep.subr.bf16.mxu0 0
    %1891 = vmatpush1.bf16.msra.mxu0 0
    %1892 = vmatprep.subr.bf16.mxu0 0
    %1893 = vmatpush1.bf16.msra.mxu0 0
    %1894 = vmatprep.subr.bf16.mxu0 0
    %1895 = vmatpush1.bf16.msra.mxu0 0
    %1896 = vmatprep.subr.bf16.mxu0 0
    %1897 = vmatpush1.bf16.msra.mxu0 0
    %1898 = vmatprep.mubr.bf16.mxu0 0
    %1899 = vmatmul.mubr.bf16.gmra.mrb[0].mxu0 %v30
    %v1900 = vpop.f32.mrb[0].mxu0
    %v1901 = vadd.f32 %v1858, %v1900
    %v1902 = vpop.f32.mrb[0].mxu0
    %v1903 = vadd.f32 %v1860, %v1902
    %v1904 = vpop.f32.mrb[0].mxu0
    %v1905 = vadd.f32 %v1862, %v1904
    %v1906 = vpop.f32.mrb[0].mxu0
    %v1907 = vadd.f32 %v1864, %v1906
    %1908 = vdwg.mxu0
    %1909 = vmatprep.subr.bf16.mxu0 %v1250
    %1910 = vmatpush1.bf16.msra.mxu0 %v1249
    %1911 = vmatprep.subr.bf16.mxu0 %v1262
    %1912 = vmatpush1.bf16.msra.mxu0 %v1261
    %1913 = vmatprep.subr.bf16.mxu0 %v1274
    %1914 = vmatpush1.bf16.msra.mxu0 %v1273
    %1915 = vmatprep.subr.bf16.mxu0 %v1286
    %1916 = vmatpush1.bf16.msra.mxu0 %v1285
    %1917 = vmatprep.subr.bf16.mxu0 %v1298
    %1918 = vmatpush1.bf16.msra.mxu0 %v1297
    %1919 = vmatprep.subr.bf16.mxu0 %v1310
    %1920 = vmatpush1.bf16.msra.mxu0 %v1309
    %1921 = vmatprep.subr.bf16.mxu0 %v1322
    %1922 = vmatpush1.bf16.msra.mxu0 %v1321
    %1923 = vmatprep.subr.bf16.mxu0 %v1334
    %1924 = vmatpush1.bf16.msra.mxu0 %v1333
    %1925 = vmatprep.subr.bf16.mxu0 %v1346
    %1926 = vmatpush1.bf16.msra.mxu0 %v1345
    %1927 = vmatprep.subr.bf16.mxu0 %v1358
    %1928 = vmatpush1.bf16.msra.mxu0 %v1357
    %1929 = vmatprep.subr.bf16.mxu0 %v1370
    %1930 = vmatpush1.bf16.msra.mxu0 %v1369
    %1931 = vmatprep.subr.bf16.mxu0 %v1382
    %1932 = vmatpush1.bf16.msra.mxu0 %v1381
    %1933 = vmatprep.subr.bf16.mxu0 %v1394
    %1934 = vmatpush1.bf16.msra.mxu0 %v1393
    %1935 = vmatprep.subr.bf16.mxu0 %v1406
    %1936 = vmatpush1.bf16.msra.mxu0 %v1405
    %1937 = vmatprep.subr.bf16.mxu0 %v1418
    %1938 = vmatpush1.bf16.msra.mxu0 %v1417
    %1939 = vmatprep.subr.bf16.mxu0 %v1430
    %1940 = vmatpush1.bf16.msra.mxu0 %v1429
    %1941 = vmatprep.mubr.bf16.mxu0 %v29
    %1942 = vmatmul.mubr.bf16.gmra.mrb[0].mxu0 %v28
    %v1943 = vpop.f32.mrb[0].mxu0
    %v1944 = vadd.f32 %v334, %v1943
    %v1945 = vpop.f32.mrb[0].mxu0
    %v1946 = vadd.f32 %v338, %v1945
    %v1947 = vpop.f32.mrb[0].mxu0
    %v1948 = vadd.f32 %v334, %v1947
    %v1949 = vpop.f32.mrb[0].mxu0
    %v1950 = vadd.f32 %v338, %v1949
    %1951 = vdwg.mxu0
    %1952 = vmatprep.subr.bf16.mxu0 %v1442
    %1953 = vmatpush1.bf16.msra.mxu0 %v1441
    %1954 = vmatprep.subr.bf16.mxu0 %v1454
    %1955 = vmatpush1.bf16.msra.mxu0 %v1453
    %1956 = vmatprep.subr.bf16.mxu0 %v1466
    %1957 = vmatpush1.bf16.msra.mxu0 %v1465
    %1958 = vmatprep.subr.bf16.mxu0 %v1478
    %1959 = vmatpush1.bf16.msra.mxu0 %v1477
    %1960 = vmatprep.subr.bf16.mxu0 %v1490
    %1961 = vmatpush1.bf16.msra.mxu0 %v1489
    %1962 = vmatprep.subr.bf16.mxu0 %v1502
    %1963 = vmatpush1.bf16.msra.mxu0 %v1501
    %1964 = vmatprep.subr.bf16.mxu0 %v1514
    %1965 = vmatpush1.bf16.msra.mxu0 %v1513
    %1966 = vmatprep.subr.bf16.mxu0 %v1526
    %1967 = vmatpush1.bf16.msra.mxu0 %v1525
    %1968 = vmatprep.subr.bf16.mxu0 0
    %1969 = vmatpush1.bf16.msra.mxu0 0
    %1970 = vmatprep.subr.bf16.mxu0 0
    %1971 = vmatpush1.bf16.msra.mxu0 0
    %1972 = vmatprep.subr.bf16.mxu0 0
    %1973 = vmatpush1.bf16.msra.mxu0 0
    %1974 = vmatprep.subr.bf16.mxu0 0
    %1975 = vmatpush1.bf16.msra.mxu0 0
    %1976 = vmatprep.subr.bf16.mxu0 0
    %1977 = vmatpush1.bf16.msra.mxu0 0
    %1978 = vmatprep.subr.bf16.mxu0 0
    %1979 = vmatpush1.bf16.msra.mxu0 0
    %1980 = vmatprep.subr.bf16.mxu0 0
    %1981 = vmatpush1.bf16.msra.mxu0 0
    %1982 = vmatprep.subr.bf16.mxu0 0
    %1983 = vmatpush1.bf16.msra.mxu0 0
    %1984 = vmatprep.mubr.bf16.mxu0 0
    %1985 = vmatmul.mubr.bf16.gmra.mrb[0].mxu0 %v30
    %v1986 = vpop.f32.mrb[0].mxu0
    %v1987 = vadd.f32 %v1944, %v1986
    %v1988 = vpop.f32.mrb[0].mxu0
    %v1989 = vadd.f32 %v1946, %v1988
    %v1990 = vpop.f32.mrb[0].mxu0
    %v1991 = vadd.f32 %v1948, %v1990
    %v1992 = vpop.f32.mrb[0].mxu0
    %v1993 = vadd.f32 %v1950, %v1992
    %1994 = vdwg.mxu0
    %1995 = vmatprep.subr.bf16.mxu0 %v1252
    %1996 = vmatpush1.bf16.msra.mxu0 %v1251
    %1997 = vmatprep.subr.bf16.mxu0 %v1264
    %1998 = vmatpush1.bf16.msra.mxu0 %v1263
    %1999 = vmatprep.subr.bf16.mxu0 %v1276
    %2000 = vmatpush1.bf16.msra.mxu0 %v1275
    %2001 = vmatprep.subr.bf16.mxu0 %v1288
    %2002 = vmatpush1.bf16.msra.mxu0 %v1287
    %2003 = vmatprep.subr.bf16.mxu0 %v1300
    %2004 = vmatpush1.bf16.msra.mxu0 %v1299
    %2005 = vmatprep.subr.bf16.mxu0 %v1312
    %2006 = vmatpush1.bf16.msra.mxu0 %v1311
    %2007 = vmatprep.subr.bf16.mxu0 %v1324
    %2008 = vmatpush1.bf16.msra.mxu0 %v1323
    %2009 = vmatprep.subr.bf16.mxu0 %v1336
    %2010 = vmatpush1.bf16.msra.mxu0 %v1335
    %2011 = vmatprep.subr.bf16.mxu0 %v1348
    %2012 = vmatpush1.bf16.msra.mxu0 %v1347
    %2013 = vmatprep.subr.bf16.mxu0 %v1360
    %2014 = vmatpush1.bf16.msra.mxu0 %v1359
    %2015 = vmatprep.subr.bf16.mxu0 %v1372
    %2016 = vmatpush1.bf16.msra.mxu0 %v1371
    %2017 = vmatprep.subr.bf16.mxu0 %v1384
    %2018 = vmatpush1.bf16.msra.mxu0 %v1383
    %2019 = vmatprep.subr.bf16.mxu0 %v1396
    %2020 = vmatpush1.bf16.msra.mxu0 %v1395
    %2021 = vmatprep.subr.bf16.mxu0 %v1408
    %2022 = vmatpush1.bf16.msra.mxu0 %v1407
    %2023 = vmatprep.subr.bf16.mxu0 %v1420
    %2024 = vmatpush1.bf16.msra.mxu0 %v1419
    %2025 = vmatprep.subr.bf16.mxu0 %v1432
    %2026 = vmatpush1.bf16.msra.mxu0 %v1431
    %2027 = vmatprep.mubr.bf16.mxu0 %v29
    %2028 = vmatmul.mubr.bf16.gmra.mrb[0].mxu0 %v28
    %v2029 = vpop.f32.mrb[0].mxu0
    %v2030 = vadd.f32 %v342, %v2029
    %v2031 = vpop.f32.mrb[0].mxu0
    %v2032 = vadd.f32 %v346, %v2031
    %v2033 = vpop.f32.mrb[0].mxu0
    %v2034 = vadd.f32 %v342, %v2033
    %v2035 = vpop.f32.mrb[0].mxu0
    %v2036 = vadd.f32 %v346, %v2035
    %2037 = vdwg.mxu0
    %2038 = vmatprep.subr.bf16.mxu0 %v1444
    %2039 = vmatpush1.bf16.msra.mxu0 %v1443
    %2040 = vmatprep.subr.bf16.mxu0 %v1456
    %2041 = vmatpush1.bf16.msra.mxu0 %v1455
    %2042 = vmatprep.subr.bf16.mxu0 %v1468
    %2043 = vmatpush1.bf16.msra.mxu0 %v1467
    %2044 = vmatprep.subr.bf16.mxu0 %v1480
    %2045 = vmatpush1.bf16.msra.mxu0 %v1479
    %2046 = vmatprep.subr.bf16.mxu0 %v1492
    %2047 = vmatpush1.bf16.msra.mxu0 %v1491
    %2048 = vmatprep.subr.bf16.mxu0 %v1504
    %2049 = vmatpush1.bf16.msra.mxu0 %v1503
    %2050 = vmatprep.subr.bf16.mxu0 %v1516
    %2051 = vmatpush1.bf16.msra.mxu0 %v1515
    %2052 = vmatprep.subr.bf16.mxu0 %v1528
    %2053 = vmatpush1.bf16.msra.mxu0 %v1527
    %2054 = vmatprep.subr.bf16.mxu0 0
    %2055 = vmatpush1.bf16.msra.mxu0 0
    %2056 = vmatprep.subr.bf16.mxu0 0
    %2057 = vmatpush1.bf16.msra.mxu0 0
    %2058 = vmatprep.subr.bf16.mxu0 0
    %2059 = vmatpush1.bf16.msra.mxu0 0
    %2060 = vmatprep.subr.bf16.mxu0 0
    %2061 = vmatpush1.bf16.msra.mxu0 0
    %2062 = vmatprep.subr.bf16.mxu0 0
    %2063 = vmatpush1.bf16.msra.mxu0 0
    %2064 = vmatprep.subr.bf16.mxu0 0
    %2065 = vmatpush1.bf16.msra.mxu0 0
    %2066 = vmatprep.subr.bf16.mxu0 0
    %2067 = vmatpush1.bf16.msra.mxu0 0
    %2068 = vmatprep.subr.bf16.mxu0 0
    %2069 = vmatpush1.bf16.msra.mxu0 0
    %2070 = vmatprep.mubr.bf16.mxu0 0
    %2071 = vmatmul.mubr.bf16.gmra.mrb[0].mxu0 %v30
    %v2072 = vpop.f32.mrb[0].mxu0
    %v2073 = vadd.f32 %v2030, %v2072
    %v2074 = vpop.f32.mrb[0].mxu0
    %v2075 = vadd.f32 %v2032, %v2074
    %v2076 = vpop.f32.mrb[0].mxu0
    %v2077 = vadd.f32 %v2034, %v2076
    %v2078 = vpop.f32.mrb[0].mxu0
    %v2079 = vadd.f32 %v2036, %v2078
    %2080 = vdwg.mxu0
    %2081 = vmatprep.subr.bf16.mxu0 %v1254
    %2082 = vmatpush1.bf16.msra.mxu0 %v1253
    %2083 = vmatprep.subr.bf16.mxu0 %v1266
    %2084 = vmatpush1.bf16.msra.mxu0 %v1265
    %2085 = vmatprep.subr.bf16.mxu0 %v1278
    %2086 = vmatpush1.bf16.msra.mxu0 %v1277
    %2087 = vmatprep.subr.bf16.mxu0 %v1290
    %2088 = vmatpush1.bf16.msra.mxu0 %v1289
    %2089 = vmatprep.subr.bf16.mxu0 %v1302
    %2090 = vmatpush1.bf16.msra.mxu0 %v1301
    %2091 = vmatprep.subr.bf16.mxu0 %v1314
    %2092 = vmatpush1.bf16.msra.mxu0 %v1313
    %2093 = vmatprep.subr.bf16.mxu0 %v1326
    %2094 = vmatpush1.bf16.msra.mxu0 %v1325
    %2095 = vmatprep.subr.bf16.mxu0 %v1338
    %2096 = vmatpush1.bf16.msra.mxu0 %v1337
    %2097 = vmatprep.subr.bf16.mxu0 %v1350
    %2098 = vmatpush1.bf16.msra.mxu0 %v1349
    %2099 = vmatprep.subr.bf16.mxu0 %v1362
    %2100 = vmatpush1.bf16.msra.mxu0 %v1361
    %2101 = vmatprep.subr.bf16.mxu0 %v1374
    %2102 = vmatpush1.bf16.msra.mxu0 %v1373
    %2103 = vmatprep.subr.bf16.mxu0 %v1386
    %2104 = vmatpush1.bf16.msra.mxu0 %v1385
    %2105 = vmatprep.subr.bf16.mxu0 %v1398
    %2106 = vmatpush1.bf16.msra.mxu0 %v1397
    %2107 = vmatprep.subr.bf16.mxu0 %v1410
    %2108 = vmatpush1.bf16.msra.mxu0 %v1409
    %2109 = vmatprep.subr.bf16.mxu0 %v1422
    %2110 = vmatpush1.bf16.msra.mxu0 %v1421
    %2111 = vmatprep.subr.bf16.mxu0 %v1434
    %2112 = vmatpush1.bf16.msra.mxu0 %v1433
    %2113 = vmatprep.mubr.bf16.mxu0 %v29
    %2114 = vmatmul.mubr.bf16.gmra.mrb[0].mxu0 %v28
    %v2115 = vpop.f32.mrb[0].mxu0
    %v2116 = vadd.f32 %v350, %v2115
    %v2117 = vpop.f32.mrb[0].mxu0
    %v2118 = vadd.f32 %v354, %v2117
    %v2119 = vpop.f32.mrb[0].mxu0
    %v2120 = vadd.f32 %v350, %v2119
    %v2121 = vpop.f32.mrb[0].mxu0
    %v2122 = vadd.f32 %v354, %v2121
    %2123 = vdwg.mxu0
    %2124 = vmatprep.subr.bf16.mxu0 %v1446
    %2125 = vmatpush1.bf16.msra.mxu0 %v1445
    %2126 = vmatprep.subr.bf16.mxu0 %v1458
    %2127 = vmatpush1.bf16.msra.mxu0 %v1457
    %2128 = vmatprep.subr.bf16.mxu0 %v1470
    %2129 = vmatpush1.bf16.msra.mxu0 %v1469
    %2130 = vmatprep.subr.bf16.mxu0 %v1482
    %2131 = vmatpush1.bf16.msra.mxu0 %v1481
    %2132 = vmatprep.subr.bf16.mxu0 %v1494
    %2133 = vmatpush1.bf16.msra.mxu0 %v1493
    %2134 = vmatprep.subr.bf16.mxu0 %v1506
    %2135 = vmatpush1.bf16.msra.mxu0 %v1505
    %2136 = vmatprep.subr.bf16.mxu0 %v1518
    %2137 = vmatpush1.bf16.msra.mxu0 %v1517
    %2138 = vmatprep.subr.bf16.mxu0 %v1530
    %2139 = vmatpush1.bf16.msra.mxu0 %v1529
    %2140 = vmatprep.subr.bf16.mxu0 0
    %2141 = vmatpush1.bf16.msra.mxu0 0
    %2142 = vmatprep.subr.bf16.mxu0 0
    %2143 = vmatpush1.bf16.msra.mxu0 0
    %2144 = vmatprep.subr.bf16.mxu0 0
    %2145 = vmatpush1.bf16.msra.mxu0 0
    %2146 = vmatprep.subr.bf16.mxu0 0
    %2147 = vmatpush1.bf16.msra.mxu0 0
    %2148 = vmatprep.subr.bf16.mxu0 0
    %2149 = vmatpush1.bf16.msra.mxu0 0
    %2150 = vmatprep.subr.bf16.mxu0 0
    %2151 = vmatpush1.bf16.msra.mxu0 0
    %2152 = vmatprep.subr.bf16.mxu0 0
    %2153 = vmatpush1.bf16.msra.mxu0 0
    %2154 = vmatprep.subr.bf16.mxu0 0
    %2155 = vmatpush1.bf16.msra.mxu0 0
    %2156 = vmatprep.mubr.bf16.mxu0 0
    %2157 = vmatmul.mubr.bf16.gmra.mrb[0].mxu0 %v30
    %v2158 = vpop.f32.mrb[0].mxu0
    %v2159 = vadd.f32 %v2116, %v2158
    %v2160 = vpop.f32.mrb[0].mxu0
    %v2161 = vadd.f32 %v2118, %v2160
    %v2162 = vpop.f32.mrb[0].mxu0
    %v2163 = vadd.f32 %v2120, %v2162
    %v2164 = vpop.f32.mrb[0].mxu0
    %v2165 = vadd.f32 %v2122, %v2164
    %2166 = vdwg.mxu0
    %2167 = vmatprep.subr.bf16.mxu0 %v1256
    %2168 = vmatpush1.bf16.msra.mxu0 %v1255
    %2169 = vmatprep.subr.bf16.mxu0 %v1268
    %2170 = vmatpush1.bf16.msra.mxu0 %v1267
    %2171 = vmatprep.subr.bf16.mxu0 %v1280
    %2172 = vmatpush1.bf16.msra.mxu0 %v1279
    %2173 = vmatprep.subr.bf16.mxu0 %v1292
    %2174 = vmatpush1.bf16.msra.mxu0 %v1291
    %2175 = vmatprep.subr.bf16.mxu0 %v1304
    %2176 = vmatpush1.bf16.msra.mxu0 %v1303
    %2177 = vmatprep.subr.bf16.mxu0 %v1316
    %2178 = vmatpush1.bf16.msra.mxu0 %v1315
    %2179 = vmatprep.subr.bf16.mxu0 %v1328
    %2180 = vmatpush1.bf16.msra.mxu0 %v1327
    %2181 = vmatprep.subr.bf16.mxu0 %v1340
    %2182 = vmatpush1.bf16.msra.mxu0 %v1339
    %2183 = vmatprep.subr.bf16.mxu0 %v1352
    %2184 = vmatpush1.bf16.msra.mxu0 %v1351
    %2185 = vmatprep.subr.bf16.mxu0 %v1364
    %2186 = vmatpush1.bf16.msra.mxu0 %v1363
    %2187 = vmatprep.subr.bf16.mxu0 %v1376
    %2188 = vmatpush1.bf16.msra.mxu0 %v1375
    %2189 = vmatprep.subr.bf16.mxu0 %v1388
    %2190 = vmatpush1.bf16.msra.mxu0 %v1387
    %2191 = vmatprep.subr.bf16.mxu0 %v1400
    %2192 = vmatpush1.bf16.msra.mxu0 %v1399
    %2193 = vmatprep.subr.bf16.mxu0 %v1412
    %2194 = vmatpush1.bf16.msra.mxu0 %v1411
    %2195 = vmatprep.subr.bf16.mxu0 %v1424
    %2196 = vmatpush1.bf16.msra.mxu0 %v1423
    %2197 = vmatprep.subr.bf16.mxu0 %v1436
    %2198 = vmatpush1.bf16.msra.mxu0 %v1435
    %2199 = vmatprep.mubr.bf16.mxu0 %v29
    %2200 = vmatmul.mubr.bf16.gmra.mrb[0].mxu0 %v28
    %v2201 = vpop.f32.mrb[0].mxu0
    %v2202 = vadd.f32 %v358, %v2201
    %v2203 = vpop.f32.mrb[0].mxu0
    %v2204 = vadd.f32 %v362, %v2203
    %v2205 = vpop.f32.mrb[0].mxu0
    %v2206 = vadd.f32 %v358, %v2205
    %v2207 = vpop.f32.mrb[0].mxu0
    %v2208 = vadd.f32 %v362, %v2207
    %2209 = vdwg.mxu0
    %2210 = vmatprep.subr.bf16.mxu0 %v1448
    %2211 = vmatpush1.bf16.msra.mxu0 %v1447
    %2212 = vmatprep.subr.bf16.mxu0 %v1460
    %2213 = vmatpush1.bf16.msra.mxu0 %v1459
    %2214 = vmatprep.subr.bf16.mxu0 %v1472
    %2215 = vmatpush1.bf16.msra.mxu0 %v1471
    %2216 = vmatprep.subr.bf16.mxu0 %v1484
    %2217 = vmatpush1.bf16.msra.mxu0 %v1483
    %2218 = vmatprep.subr.bf16.mxu0 %v1496
    %2219 = vmatpush1.bf16.msra.mxu0 %v1495
    %2220 = vmatprep.subr.bf16.mxu0 %v1508
    %2221 = vmatpush1.bf16.msra.mxu0 %v1507
    %2222 = vmatprep.subr.bf16.mxu0 %v1520
    %2223 = vmatpush1.bf16.msra.mxu0 %v1519
    %2224 = vmatprep.subr.bf16.mxu0 %v1532
    %2225 = vmatpush1.bf16.msra.mxu0 %v1531
    %2226 = vmatprep.subr.bf16.mxu0 0
    %2227 = vmatpush1.bf16.msra.mxu0 0
    %2228 = vmatprep.subr.bf16.mxu0 0
    %2229 = vmatpush1.bf16.msra.mxu0 0
    %2230 = vmatprep.subr.bf16.mxu0 0
    %2231 = vmatpush1.bf16.msra.mxu0 0
    %2232 = vmatprep.subr.bf16.mxu0 0
    %2233 = vmatpush1.bf16.msra.mxu0 0
    %2234 = vmatprep.subr.bf16.mxu0 0
    %2235 = vmatpush1.bf16.msra.mxu0 0
    %2236 = vmatprep.subr.bf16.mxu0 0
    %2237 = vmatpush1.bf16.msra.mxu0 0
    %2238 = vmatprep.subr.bf16.mxu0 0
    %2239 = vmatpush1.bf16.msra.mxu0 0
    %2240 = vmatprep.subr.bf16.mxu0 0
    %2241 = vmatpush1.bf16.msra.mxu0 0
    %2242 = vmatprep.mubr.bf16.mxu0 0
    %2243 = vmatmul.mubr.bf16.gmra.mrb[0].mxu0 %v30
    %v2244 = vpop.f32.mrb[0].mxu0
    %v2245 = vadd.f32 %v2202, %v2244
    %v2246 = vpop.f32.mrb[0].mxu0
    %v2247 = vadd.f32 %v2204, %v2246
    %v2248 = vpop.f32.mrb[0].mxu0
    %v2249 = vadd.f32 %v2206, %v2248
    %v2250 = vpop.f32.mrb[0].mxu0
    %v2251 = vadd.f32 %v2208, %v2250
    %2252 = vdwg.mxu0
    %2253 = vmatprep.subr.bf16.mxu0 %v1258
    %2254 = vmatpush1.bf16.msra.mxu0 %v1257
    %2255 = vmatprep.subr.bf16.mxu0 %v1270
    %2256 = vmatpush1.bf16.msra.mxu0 %v1269
    %2257 = vmatprep.subr.bf16.mxu0 %v1282
    %2258 = vmatpush1.bf16.msra.mxu0 %v1281
    %2259 = vmatprep.subr.bf16.mxu0 %v1294
    %2260 = vmatpush1.bf16.msra.mxu0 %v1293
    %2261 = vmatprep.subr.bf16.mxu0 %v1306
    %2262 = vmatpush1.bf16.msra.mxu0 %v1305
    %2263 = vmatprep.subr.bf16.mxu0 %v1318
    %2264 = vmatpush1.bf16.msra.mxu0 %v1317
    %2265 = vmatprep.subr.bf16.mxu0 %v1330
    %2266 = vmatpush1.bf16.msra.mxu0 %v1329
    %2267 = vmatprep.subr.bf16.mxu0 %v1342
    %2268 = vmatpush1.bf16.msra.mxu0 %v1341
    %2269 = vmatprep.subr.bf16.mxu0 %v1354
    %2270 = vmatpush1.bf16.msra.mxu0 %v1353
    %2271 = vmatprep.subr.bf16.mxu0 %v1366
    %2272 = vmatpush1.bf16.msra.mxu0 %v1365
    %2273 = vmatprep.subr.bf16.mxu0 %v1378
    %2274 = vmatpush1.bf16.msra.mxu0 %v1377
    %2275 = vmatprep.subr.bf16.mxu0 %v1390
    %2276 = vmatpush1.bf16.msra.mxu0 %v1389
    %2277 = vmatprep.subr.bf16.mxu0 %v1402
    %2278 = vmatpush1.bf16.msra.mxu0 %v1401
    %2279 = vmatprep.subr.bf16.mxu0 %v1414
    %2280 = vmatpush1.bf16.msra.mxu0 %v1413
    %2281 = vmatprep.subr.bf16.mxu0 %v1426
    %2282 = vmatpush1.bf16.msra.mxu0 %v1425
    %2283 = vmatprep.subr.bf16.mxu0 %v1438
    %2284 = vmatpush1.bf16.msra.mxu0 %v1437
    %2285 = vmatprep.mubr.bf16.mxu0 %v29
    %2286 = vmatmul.mubr.bf16.gmra.mrb[0].mxu0 %v28
    %v2287 = vpop.f32.mrb[0].mxu0
    %v2288 = vadd.f32 %v366, %v2287
    %v2289 = vpop.f32.mrb[0].mxu0
    %v2290 = vadd.f32 %v370, %v2289
    %v2291 = vpop.f32.mrb[0].mxu0
    %v2292 = vadd.f32 %v366, %v2291
    %v2293 = vpop.f32.mrb[0].mxu0
    %v2294 = vadd.f32 %v370, %v2293
    %2295 = vdwg.mxu0
    %2296 = vmatprep.subr.bf16.mxu0 %v1450
    %2297 = vmatpush1.bf16.msra.mxu0 %v1449
    %2298 = vmatprep.subr.bf16.mxu0 %v1462
    %2299 = vmatpush1.bf16.msra.mxu0 %v1461
    %2300 = vmatprep.subr.bf16.mxu0 %v1474
    %2301 = vmatpush1.bf16.msra.mxu0 %v1473
    %2302 = vmatprep.subr.bf16.mxu0 %v1486
    %2303 = vmatpush1.bf16.msra.mxu0 %v1485
    %2304 = vmatprep.subr.bf16.mxu0 %v1498
    %2305 = vmatpush1.bf16.msra.mxu0 %v1497
    %2306 = vmatprep.subr.bf16.mxu0 %v1510
    %2307 = vmatpush1.bf16.msra.mxu0 %v1509
    %2308 = vmatprep.subr.bf16.mxu0 %v1522
    %2309 = vmatpush1.bf16.msra.mxu0 %v1521
    %2310 = vmatprep.subr.bf16.mxu0 %v1534
    %2311 = vmatpush1.bf16.msra.mxu0 %v1533
    %2312 = vmatprep.subr.bf16.mxu0 0
    %2313 = vmatpush1.bf16.msra.mxu0 0
    %2314 = vmatprep.subr.bf16.mxu0 0
    %2315 = vmatpush1.bf16.msra.mxu0 0
    %2316 = vmatprep.subr.bf16.mxu0 0
    %2317 = vmatpush1.bf16.msra.mxu0 0
    %2318 = vmatprep.subr.bf16.mxu0 0
    %2319 = vmatpush1.bf16.msra.mxu0 0
    %2320 = vmatprep.subr.bf16.mxu0 0
    %2321 = vmatpush1.bf16.msra.mxu0 0
    %2322 = vmatprep.subr.bf16.mxu0 0
    %2323 = vmatpush1.bf16.msra.mxu0 0
    %2324 = vmatprep.subr.bf16.mxu0 0
    %2325 = vmatpush1.bf16.msra.mxu0 0
    %2326 = vmatprep.subr.bf16.mxu0 0
    %2327 = vmatpush1.bf16.msra.mxu0 0
    %2328 = vmatprep.mubr.bf16.mxu0 0
    %2329 = vmatmul.mubr.bf16.gmra.mrb[0].mxu0 %v30
    %v2330 = vpop.f32.mrb[0].mxu0
    %v2331 = vadd.f32 %v2288, %v2330
    %v2332 = vpop.f32.mrb[0].mxu0
    %v2333 = vadd.f32 %v2290, %v2332
    %v2334 = vpop.f32.mrb[0].mxu0
    %v2335 = vadd.f32 %v2292, %v2334
    %v2336 = vpop.f32.mrb[0].mxu0
    %v2337 = vadd.f32 %v2294, %v2336
    %2338 = vdwg.mxu0
    %v2339 = vmax.f32 %v1901, 0.0
    %v2340 = vmax.f32 %v1903, 0.0
    %v2341 = vmax.f32 %v1987, 0.0
    %v2342 = vmax.f32 %v1989, 0.0
    %v2343 = vmax.f32 %v2073, 0.0
    %v2344 = vmax.f32 %v2075, 0.0
    %v2345 = vmax.f32 %v2159, 0.0
    %v2346 = vmax.f32 %v2161, 0.0
    %v2347 = vmax.f32 %v2245, 0.0
    %v2348 = vmax.f32 %v2247, 0.0
    %v2349 = vmax.f32 %v2331, 0.0
    %v2350 = vmax.f32 %v2333, 0.0
    %v2351 = vmax.f32 %v1905, 0.0
    %v2352 = vmax.f32 %v1907, 0.0
    %v2353 = vmax.f32 %v1991, 0.0
    %v2354 = vmax.f32 %v1993, 0.0
    %v2355 = vmax.f32 %v2077, 0.0
    %v2356 = vmax.f32 %v2079, 0.0
    %v2357 = vmax.f32 %v2163, 0.0
    %v2358 = vmax.f32 %v2165, 0.0
    %v2359 = vmax.f32 %v2249, 0.0
    %v2360 = vmax.f32 %v2251, 0.0
    %v2361 = vmax.f32 %v2335, 0.0
    %v2362 = vmax.f32 %v2337, 0.0
    %v2363 = vpack.c.bf16 %v2351, %v2339
    %v2364 = vpack.c.bf16 %v2352, %v2340
    %v2365 = vpack.c.bf16 %v2353, %v2341
    %v2366 = vpack.c.bf16 %v2354, %v2342
    %v2367 = vpack.c.bf16 %v2355, %v2343
    %v2368 = vpack.c.bf16 %v2356, %v2344
    %v2369 = vpack.c.bf16 %v2357, %v2345
    %v2370 = vpack.c.bf16 %v2358, %v2346
    %v2371 = vpack.c.bf16 %v2359, %v2347
    %v2372 = vpack.c.bf16 %v2360, %v2348
    %v2373 = vpack.c.bf16 %v2361, %v2349
    %v2374 = vpack.c.bf16 %v2362, %v2350
    %v2375 = vld [vmem:[%s3] sm:$0xff]
    %v2376 = vld [vmem:[%s3 + $0x8] sm:$0xf]
    %v2377 = vld [vmem:[%s3 + $0xc] sm:$0xff]
    %v2378 = vld [vmem:[%s3 + $0x14] sm:$0xf]
    %v2379 = vld [vmem:[%s3 + $0x18] sm:$0xff]
    %v2380 = vld [vmem:[%s3 + $0x20] sm:$0xf]
    %v2381 = vld [vmem:[%s3 + $0x24] sm:$0xff]
    %v2382 = vld [vmem:[%s3 + $0x2c] sm:$0xf]
    %v2383 = vld [vmem:[%s3 + $0x30] sm:$0xff]
    %v2384 = vld [vmem:[%s3 + $0x38] sm:$0xf]
    %v2385 = vld [vmem:[%s3 + $0x3c] sm:$0xff]
    %v2386 = vld [vmem:[%s3 + $0x44] sm:$0xf]
    %v2387 = vld [vmem:[%s3 + $0x48] sm:$0xff]
    %v2388 = vld [vmem:[%s3 + $0x50] sm:$0xf]
    %v2389 = vld [vmem:[%s3 + $0x54] sm:$0xff]
    %v2390 = vld [vmem:[%s3 + $0x5c] sm:$0xf]
    %v2391 = vld [vmem:[%s3 + $0x60] sm:$0xff]
    %v2392 = vld [vmem:[%s3 + $0x68] sm:$0xf]
    %v2393 = vld [vmem:[%s3 + $0x6c] sm:$0xff]
    %v2394 = vld [vmem:[%s3 + $0x74] sm:$0xf]
    %v2395 = vld [vmem:[%s3 + $0x78] sm:$0xff]
    %v2396 = vld [vmem:[%s3 + $0x80] sm:$0xf]
    %v2397 = vld [vmem:[%s3 + $0x84] sm:$0xff]
    %v2398 = vld [vmem:[%s3 + $0x8c] sm:$0xf]
    %v2399 = vld [vmem:[%s3 + $0x90] sm:$0xff]
    %v2400 = vld [vmem:[%s3 + $0x98] sm:$0xf]
    %v2401 = vld [vmem:[%s3 + $0x9c] sm:$0xff]
    %v2402 = vld [vmem:[%s3 + $0xa4] sm:$0xf]
    %v2403 = vld [vmem:[%s3 + $0xa8] sm:$0xff]
    %v2404 = vld [vmem:[%s3 + $0xb0] sm:$0xf]
    %v2405 = vld [vmem:[%s3 + $0xb4] sm:$0xff]
    %v2406 = vld [vmem:[%s3 + $0xbc] sm:$0xf]
    %v2407 = vld [vmem:[%s3 + $0xc0] sm:$0xff]
    %v2408 = vld [vmem:[%s3 + $0xc8] sm:$0xf]
    %v2409 = vld [vmem:[%s3 + $0xcc] sm:$0xff]
    %v2410 = vld [vmem:[%s3 + $0xd4] sm:$0xf]
    %v2411 = vld [vmem:[%s3 + $0xd8] sm:$0xff]
    %v2412 = vld [vmem:[%s3 + $0xe0] sm:$0xf]
    %v2413 = vld [vmem:[%s3 + $0xe4] sm:$0xff]
    %v2414 = vld [vmem:[%s3 + $0xec] sm:$0xf]
    %v2415 = vld [vmem:[%s3 + $0xf0] sm:$0xff]
    %v2416 = vld [vmem:[%s3 + $0xf8] sm:$0xf]
    %v2417 = vld [vmem:[%s3 + $0xfc] sm:$0xff]
    %v2418 = vld [vmem:[%s3 + $0x104] sm:$0xf]
    %v2419 = vld [vmem:[%s3 + $0x108] sm:$0xff]
    %v2420 = vld [vmem:[%s3 + $0x110] sm:$0xf]
    %v2421 = vld [vmem:[%s3 + $0x114] sm:$0xff]
    %v2422 = vld [vmem:[%s3 + $0x11c] sm:$0xf]
    %v2423 = vld [vmem:[%s3 + $0x120] sm:$0xff]
    %v2424 = vld [vmem:[%s3 + $0x128] sm:$0xf]
    %v2425 = vld [vmem:[%s3 + $0x12c] sm:$0xff]
    %v2426 = vld [vmem:[%s3 + $0x134] sm:$0xf]
    %v2427 = vld [vmem:[%s3 + $0x138] sm:$0xff]
    %v2428 = vld [vmem:[%s3 + $0x140] sm:$0xf]
    %v2429 = vld [vmem:[%s3 + $0x144] sm:$0xff]
    %v2430 = vld [vmem:[%s3 + $0x14c] sm:$0xf]
    %v2431 = vld [vmem:[%s3 + $0x150] sm:$0xff]
    %v2432 = vld [vmem:[%s3 + $0x158] sm:$0xf]
    %v2433 = vld [vmem:[%s3 + $0x15c] sm:$0xff]
    %v2434 = vld [vmem:[%s3 + $0x164] sm:$0xf]
    %v2435 = vld [vmem:[%s3 + $0x168] sm:$0xff]
    %v2436 = vld [vmem:[%s3 + $0x170] sm:$0xf]
    %v2437 = vld [vmem:[%s3 + $0x174] sm:$0xff]
    %v2438 = vld [vmem:[%s3 + $0x17c] sm:$0xf]
    %v2439 = vld [vmem:[%s3 + $0x180] sm:$0xff]
    %v2440 = vld [vmem:[%s3 + $0x188] sm:$0xf]
    %v2441 = vld [vmem:[%s3 + $0x18c] sm:$0xff]
    %v2442 = vld [vmem:[%s3 + $0x194] sm:$0xf]
    %v2443 = vld [vmem:[%s3 + $0x198] sm:$0xff]
    %v2444 = vld [vmem:[%s3 + $0x1a0] sm:$0xf]
    %v2445 = vld [vmem:[%s3 + $0x1a4] sm:$0xff]
    %v2446 = vld [vmem:[%s3 + $0x1ac] sm:$0xf]
    %v2447 = vld [vmem:[%s3 + $0x1b0] sm:$0xff]
    %v2448 = vld [vmem:[%s3 + $0x1b8] sm:$0xf]
    %v2449 = vld [vmem:[%s3 + $0x1bc] sm:$0xff]
    %v2450 = vld [vmem:[%s3 + $0x1c4] sm:$0xf]
    %v2451 = vld [vmem:[%s3 + $0x1c8] sm:$0xff]
    %v2452 = vld [vmem:[%s3 + $0x1d0] sm:$0xf]
    %v2453 = vld [vmem:[%s3 + $0x1d4] sm:$0xff]
    %v2454 = vld [vmem:[%s3 + $0x1dc] sm:$0xf]
    %v2455 = vld [vmem:[%s3 + $0x1e0] sm:$0xff]
    %v2456 = vld [vmem:[%s3 + $0x1e8] sm:$0xf]
    %v2457 = vld [vmem:[%s3 + $0x1ec] sm:$0xff]
    %v2458 = vld [vmem:[%s3 + $0x1f4] sm:$0xf]
    %v2459 = vld [vmem:[%s3 + $0x1f8] sm:$0xff]
    %v2460 = vld [vmem:[%s3 + $0x200] sm:$0xf]
    %v2461 = vld [vmem:[%s3 + $0x204] sm:$0xff]
    %v2462 = vld [vmem:[%s3 + $0x20c] sm:$0xf]
    %v2463 = vld [vmem:[%s3 + $0x210] sm:$0xff]
    %v2464 = vld [vmem:[%s3 + $0x218] sm:$0xf]
    %v2465 = vld [vmem:[%s3 + $0x21c] sm:$0xff]
    %v2466 = vld [vmem:[%s3 + $0x224] sm:$0xf]
    %v2467 = vld [vmem:[%s3 + $0x228] sm:$0xff]
    %v2468 = vld [vmem:[%s3 + $0x230] sm:$0xf]
    %v2469 = vld [vmem:[%s3 + $0x234] sm:$0xff]
    %v2470 = vld [vmem:[%s3 + $0x23c] sm:$0xf]
    %v2471 = vld [vmem:[%s3 + $0x240] sm:$0xff]
    %v2472 = vld [vmem:[%s3 + $0x248] sm:$0xf]
    %v2473 = vld [vmem:[%s3 + $0x24c] sm:$0xff]
    %v2474 = vld [vmem:[%s3 + $0x254] sm:$0xf]
    %v2475 = vld [vmem:[%s3 + $0x258] sm:$0xff]
    %v2476 = vld [vmem:[%s3 + $0x260] sm:$0xf]
    %v2477 = vld [vmem:[%s3 + $0x264] sm:$0xff]
    %v2478 = vld [vmem:[%s3 + $0x26c] sm:$0xf]
    %v2479 = vld [vmem:[%s3 + $0x270] sm:$0xff]
    %v2480 = vld [vmem:[%s3 + $0x278] sm:$0xf]
    %v2481 = vld [vmem:[%s3 + $0x27c] sm:$0xff]
    %v2482 = vld [vmem:[%s3 + $0x284] sm:$0xf]
    %v2483 = vld [vmem:[%s3 + $0x288] sm:$0xff]
    %v2484 = vld [vmem:[%s3 + $0x290] sm:$0xf]
    %v2485 = vld [vmem:[%s3 + $0x294] sm:$0xff]
    %v2486 = vld [vmem:[%s3 + $0x29c] sm:$0xf]
    %v2487 = vld [vmem:[%s3 + $0x2a0] sm:$0xff]
    %v2488 = vld [vmem:[%s3 + $0x2a8] sm:$0xf]
    %v2489 = vld [vmem:[%s3 + $0x2ac] sm:$0xff]
    %v2490 = vld [vmem:[%s3 + $0x2b4] sm:$0xf]
    %v2491 = vld [vmem:[%s3 + $0x2b8] sm:$0xff]
    %v2492 = vld [vmem:[%s3 + $0x2c0] sm:$0xf]
    %v2493 = vld [vmem:[%s3 + $0x2c4] sm:$0xff]
    %v2494 = vld [vmem:[%s3 + $0x2cc] sm:$0xf]
    %v2495 = vld [vmem:[%s3 + $0x2d0] sm:$0xff]
    %v2496 = vld [vmem:[%s3 + $0x2d8] sm:$0xf]
    %v2497 = vld [vmem:[%s3 + $0x2dc] sm:$0xff]
    %v2498 = vld [vmem:[%s3 + $0x2e4] sm:$0xf]
    %v2499 = vld [vmem:[%s3 + $0x2e8] sm:$0xff]
    %v2500 = vld [vmem:[%s3 + $0x2f0] sm:$0xf]
    %v2501 = vld [vmem:[%s3 + $0x2f4] sm:$0xff]
    %v2502 = vld [vmem:[%s3 + $0x2fc] sm:$0xf]
    %v2503 = vld [vmem:[%s3 + $0x300] sm:$0xff]
    %v2504 = vld [vmem:[%s3 + $0x308] sm:$0xf]
    %v2505 = vld [vmem:[%s3 + $0x30c] sm:$0xff]
    %v2506 = vld [vmem:[%s3 + $0x314] sm:$0xf]
    %v2507 = vld [vmem:[%s3 + $0x318] sm:$0xff]
    %v2508 = vld [vmem:[%s3 + $0x320] sm:$0xf]
    %v2509 = vld [vmem:[%s3 + $0x324] sm:$0xff]
    %v2510 = vld [vmem:[%s3 + $0x32c] sm:$0xf]
    %v2511 = vld [vmem:[%s3 + $0x330] sm:$0xff]
    %v2512 = vld [vmem:[%s3 + $0x338] sm:$0xf]
    %v2513 = vld [vmem:[%s3 + $0x33c] sm:$0xff]
    %v2514 = vld [vmem:[%s3 + $0x344] sm:$0xf]
    %v2515 = vld [vmem:[%s3 + $0x348] sm:$0xff]
    %v2516 = vld [vmem:[%s3 + $0x350] sm:$0xf]
    %v2517 = vld [vmem:[%s3 + $0x354] sm:$0xff]
    %v2518 = vld [vmem:[%s3 + $0x35c] sm:$0xf]
    %v2519 = vld [vmem:[%s3 + $0x360] sm:$0xff]
    %v2520 = vld [vmem:[%s3 + $0x368] sm:$0xf]
    %v2521 = vld [vmem:[%s3 + $0x36c] sm:$0xff]
    %v2522 = vld [vmem:[%s3 + $0x374] sm:$0xf]
    %v2523 = vld [vmem:[%s3 + $0x378] sm:$0xff]
    %v2524 = vld [vmem:[%s3 + $0x380] sm:$0xf]
    %v2525 = vld [vmem:[%s3 + $0x384] sm:$0xff]
    %v2526 = vld [vmem:[%s3 + $0x38c] sm:$0xf]
    %v2527 = vld [vmem:[%s3 + $0x390] sm:$0xff]
    %v2528 = vld [vmem:[%s3 + $0x398] sm:$0xf]
    %v2529 = vld [vmem:[%s3 + $0x39c] sm:$0xff]
    %v2530 = vld [vmem:[%s3 + $0x3a4] sm:$0xf]
    %v2531 = vld [vmem:[%s3 + $0x3a8] sm:$0xff]
    %v2532 = vld [vmem:[%s3 + $0x3b0] sm:$0xf]
    %v2533 = vld [vmem:[%s3 + $0x3b4] sm:$0xff]
    %v2534 = vld [vmem:[%s3 + $0x3bc] sm:$0xf]
    %v2535 = vld [vmem:[%s3 + $0x3c0] sm:$0xff]
    %v2536 = vld [vmem:[%s3 + $0x3c8] sm:$0xf]
    %v2537 = vld [vmem:[%s3 + $0x3cc] sm:$0xff]
    %v2538 = vld [vmem:[%s3 + $0x3d4] sm:$0xf]
    %v2539 = vld [vmem:[%s3 + $0x3d8] sm:$0xff]
    %v2540 = vld [vmem:[%s3 + $0x3e0] sm:$0xf]
    %v2541 = vld [vmem:[%s3 + $0x3e4] sm:$0xff]
    %v2542 = vld [vmem:[%s3 + $0x3ec] sm:$0xf]
    %v2543 = vld [vmem:[%s3 + $0x3f0] sm:$0xff]
    %v2544 = vld [vmem:[%s3 + $0x3f8] sm:$0xf]
    %v2545 = vld [vmem:[%s3 + $0x3fc] sm:$0xff]
    %v2546 = vld [vmem:[%s3 + $0x404] sm:$0xf]
    %v2547 = vld [vmem:[%s3 + $0x408] sm:$0xff]
    %v2548 = vld [vmem:[%s3 + $0x410] sm:$0xf]
    %v2549 = vld [vmem:[%s3 + $0x414] sm:$0xff]
    %v2550 = vld [vmem:[%s3 + $0x41c] sm:$0xf]
    %v2551 = vld [vmem:[%s3 + $0x420] sm:$0xff]
    %v2552 = vld [vmem:[%s3 + $0x428] sm:$0xf]
    %v2553 = vld [vmem:[%s3 + $0x42c] sm:$0xff]
    %v2554 = vld [vmem:[%s3 + $0x434] sm:$0xf]
    %v2555 = vld [vmem:[%s3 + $0x438] sm:$0xff]
    %v2556 = vld [vmem:[%s3 + $0x440] sm:$0xf]
    %v2557 = vld [vmem:[%s3 + $0x444] sm:$0xff]
    %v2558 = vld [vmem:[%s3 + $0x44c] sm:$0xf]
    %v2559 = vld [vmem:[%s3 + $0x450] sm:$0xff]
    %v2560 = vld [vmem:[%s3 + $0x458] sm:$0xf]
    %v2561 = vld [vmem:[%s3 + $0x45c] sm:$0xff]
    %v2562 = vld [vmem:[%s3 + $0x464] sm:$0xf]
    %v2563 = vld [vmem:[%s3 + $0x468] sm:$0xff]
    %v2564 = vld [vmem:[%s3 + $0x470] sm:$0xf]
    %v2565 = vld [vmem:[%s3 + $0x474] sm:$0xff]
    %v2566 = vld [vmem:[%s3 + $0x47c] sm:$0xf]
    %v2567 = vld [vmem:[%s3 + $0x480] sm:$0xff]
    %v2568 = vld [vmem:[%s3 + $0x488] sm:$0xf]
    %v2569 = vld [vmem:[%s3 + $0x48c] sm:$0xff]
    %v2570 = vld [vmem:[%s3 + $0x494] sm:$0xf]
    %v2571 = vld [vmem:[%s3 + $0x498] sm:$0xff]
    %v2572 = vld [vmem:[%s3 + $0x4a0] sm:$0xf]
    %v2573 = vld [vmem:[%s3 + $0x4a4] sm:$0xff]
    %v2574 = vld [vmem:[%s3 + $0x4ac] sm:$0xf]
    %v2575 = vld [vmem:[%s3 + $0x4b0] sm:$0xff]
    %v2576 = vld [vmem:[%s3 + $0x4b8] sm:$0xf]
    %v2577 = vld [vmem:[%s3 + $0x4bc] sm:$0xff]
    %v2578 = vld [vmem:[%s3 + $0x4c4] sm:$0xf]
    %v2579 = vld [vmem:[%s3 + $0x4c8] sm:$0xff]
    %v2580 = vld [vmem:[%s3 + $0x4d0] sm:$0xf]
    %v2581 = vld [vmem:[%s3 + $0x4d4] sm:$0xff]
    %v2582 = vld [vmem:[%s3 + $0x4dc] sm:$0xf]
    %v2583 = vld [vmem:[%s3 + $0x4e0] sm:$0xff]
    %v2584 = vld [vmem:[%s3 + $0x4e8] sm:$0xf]
    %v2585 = vld [vmem:[%s3 + $0x4ec] sm:$0xff]
    %v2586 = vld [vmem:[%s3 + $0x4f4] sm:$0xf]
    %v2587 = vld [vmem:[%s3 + $0x4f8] sm:$0xff]
    %v2588 = vld [vmem:[%s3 + $0x500] sm:$0xf]
    %v2589 = vld [vmem:[%s3 + $0x504] sm:$0xff]
    %v2590 = vld [vmem:[%s3 + $0x50c] sm:$0xf]
    %v2591 = vld [vmem:[%s3 + $0x510] sm:$0xff]
    %v2592 = vld [vmem:[%s3 + $0x518] sm:$0xf]
    %v2593 = vld [vmem:[%s3 + $0x51c] sm:$0xff]
    %v2594 = vld [vmem:[%s3 + $0x524] sm:$0xf]
    %v2595 = vld [vmem:[%s3 + $0x528] sm:$0xff]
    %v2596 = vld [vmem:[%s3 + $0x530] sm:$0xf]
    %v2597 = vld [vmem:[%s3 + $0x534] sm:$0xff]
    %v2598 = vld [vmem:[%s3 + $0x53c] sm:$0xf]
    %v2599 = vld [vmem:[%s3 + $0x540] sm:$0xff]
    %v2600 = vld [vmem:[%s3 + $0x548] sm:$0xf]
    %v2601 = vld [vmem:[%s3 + $0x54c] sm:$0xff]
    %v2602 = vld [vmem:[%s3 + $0x554] sm:$0xf]
    %v2603 = vld [vmem:[%s3 + $0x558] sm:$0xff]
    %v2604 = vld [vmem:[%s3 + $0x560] sm:$0xf]
    %v2605 = vld [vmem:[%s3 + $0x564] sm:$0xff]
    %v2606 = vld [vmem:[%s3 + $0x56c] sm:$0xf]
    %v2607 = vld [vmem:[%s3 + $0x570] sm:$0xff]
    %v2608 = vld [vmem:[%s3 + $0x578] sm:$0xf]
    %v2609 = vld [vmem:[%s3 + $0x57c] sm:$0xff]
    %v2610 = vld [vmem:[%s3 + $0x584] sm:$0xf]
    %v2611 = vld [vmem:[%s3 + $0x588] sm:$0xff]
    %v2612 = vld [vmem:[%s3 + $0x590] sm:$0xf]
    %v2613 = vld [vmem:[%s3 + $0x594] sm:$0xff]
    %v2614 = vld [vmem:[%s3 + $0x59c] sm:$0xf]
    %v2615 = vld [vmem:[%s3 + $0x5a0] sm:$0xff]
    %v2616 = vld [vmem:[%s3 + $0x5a8] sm:$0xf]
    %v2617 = vld [vmem:[%s3 + $0x5ac] sm:$0xff]
    %v2618 = vld [vmem:[%s3 + $0x5b4] sm:$0xf]
    %v2619 = vld [vmem:[%s3 + $0x5b8] sm:$0xff]
    %v2620 = vld [vmem:[%s3 + $0x5c0] sm:$0xf]
    %v2621 = vld [vmem:[%s3 + $0x5c4] sm:$0xff]
    %v2622 = vld [vmem:[%s3 + $0x5cc] sm:$0xf]
    %v2623 = vld [vmem:[%s3 + $0x5d0] sm:$0xff]
    %v2624 = vld [vmem:[%s3 + $0x5d8] sm:$0xf]
    %v2625 = vld [vmem:[%s3 + $0x5dc] sm:$0xff]
    %v2626 = vld [vmem:[%s3 + $0x5e4] sm:$0xf]
    %v2627 = vld [vmem:[%s3 + $0x5e8] sm:$0xff]
    %v2628 = vld [vmem:[%s3 + $0x5f0] sm:$0xf]
    %v2629 = vld [vmem:[%s3 + $0x5f4] sm:$0xff]
    %v2630 = vld [vmem:[%s3 + $0x5fc] sm:$0xf]
    %v2631 = vld [vmem:[%s3 + $0x600] sm:$0xff]
    %v2632 = vld [vmem:[%s3 + $0x608] sm:$0xf]
    %v2633 = vld [vmem:[%s3 + $0x60c] sm:$0xff]
    %v2634 = vld [vmem:[%s3 + $0x614] sm:$0xf]
    %v2635 = vld [vmem:[%s3 + $0x618] sm:$0xff]
    %v2636 = vld [vmem:[%s3 + $0x620] sm:$0xf]
    %v2637 = vld [vmem:[%s3 + $0x624] sm:$0xff]
    %v2638 = vld [vmem:[%s3 + $0x62c] sm:$0xf]
    %v2639 = vld [vmem:[%s3 + $0x630] sm:$0xff]
    %v2640 = vld [vmem:[%s3 + $0x638] sm:$0xf]
    %v2641 = vld [vmem:[%s3 + $0x63c] sm:$0xff]
    %v2642 = vld [vmem:[%s3 + $0x644] sm:$0xf]
    %v2643 = vld [vmem:[%s3 + $0x648] sm:$0xff]
    %v2644 = vld [vmem:[%s3 + $0x650] sm:$0xf]
    %v2645 = vld [vmem:[%s3 + $0x654] sm:$0xff]
    %v2646 = vld [vmem:[%s3 + $0x65c] sm:$0xf]
    %v2647 = vld [vmem:[%s3 + $0x660] sm:$0xff]
    %v2648 = vld [vmem:[%s3 + $0x668] sm:$0xf]
    %v2649 = vld [vmem:[%s3 + $0x66c] sm:$0xff]
    %v2650 = vld [vmem:[%s3 + $0x674] sm:$0xf]
    %v2651 = vld [vmem:[%s3 + $0x678] sm:$0xff]
    %v2652 = vld [vmem:[%s3 + $0x680] sm:$0xf]
    %v2653 = vld [vmem:[%s3 + $0x684] sm:$0xff]
    %v2654 = vld [vmem:[%s3 + $0x68c] sm:$0xf]
    %v2655 = vld [vmem:[%s3 + $0x690] sm:$0xff]
    %v2656 = vld [vmem:[%s3 + $0x698] sm:$0xf]
    %v2657 = vld [vmem:[%s3 + $0x69c] sm:$0xff]
    %v2658 = vld [vmem:[%s3 + $0x6a4] sm:$0xf]
    %v2659 = vld [vmem:[%s3 + $0x6a8] sm:$0xff]
    %v2660 = vld [vmem:[%s3 + $0x6b0] sm:$0xf]
    %v2661 = vld [vmem:[%s3 + $0x6b4] sm:$0xff]
    %v2662 = vld [vmem:[%s3 + $0x6bc] sm:$0xf]
    %v2663 = vld [vmem:[%s3 + $0x6c0] sm:$0xff]
    %v2664 = vld [vmem:[%s3 + $0x6c8] sm:$0xf]
    %v2665 = vld [vmem:[%s3 + $0x6cc] sm:$0xff]
    %v2666 = vld [vmem:[%s3 + $0x6d4] sm:$0xf]
    %v2667 = vld [vmem:[%s3 + $0x6d8] sm:$0xff]
    %v2668 = vld [vmem:[%s3 + $0x6e0] sm:$0xf]
    %v2669 = vld [vmem:[%s3 + $0x6e4] sm:$0xff]
    %v2670 = vld [vmem:[%s3 + $0x6ec] sm:$0xf]
    %v2671 = vld [vmem:[%s3 + $0x6f0] sm:$0xff]
    %v2672 = vld [vmem:[%s3 + $0x6f8] sm:$0xf]
    %v2673 = vld [vmem:[%s3 + $0x6fc] sm:$0xff]
    %v2674 = vld [vmem:[%s3 + $0x704] sm:$0xf]
    %v2675 = vld [vmem:[%s3 + $0x708] sm:$0xff]
    %v2676 = vld [vmem:[%s3 + $0x710] sm:$0xf]
    %v2677 = vld [vmem:[%s3 + $0x714] sm:$0xff]
    %v2678 = vld [vmem:[%s3 + $0x71c] sm:$0xf]
    %v2679 = vld [vmem:[%s3 + $0x720] sm:$0xff]
    %v2680 = vld [vmem:[%s3 + $0x728] sm:$0xf]
    %v2681 = vld [vmem:[%s3 + $0x72c] sm:$0xff]
    %v2682 = vld [vmem:[%s3 + $0x734] sm:$0xf]
    %v2683 = vld [vmem:[%s3 + $0x738] sm:$0xff]
    %v2684 = vld [vmem:[%s3 + $0x740] sm:$0xf]
    %v2685 = vld [vmem:[%s3 + $0x744] sm:$0xff]
    %v2686 = vld [vmem:[%s3 + $0x74c] sm:$0xf]
    %v2687 = vld [vmem:[%s3 + $0x750] sm:$0xff]
    %v2688 = vld [vmem:[%s3 + $0x758] sm:$0xf]
    %v2689 = vld [vmem:[%s3 + $0x75c] sm:$0xff]
    %v2690 = vld [vmem:[%s3 + $0x764] sm:$0xf]
    %v2691 = vld [vmem:[%s3 + $0x768] sm:$0xff]
    %v2692 = vld [vmem:[%s3 + $0x770] sm:$0xf]
    %v2693 = vld [vmem:[%s3 + $0x774] sm:$0xff]
    %v2694 = vld [vmem:[%s3 + $0x77c] sm:$0xf]
    %v2695 = vld [vmem:[%s3 + $0x780] sm:$0xff]
    %v2696 = vld [vmem:[%s3 + $0x788] sm:$0xf]
    %v2697 = vld [vmem:[%s3 + $0x78c] sm:$0xff]
    %v2698 = vld [vmem:[%s3 + $0x794] sm:$0xf]
    %v2699 = vld [vmem:[%s3 + $0x798] sm:$0xff]
    %v2700 = vld [vmem:[%s3 + $0x7a0] sm:$0xf]
    %v2701 = vld [vmem:[%s3 + $0x7a4] sm:$0xff]
    %v2702 = vld [vmem:[%s3 + $0x7ac] sm:$0xf]
    %v2703 = vld [vmem:[%s3 + $0x7b0] sm:$0xff]
    %v2704 = vld [vmem:[%s3 + $0x7b8] sm:$0xf]
    %v2705 = vld [vmem:[%s3 + $0x7bc] sm:$0xff]
    %v2706 = vld [vmem:[%s3 + $0x7c4] sm:$0xf]
    %v2707 = vld [vmem:[%s3 + $0x7c8] sm:$0xff]
    %v2708 = vld [vmem:[%s3 + $0x7d0] sm:$0xf]
    %v2709 = vld [vmem:[%s3 + $0x7d4] sm:$0xff]
    %v2710 = vld [vmem:[%s3 + $0x7dc] sm:$0xf]
    %v2711 = vld [vmem:[%s3 + $0x7e0] sm:$0xff]
    %v2712 = vld [vmem:[%s3 + $0x7e8] sm:$0xf]
    %v2713 = vld [vmem:[%s3 + $0x7ec] sm:$0xff]
    %v2714 = vld [vmem:[%s3 + $0x7f4] sm:$0xf]
    %v2715 = vld [vmem:[%s3 + $0x7f8] sm:$0xff]
    %v2716 = vld [vmem:[%s3 + $0x800] sm:$0xf]
    %v2717 = vld [vmem:[%s3 + $0x804] sm:$0xff]
    %v2718 = vld [vmem:[%s3 + $0x80c] sm:$0xf]
    %v2719 = vld [vmem:[%s3 + $0x810] sm:$0xff]
    %v2720 = vld [vmem:[%s3 + $0x818] sm:$0xf]
    %v2721 = vld [vmem:[%s3 + $0x81c] sm:$0xff]
    %v2722 = vld [vmem:[%s3 + $0x824] sm:$0xf]
    %v2723 = vld [vmem:[%s3 + $0x828] sm:$0xff]
    %v2724 = vld [vmem:[%s3 + $0x830] sm:$0xf]
    %v2725 = vld [vmem:[%s3 + $0x834] sm:$0xff]
    %v2726 = vld [vmem:[%s3 + $0x83c] sm:$0xf]
    %v2727 = vld [vmem:[%s3 + $0x840] sm:$0xff]
    %v2728 = vld [vmem:[%s3 + $0x848] sm:$0xf]
    %v2729 = vld [vmem:[%s3 + $0x84c] sm:$0xff]
    %v2730 = vld [vmem:[%s3 + $0x854] sm:$0xf]
    %v2731 = vld [vmem:[%s3 + $0x858] sm:$0xff]
    %v2732 = vld [vmem:[%s3 + $0x860] sm:$0xf]
    %v2733 = vld [vmem:[%s3 + $0x864] sm:$0xff]
    %v2734 = vld [vmem:[%s3 + $0x86c] sm:$0xf]
    %v2735 = vld [vmem:[%s3 + $0x870] sm:$0xff]
    %v2736 = vld [vmem:[%s3 + $0x878] sm:$0xf]
    %v2737 = vld [vmem:[%s3 + $0x87c] sm:$0xff]
    %v2738 = vld [vmem:[%s3 + $0x884] sm:$0xf]
    %v2739 = vld [vmem:[%s3 + $0x888] sm:$0xff]
    %v2740 = vld [vmem:[%s3 + $0x890] sm:$0xf]
    %v2741 = vld [vmem:[%s3 + $0x894] sm:$0xff]
    %v2742 = vld [vmem:[%s3 + $0x89c] sm:$0xf]
    %v2743 = vld [vmem:[%s3 + $0x8a0] sm:$0xff]
    %v2744 = vld [vmem:[%s3 + $0x8a8] sm:$0xf]
    %v2745 = vld [vmem:[%s3 + $0x8ac] sm:$0xff]
    %v2746 = vld [vmem:[%s3 + $0x8b4] sm:$0xf]
    %v2747 = vld [vmem:[%s3 + $0x8b8] sm:$0xff]
    %v2748 = vld [vmem:[%s3 + $0x8c0] sm:$0xf]
    %v2749 = vld [vmem:[%s3 + $0x8c4] sm:$0xff]
    %v2750 = vld [vmem:[%s3 + $0x8cc] sm:$0xf]
    %v2751 = vld [vmem:[%s3 + $0x8d0] sm:$0xff]
    %v2752 = vld [vmem:[%s3 + $0x8d8] sm:$0xf]
    %v2753 = vld [vmem:[%s3 + $0x8dc] sm:$0xff]
    %v2754 = vld [vmem:[%s3 + $0x8e4] sm:$0xf]
    %v2755 = vld [vmem:[%s3 + $0x8e8] sm:$0xff]
    %v2756 = vld [vmem:[%s3 + $0x8f0] sm:$0xf]
    %v2757 = vld [vmem:[%s3 + $0x8f4] sm:$0xff]
    %v2758 = vld [vmem:[%s3 + $0x8fc] sm:$0xf]
    %v2759 = vld [vmem:[%s4] sm:$0x7]
    %v2761 = vlaneseq
    %v2762 = vshrl.u32 %v2761, 7
    %v2763 = vsub.s32 0, %v2762
    %v2764 = vrot.slane %v2759, %v2763
    %v2765 = vlaneseq
    %v2766 = vshrl.u32 %v2765, 7
    %v2767 = vsub.s32 1, %v2766
    %v2768 = vrot.slane %v2759, %v2767
    %v2769 = vlaneseq
    %v2770 = vshrl.u32 %v2769, 7
    %v2771 = vsub.s32 2, %v2770
    %v2772 = vrot.slane %v2759, %v2771
    %v3160 = vunpack.c.l.b16 %v2375
    %v3161 = vunpack.c.h.b16 %v2375
    %v3162 = vunpack.c.l.b16 %v2376
    %v3163 = vunpack.c.l.b16 %v2377
    %v3164 = vunpack.c.h.b16 %v2377
    %v3165 = vunpack.c.l.b16 %v2378
    %v3166 = vunpack.c.l.b16 %v2379
    %v3167 = vunpack.c.h.b16 %v2379
    %v3168 = vunpack.c.l.b16 %v2380
    %v3169 = vunpack.c.l.b16 %v2381
    %v3170 = vunpack.c.h.b16 %v2381
    %v3171 = vunpack.c.l.b16 %v2382
    %v3172 = vunpack.c.l.b16 %v2383
    %v3173 = vunpack.c.h.b16 %v2383
    %v3174 = vunpack.c.l.b16 %v2384
    %v3175 = vunpack.c.l.b16 %v2385
    %v3176 = vunpack.c.h.b16 %v2385
    %v3177 = vunpack.c.l.b16 %v2386
    %v3178 = vunpack.c.l.b16 %v2387
    %v3179 = vunpack.c.h.b16 %v2387
    %v3180 = vunpack.c.l.b16 %v2388
    %v3181 = vunpack.c.l.b16 %v2389
    %v3182 = vunpack.c.h.b16 %v2389
    %v3183 = vunpack.c.l.b16 %v2390
    %v3184 = vunpack.c.l.b16 %v2391
    %v3185 = vunpack.c.h.b16 %v2391
    %v3186 = vunpack.c.l.b16 %v2392
    %v3187 = vunpack.c.l.b16 %v2393
    %v3188 = vunpack.c.h.b16 %v2393
    %v3189 = vunpack.c.l.b16 %v2394
    %v3190 = vunpack.c.l.b16 %v2395
    %v3191 = vunpack.c.h.b16 %v2395
    %v3192 = vunpack.c.l.b16 %v2396
    %v3193 = vunpack.c.l.b16 %v2397
    %v3194 = vunpack.c.h.b16 %v2397
    %v3195 = vunpack.c.l.b16 %v2398
    %v3196 = vunpack.c.l.b16 %v2399
    %v3197 = vunpack.c.h.b16 %v2399
    %v3198 = vunpack.c.l.b16 %v2400
    %v3199 = vunpack.c.l.b16 %v2401
    %v3200 = vunpack.c.h.b16 %v2401
    %v3201 = vunpack.c.l.b16 %v2402
    %v3202 = vunpack.c.l.b16 %v2403
    %v3203 = vunpack.c.h.b16 %v2403
    %v3204 = vunpack.c.l.b16 %v2404
    %v3205 = vunpack.c.l.b16 %v2405
    %v3206 = vunpack.c.h.b16 %v2405
    %v3207 = vunpack.c.l.b16 %v2406
    %v3208 = vunpack.c.l.b16 %v2407
    %v3209 = vunpack.c.h.b16 %v2407
    %v3210 = vunpack.c.l.b16 %v2408
    %v3211 = vunpack.c.l.b16 %v2409
    %v3212 = vunpack.c.h.b16 %v2409
    %v3213 = vunpack.c.l.b16 %v2410
    %v3214 = vunpack.c.l.b16 %v2411
    %v3215 = vunpack.c.h.b16 %v2411
    %v3216 = vunpack.c.l.b16 %v2412
    %v3217 = vunpack.c.l.b16 %v2413
    %v3218 = vunpack.c.h.b16 %v2413
    %v3219 = vunpack.c.l.b16 %v2414
    %v3220 = vunpack.c.l.b16 %v2415
    %v3221 = vunpack.c.h.b16 %v2415
    %v3222 = vunpack.c.l.b16 %v2416
    %v3223 = vunpack.c.l.b16 %v2417
    %v3224 = vunpack.c.h.b16 %v2417
    %v3225 = vunpack.c.l.b16 %v2418
    %v3226 = vunpack.c.l.b16 %v2419
    %v3227 = vunpack.c.h.b16 %v2419
    %v3228 = vunpack.c.l.b16 %v2420
    %v3229 = vunpack.c.l.b16 %v2421
    %v3230 = vunpack.c.h.b16 %v2421
    %v3231 = vunpack.c.l.b16 %v2422
    %v3232 = vunpack.c.l.b16 %v2423
    %v3233 = vunpack.c.h.b16 %v2423
    %v3234 = vunpack.c.l.b16 %v2424
    %v3235 = vunpack.c.l.b16 %v2425
    %v3236 = vunpack.c.h.b16 %v2425
    %v3237 = vunpack.c.l.b16 %v2426
    %v3238 = vunpack.c.l.b16 %v2427
    %v3239 = vunpack.c.h.b16 %v2427
    %v3240 = vunpack.c.l.b16 %v2428
    %v3241 = vunpack.c.l.b16 %v2429
    %v3242 = vunpack.c.h.b16 %v2429
    %v3243 = vunpack.c.l.b16 %v2430
    %v3244 = vunpack.c.l.b16 %v2431
    %v3245 = vunpack.c.h.b16 %v2431
    %v3246 = vunpack.c.l.b16 %v2432
    %v3247 = vunpack.c.l.b16 %v2433
    %v3248 = vunpack.c.h.b16 %v2433
    %v3249 = vunpack.c.l.b16 %v2434
    %v3250 = vunpack.c.l.b16 %v2435
    %v3251 = vunpack.c.h.b16 %v2435
    %v3252 = vunpack.c.l.b16 %v2436
    %v3253 = vunpack.c.l.b16 %v2437
    %v3254 = vunpack.c.h.b16 %v2437
    %v3255 = vunpack.c.l.b16 %v2438
    %v3256 = vunpack.c.l.b16 %v2439
    %v3257 = vunpack.c.h.b16 %v2439
    %v3258 = vunpack.c.l.b16 %v2440
    %v3259 = vunpack.c.l.b16 %v2441
    %v3260 = vunpack.c.h.b16 %v2441
    %v3261 = vunpack.c.l.b16 %v2442
    %v3262 = vunpack.c.l.b16 %v2443
    %v3263 = vunpack.c.h.b16 %v2443
    %v3264 = vunpack.c.l.b16 %v2444
    %v3265 = vunpack.c.l.b16 %v2445
    %v3266 = vunpack.c.h.b16 %v2445
    %v3267 = vunpack.c.l.b16 %v2446
    %v3268 = vunpack.c.l.b16 %v2447
    %v3269 = vunpack.c.h.b16 %v2447
    %v3270 = vunpack.c.l.b16 %v2448
    %v3271 = vunpack.c.l.b16 %v2449
    %v3272 = vunpack.c.h.b16 %v2449
    %v3273 = vunpack.c.l.b16 %v2450
    %v3274 = vunpack.c.l.b16 %v2451
    %v3275 = vunpack.c.h.b16 %v2451
    %v3276 = vunpack.c.l.b16 %v2452
    %v3277 = vunpack.c.l.b16 %v2453
    %v3278 = vunpack.c.h.b16 %v2453
    %v3279 = vunpack.c.l.b16 %v2454
    %v3280 = vunpack.c.l.b16 %v2455
    %v3281 = vunpack.c.h.b16 %v2455
    %v3282 = vunpack.c.l.b16 %v2456
    %v3283 = vunpack.c.l.b16 %v2457
    %v3284 = vunpack.c.h.b16 %v2457
    %v3285 = vunpack.c.l.b16 %v2458
    %v3286 = vunpack.c.l.b16 %v2459
    %v3287 = vunpack.c.h.b16 %v2459
    %v3288 = vunpack.c.l.b16 %v2460
    %v3289 = vunpack.c.l.b16 %v2461
    %v3290 = vunpack.c.h.b16 %v2461
    %v3291 = vunpack.c.l.b16 %v2462
    %v3292 = vunpack.c.l.b16 %v2463
    %v3293 = vunpack.c.h.b16 %v2463
    %v3294 = vunpack.c.l.b16 %v2464
    %v3295 = vunpack.c.l.b16 %v2465
    %v3296 = vunpack.c.h.b16 %v2465
    %v3297 = vunpack.c.l.b16 %v2466
    %v3298 = vunpack.c.l.b16 %v2467
    %v3299 = vunpack.c.h.b16 %v2467
    %v3300 = vunpack.c.l.b16 %v2468
    %v3301 = vunpack.c.l.b16 %v2469
    %v3302 = vunpack.c.h.b16 %v2469
    %v3303 = vunpack.c.l.b16 %v2470
    %v3304 = vunpack.c.l.b16 %v2471
    %v3305 = vunpack.c.h.b16 %v2471
    %v3306 = vunpack.c.l.b16 %v2472
    %v3307 = vunpack.c.l.b16 %v2473
    %v3308 = vunpack.c.h.b16 %v2473
    %v3309 = vunpack.c.l.b16 %v2474
    %v3310 = vunpack.c.l.b16 %v2475
    %v3311 = vunpack.c.h.b16 %v2475
    %v3312 = vunpack.c.l.b16 %v2476
    %v3313 = vunpack.c.l.b16 %v2477
    %v3314 = vunpack.c.h.b16 %v2477
    %v3315 = vunpack.c.l.b16 %v2478
    %v3316 = vunpack.c.l.b16 %v2479
    %v3317 = vunpack.c.h.b16 %v2479
    %v3318 = vunpack.c.l.b16 %v2480
    %v3319 = vunpack.c.l.b16 %v2481
    %v3320 = vunpack.c.h.b16 %v2481
    %v3321 = vunpack.c.l.b16 %v2482
    %v3322 = vunpack.c.l.b16 %v2483
    %v3323 = vunpack.c.h.b16 %v2483
    %v3324 = vunpack.c.l.b16 %v2484
    %v3325 = vunpack.c.l.b16 %v2485
    %v3326 = vunpack.c.h.b16 %v2485
    %v3327 = vunpack.c.l.b16 %v2486
    %v3328 = vunpack.c.l.b16 %v2487
    %v3329 = vunpack.c.h.b16 %v2487
    %v3330 = vunpack.c.l.b16 %v2488
    %v3331 = vunpack.c.l.b16 %v2489
    %v3332 = vunpack.c.h.b16 %v2489
    %v3333 = vunpack.c.l.b16 %v2490
    %v3334 = vunpack.c.l.b16 %v2491
    %v3335 = vunpack.c.h.b16 %v2491
    %v3336 = vunpack.c.l.b16 %v2492
    %v3337 = vunpack.c.l.b16 %v2493
    %v3338 = vunpack.c.h.b16 %v2493
    %v3339 = vunpack.c.l.b16 %v2494
    %v3340 = vunpack.c.l.b16 %v2495
    %v3341 = vunpack.c.h.b16 %v2495
    %v3342 = vunpack.c.l.b16 %v2496
    %v3343 = vunpack.c.l.b16 %v2497
    %v3344 = vunpack.c.h.b16 %v2497
    %v3345 = vunpack.c.l.b16 %v2498
    %v3346 = vunpack.c.l.b16 %v2499
    %v3347 = vunpack.c.h.b16 %v2499
    %v3348 = vunpack.c.l.b16 %v2500
    %v3349 = vunpack.c.l.b16 %v2501
    %v3350 = vunpack.c.h.b16 %v2501
    %v3351 = vunpack.c.l.b16 %v2502
    %v3352 = vunpack.c.l.b16 %v2503
    %v3353 = vunpack.c.h.b16 %v2503
    %v3354 = vunpack.c.l.b16 %v2504
    %v3355 = vunpack.c.l.b16 %v2505
    %v3356 = vunpack.c.h.b16 %v2505
    %v3357 = vunpack.c.l.b16 %v2506
    %v3358 = vunpack.c.l.b16 %v2507
    %v3359 = vunpack.c.h.b16 %v2507
    %v3360 = vunpack.c.l.b16 %v2508
    %v3361 = vunpack.c.l.b16 %v2509
    %v3362 = vunpack.c.h.b16 %v2509
    %v3363 = vunpack.c.l.b16 %v2510
    %v3364 = vunpack.c.l.b16 %v2511
    %v3365 = vunpack.c.h.b16 %v2511
    %v3366 = vunpack.c.l.b16 %v2512
    %v3367 = vunpack.c.l.b16 %v2513
    %v3368 = vunpack.c.h.b16 %v2513
    %v3369 = vunpack.c.l.b16 %v2514
    %v3370 = vunpack.c.l.b16 %v2515
    %v3371 = vunpack.c.h.b16 %v2515
    %v3372 = vunpack.c.l.b16 %v2516
    %v3373 = vunpack.c.l.b16 %v2517
    %v3374 = vunpack.c.h.b16 %v2517
    %v3375 = vunpack.c.l.b16 %v2518
    %v3376 = vunpack.c.l.b16 %v2519
    %v3377 = vunpack.c.h.b16 %v2519
    %v3378 = vunpack.c.l.b16 %v2520
    %v3379 = vunpack.c.l.b16 %v2521
    %v3380 = vunpack.c.h.b16 %v2521
    %v3381 = vunpack.c.l.b16 %v2522
    %v3382 = vunpack.c.l.b16 %v2523
    %v3383 = vunpack.c.h.b16 %v2523
    %v3384 = vunpack.c.l.b16 %v2524
    %v3385 = vunpack.c.l.b16 %v2525
    %v3386 = vunpack.c.h.b16 %v2525
    %v3387 = vunpack.c.l.b16 %v2526
    %v3388 = vunpack.c.l.b16 %v2527
    %v3389 = vunpack.c.h.b16 %v2527
    %v3390 = vunpack.c.l.b16 %v2528
    %v3391 = vunpack.c.l.b16 %v2529
    %v3392 = vunpack.c.h.b16 %v2529
    %v3393 = vunpack.c.l.b16 %v2530
    %v3394 = vunpack.c.l.b16 %v2531
    %v3395 = vunpack.c.h.b16 %v2531
    %v3396 = vunpack.c.l.b16 %v2532
    %v3397 = vunpack.c.l.b16 %v2533
    %v3398 = vunpack.c.h.b16 %v2533
    %v3399 = vunpack.c.l.b16 %v2534
    %v3400 = vunpack.c.l.b16 %v2535
    %v3401 = vunpack.c.h.b16 %v2535
    %v3402 = vunpack.c.l.b16 %v2536
    %v3403 = vunpack.c.l.b16 %v2537
    %v3404 = vunpack.c.h.b16 %v2537
    %v3405 = vunpack.c.l.b16 %v2538
    %v3406 = vunpack.c.l.b16 %v2539
    %v3407 = vunpack.c.h.b16 %v2539
    %v3408 = vunpack.c.l.b16 %v2540
    %v3409 = vunpack.c.l.b16 %v2541
    %v3410 = vunpack.c.h.b16 %v2541
    %v3411 = vunpack.c.l.b16 %v2542
    %v3412 = vunpack.c.l.b16 %v2543
    %v3413 = vunpack.c.h.b16 %v2543
    %v3414 = vunpack.c.l.b16 %v2544
    %v3415 = vunpack.c.l.b16 %v2545
    %v3416 = vunpack.c.h.b16 %v2545
    %v3417 = vunpack.c.l.b16 %v2546
    %v3418 = vunpack.c.l.b16 %v2547
    %v3419 = vunpack.c.h.b16 %v2547
    %v3420 = vunpack.c.l.b16 %v2548
    %v3421 = vunpack.c.l.b16 %v2549
    %v3422 = vunpack.c.h.b16 %v2549
    %v3423 = vunpack.c.l.b16 %v2550
    %v3424 = vunpack.c.l.b16 %v2551
    %v3425 = vunpack.c.h.b16 %v2551
    %v3426 = vunpack.c.l.b16 %v2552
    %v3427 = vunpack.c.l.b16 %v2553
    %v3428 = vunpack.c.h.b16 %v2553
    %v3429 = vunpack.c.l.b16 %v2554
    %v3430 = vunpack.c.l.b16 %v2555
    %v3431 = vunpack.c.h.b16 %v2555
    %v3432 = vunpack.c.l.b16 %v2556
    %v3433 = vunpack.c.l.b16 %v2557
    %v3434 = vunpack.c.h.b16 %v2557
    %v3435 = vunpack.c.l.b16 %v2558
    %v3436 = vunpack.c.l.b16 %v2559
    %v3437 = vunpack.c.h.b16 %v2559
    %v3438 = vunpack.c.l.b16 %v2560
    %v3439 = vunpack.c.l.b16 %v2561
    %v3440 = vunpack.c.h.b16 %v2561
    %v3441 = vunpack.c.l.b16 %v2562
    %v3442 = vunpack.c.l.b16 %v2563
    %v3443 = vunpack.c.h.b16 %v2563
    %v3444 = vunpack.c.l.b16 %v2564
    %v3445 = vunpack.c.l.b16 %v2565
    %v3446 = vunpack.c.h.b16 %v2565
    %v3447 = vunpack.c.l.b16 %v2566
    %v3448 = vunpack.c.l.b16 %v2567
    %v3449 = vunpack.c.h.b16 %v2567
    %v3450 = vunpack.c.l.b16 %v2568
    %v3451 = vunpack.c.l.b16 %v2569
    %v3452 = vunpack.c.h.b16 %v2569
    %v3453 = vunpack.c.l.b16 %v2570
    %v3454 = vunpack.c.l.b16 %v2571
    %v3455 = vunpack.c.h.b16 %v2571
    %v3456 = vunpack.c.l.b16 %v2572
    %v3457 = vunpack.c.l.b16 %v2573
    %v3458 = vunpack.c.h.b16 %v2573
    %v3459 = vunpack.c.l.b16 %v2574
    %v3460 = vunpack.c.l.b16 %v2575
    %v3461 = vunpack.c.h.b16 %v2575
    %v3462 = vunpack.c.l.b16 %v2576
    %v3463 = vunpack.c.l.b16 %v2577
    %v3464 = vunpack.c.h.b16 %v2577
    %v3465 = vunpack.c.l.b16 %v2578
    %v3466 = vunpack.c.l.b16 %v2579
    %v3467 = vunpack.c.h.b16 %v2579
    %v3468 = vunpack.c.l.b16 %v2580
    %v3469 = vunpack.c.l.b16 %v2581
    %v3470 = vunpack.c.h.b16 %v2581
    %v3471 = vunpack.c.l.b16 %v2582
    %v3472 = vunpack.c.l.b16 %v2583
    %v3473 = vunpack.c.h.b16 %v2583
    %v3474 = vunpack.c.l.b16 %v2584
    %v3475 = vunpack.c.l.b16 %v2585
    %v3476 = vunpack.c.h.b16 %v2585
    %v3477 = vunpack.c.l.b16 %v2586
    %v3478 = vunpack.c.l.b16 %v2587
    %v3479 = vunpack.c.h.b16 %v2587
    %v3480 = vunpack.c.l.b16 %v2588
    %v3481 = vunpack.c.l.b16 %v2589
    %v3482 = vunpack.c.h.b16 %v2589
    %v3483 = vunpack.c.l.b16 %v2590
    %v3484 = vunpack.c.l.b16 %v2591
    %v3485 = vunpack.c.h.b16 %v2591
    %v3486 = vunpack.c.l.b16 %v2592
    %v3487 = vunpack.c.l.b16 %v2593
    %v3488 = vunpack.c.h.b16 %v2593
    %v3489 = vunpack.c.l.b16 %v2594
    %v3490 = vunpack.c.l.b16 %v2595
    %v3491 = vunpack.c.h.b16 %v2595
    %v3492 = vunpack.c.l.b16 %v2596
    %v3493 = vunpack.c.l.b16 %v2597
    %v3494 = vunpack.c.h.b16 %v2597
    %v3495 = vunpack.c.l.b16 %v2598
    %v3496 = vunpack.c.l.b16 %v2599
    %v3497 = vunpack.c.h.b16 %v2599
    %v3498 = vunpack.c.l.b16 %v2600
    %v3499 = vunpack.c.l.b16 %v2601
    %v3500 = vunpack.c.h.b16 %v2601
    %v3501 = vunpack.c.l.b16 %v2602
    %v3502 = vunpack.c.l.b16 %v2603
    %v3503 = vunpack.c.h.b16 %v2603
    %v3504 = vunpack.c.l.b16 %v2604
    %v3505 = vunpack.c.l.b16 %v2605
    %v3506 = vunpack.c.h.b16 %v2605
    %v3507 = vunpack.c.l.b16 %v2606
    %v3508 = vunpack.c.l.b16 %v2607
    %v3509 = vunpack.c.h.b16 %v2607
    %v3510 = vunpack.c.l.b16 %v2608
    %v3511 = vunpack.c.l.b16 %v2609
    %v3512 = vunpack.c.h.b16 %v2609
    %v3513 = vunpack.c.l.b16 %v2610
    %v3514 = vunpack.c.l.b16 %v2611
    %v3515 = vunpack.c.h.b16 %v2611
    %v3516 = vunpack.c.l.b16 %v2612
    %v3517 = vunpack.c.l.b16 %v2613
    %v3518 = vunpack.c.h.b16 %v2613
    %v3519 = vunpack.c.l.b16 %v2614
    %v3520 = vunpack.c.l.b16 %v2615
    %v3521 = vunpack.c.h.b16 %v2615
    %v3522 = vunpack.c.l.b16 %v2616
    %v3523 = vunpack.c.l.b16 %v2617
    %v3524 = vunpack.c.h.b16 %v2617
    %v3525 = vunpack.c.l.b16 %v2618
    %v3526 = vunpack.c.l.b16 %v2619
    %v3527 = vunpack.c.h.b16 %v2619
    %v3528 = vunpack.c.l.b16 %v2620
    %v3529 = vunpack.c.l.b16 %v2621
    %v3530 = vunpack.c.h.b16 %v2621
    %v3531 = vunpack.c.l.b16 %v2622
    %v3532 = vunpack.c.l.b16 %v2623
    %v3533 = vunpack.c.h.b16 %v2623
    %v3534 = vunpack.c.l.b16 %v2624
    %v3535 = vunpack.c.l.b16 %v2625
    %v3536 = vunpack.c.h.b16 %v2625
    %v3537 = vunpack.c.l.b16 %v2626
    %v3538 = vunpack.c.l.b16 %v2627
    %v3539 = vunpack.c.h.b16 %v2627
    %v3540 = vunpack.c.l.b16 %v2628
    %v3541 = vunpack.c.l.b16 %v2629
    %v3542 = vunpack.c.h.b16 %v2629
    %v3543 = vunpack.c.l.b16 %v2630
    %v3544 = vunpack.c.l.b16 %v2631
    %v3545 = vunpack.c.h.b16 %v2631
    %v3546 = vunpack.c.l.b16 %v2632
    %v3547 = vunpack.c.l.b16 %v2633
    %v3548 = vunpack.c.h.b16 %v2633
    %v3549 = vunpack.c.l.b16 %v2634
    %v3550 = vunpack.c.l.b16 %v2635
    %v3551 = vunpack.c.h.b16 %v2635
    %v3552 = vunpack.c.l.b16 %v2636
    %v3553 = vunpack.c.l.b16 %v2637
    %v3554 = vunpack.c.h.b16 %v2637
    %v3555 = vunpack.c.l.b16 %v2638
    %v3556 = vunpack.c.l.b16 %v2639
    %v3557 = vunpack.c.h.b16 %v2639
    %v3558 = vunpack.c.l.b16 %v2640
    %v3559 = vunpack.c.l.b16 %v2641
    %v3560 = vunpack.c.h.b16 %v2641
    %v3561 = vunpack.c.l.b16 %v2642
    %v3562 = vunpack.c.l.b16 %v2643
    %v3563 = vunpack.c.h.b16 %v2643
    %v3564 = vunpack.c.l.b16 %v2644
    %v3565 = vunpack.c.l.b16 %v2645
    %v3566 = vunpack.c.h.b16 %v2645
    %v3567 = vunpack.c.l.b16 %v2646
    %v3568 = vunpack.c.l.b16 %v2647
    %v3569 = vunpack.c.h.b16 %v2647
    %v3570 = vunpack.c.l.b16 %v2648
    %v3571 = vunpack.c.l.b16 %v2649
    %v3572 = vunpack.c.h.b16 %v2649
    %v3573 = vunpack.c.l.b16 %v2650
    %v3574 = vunpack.c.l.b16 %v2651
    %v3575 = vunpack.c.h.b16 %v2651
    %v3576 = vunpack.c.l.b16 %v2652
    %v3577 = vunpack.c.l.b16 %v2653
    %v3578 = vunpack.c.h.b16 %v2653
    %v3579 = vunpack.c.l.b16 %v2654
    %v3580 = vunpack.c.l.b16 %v2655
    %v3581 = vunpack.c.h.b16 %v2655
    %v3582 = vunpack.c.l.b16 %v2656
    %v3583 = vunpack.c.l.b16 %v2657
    %v3584 = vunpack.c.h.b16 %v2657
    %v3585 = vunpack.c.l.b16 %v2658
    %v3586 = vunpack.c.l.b16 %v2659
    %v3587 = vunpack.c.h.b16 %v2659
    %v3588 = vunpack.c.l.b16 %v2660
    %v3589 = vunpack.c.l.b16 %v2661
    %v3590 = vunpack.c.h.b16 %v2661
    %v3591 = vunpack.c.l.b16 %v2662
    %v3592 = vunpack.c.l.b16 %v2663
    %v3593 = vunpack.c.h.b16 %v2663
    %v3594 = vunpack.c.l.b16 %v2664
    %v3595 = vunpack.c.l.b16 %v2665
    %v3596 = vunpack.c.h.b16 %v2665
    %v3597 = vunpack.c.l.b16 %v2666
    %v3598 = vunpack.c.l.b16 %v2667
    %v3599 = vunpack.c.h.b16 %v2667
    %v3600 = vunpack.c.l.b16 %v2668
    %v3601 = vunpack.c.l.b16 %v2669
    %v3602 = vunpack.c.h.b16 %v2669
    %v3603 = vunpack.c.l.b16 %v2670
    %v3604 = vunpack.c.l.b16 %v2671
    %v3605 = vunpack.c.h.b16 %v2671
    %v3606 = vunpack.c.l.b16 %v2672
    %v3607 = vunpack.c.l.b16 %v2673
    %v3608 = vunpack.c.h.b16 %v2673
    %v3609 = vunpack.c.l.b16 %v2674
    %v3610 = vunpack.c.l.b16 %v2675
    %v3611 = vunpack.c.h.b16 %v2675
    %v3612 = vunpack.c.l.b16 %v2676
    %v3613 = vunpack.c.l.b16 %v2677
    %v3614 = vunpack.c.h.b16 %v2677
    %v3615 = vunpack.c.l.b16 %v2678
    %v3616 = vunpack.c.l.b16 %v2679
    %v3617 = vunpack.c.h.b16 %v2679
    %v3618 = vunpack.c.l.b16 %v2680
    %v3619 = vunpack.c.l.b16 %v2681
    %v3620 = vunpack.c.h.b16 %v2681
    %v3621 = vunpack.c.l.b16 %v2682
    %v3622 = vunpack.c.l.b16 %v2683
    %v3623 = vunpack.c.h.b16 %v2683
    %v3624 = vunpack.c.l.b16 %v2684
    %v3625 = vunpack.c.l.b16 %v2685
    %v3626 = vunpack.c.h.b16 %v2685
    %v3627 = vunpack.c.l.b16 %v2686
    %v3628 = vunpack.c.l.b16 %v2687
    %v3629 = vunpack.c.h.b16 %v2687
    %v3630 = vunpack.c.l.b16 %v2688
    %v3631 = vunpack.c.l.b16 %v2689
    %v3632 = vunpack.c.h.b16 %v2689
    %v3633 = vunpack.c.l.b16 %v2690
    %v3634 = vunpack.c.l.b16 %v2691
    %v3635 = vunpack.c.h.b16 %v2691
    %v3636 = vunpack.c.l.b16 %v2692
    %v3637 = vunpack.c.l.b16 %v2693
    %v3638 = vunpack.c.h.b16 %v2693
    %v3639 = vunpack.c.l.b16 %v2694
    %v3640 = vunpack.c.l.b16 %v2695
    %v3641 = vunpack.c.h.b16 %v2695
    %v3642 = vunpack.c.l.b16 %v2696
    %v3643 = vunpack.c.l.b16 %v2697
    %v3644 = vunpack.c.h.b16 %v2697
    %v3645 = vunpack.c.l.b16 %v2698
    %v3646 = vunpack.c.l.b16 %v2699
    %v3647 = vunpack.c.h.b16 %v2699
    %v3648 = vunpack.c.l.b16 %v2700
    %v3649 = vunpack.c.l.b16 %v2701
    %v3650 = vunpack.c.h.b16 %v2701
    %v3651 = vunpack.c.l.b16 %v2702
    %v3652 = vunpack.c.l.b16 %v2703
    %v3653 = vunpack.c.h.b16 %v2703
    %v3654 = vunpack.c.l.b16 %v2704
    %v3655 = vunpack.c.l.b16 %v2705
    %v3656 = vunpack.c.h.b16 %v2705
    %v3657 = vunpack.c.l.b16 %v2706
    %v3658 = vunpack.c.l.b16 %v2707
    %v3659 = vunpack.c.h.b16 %v2707
    %v3660 = vunpack.c.l.b16 %v2708
    %v3661 = vunpack.c.l.b16 %v2709
    %v3662 = vunpack.c.h.b16 %v2709
    %v3663 = vunpack.c.l.b16 %v2710
    %v3664 = vunpack.c.l.b16 %v2711
    %v3665 = vunpack.c.h.b16 %v2711
    %v3666 = vunpack.c.l.b16 %v2712
    %v3667 = vunpack.c.l.b16 %v2713
    %v3668 = vunpack.c.h.b16 %v2713
    %v3669 = vunpack.c.l.b16 %v2714
    %v3670 = vunpack.c.l.b16 %v2715
    %v3671 = vunpack.c.h.b16 %v2715
    %v3672 = vunpack.c.l.b16 %v2716
    %v3673 = vunpack.c.l.b16 %v2717
    %v3674 = vunpack.c.h.b16 %v2717
    %v3675 = vunpack.c.l.b16 %v2718
    %v3676 = vunpack.c.l.b16 %v2719
    %v3677 = vunpack.c.h.b16 %v2719
    %v3678 = vunpack.c.l.b16 %v2720
    %v3679 = vunpack.c.l.b16 %v2721
    %v3680 = vunpack.c.h.b16 %v2721
    %v3681 = vunpack.c.l.b16 %v2722
    %v3682 = vunpack.c.l.b16 %v2723
    %v3683 = vunpack.c.h.b16 %v2723
    %v3684 = vunpack.c.l.b16 %v2724
    %v3685 = vunpack.c.l.b16 %v2725
    %v3686 = vunpack.c.h.b16 %v2725
    %v3687 = vunpack.c.l.b16 %v2726
    %v3688 = vunpack.c.l.b16 %v2727
    %v3689 = vunpack.c.h.b16 %v2727
    %v3690 = vunpack.c.l.b16 %v2728
    %v3691 = vunpack.c.l.b16 %v2729
    %v3692 = vunpack.c.h.b16 %v2729
    %v3693 = vunpack.c.l.b16 %v2730
    %v3694 = vunpack.c.l.b16 %v2731
    %v3695 = vunpack.c.h.b16 %v2731
    %v3696 = vunpack.c.l.b16 %v2732
    %v3697 = vunpack.c.l.b16 %v2733
    %v3698 = vunpack.c.h.b16 %v2733
    %v3699 = vunpack.c.l.b16 %v2734
    %v3700 = vunpack.c.l.b16 %v2735
    %v3701 = vunpack.c.h.b16 %v2735
    %v3702 = vunpack.c.l.b16 %v2736
    %v3703 = vunpack.c.l.b16 %v2737
    %v3704 = vunpack.c.h.b16 %v2737
    %v3705 = vunpack.c.l.b16 %v2738
    %v3706 = vunpack.c.l.b16 %v2739
    %v3707 = vunpack.c.h.b16 %v2739
    %v3708 = vunpack.c.l.b16 %v2740
    %v3709 = vunpack.c.l.b16 %v2741
    %v3710 = vunpack.c.h.b16 %v2741
    %v3711 = vunpack.c.l.b16 %v2742
    %v3712 = vunpack.c.l.b16 %v2743
    %v3713 = vunpack.c.h.b16 %v2743
    %v3714 = vunpack.c.l.b16 %v2744
    %v3715 = vunpack.c.l.b16 %v2745
    %v3716 = vunpack.c.h.b16 %v2745
    %v3717 = vunpack.c.l.b16 %v2746
    %v3718 = vunpack.c.l.b16 %v2747
    %v3719 = vunpack.c.h.b16 %v2747
    %v3720 = vunpack.c.l.b16 %v2748
    %v3721 = vunpack.c.l.b16 %v2749
    %v3722 = vunpack.c.h.b16 %v2749
    %v3723 = vunpack.c.l.b16 %v2750
    %v3724 = vunpack.c.l.b16 %v2751
    %v3725 = vunpack.c.h.b16 %v2751
    %v3726 = vunpack.c.l.b16 %v2752
    %v3727 = vunpack.c.l.b16 %v2753
    %v3728 = vunpack.c.h.b16 %v2753
    %v3729 = vunpack.c.l.b16 %v2754
    %v3730 = vunpack.c.l.b16 %v2755
    %v3731 = vunpack.c.h.b16 %v2755
    %v3732 = vunpack.c.l.b16 %v2756
    %v3733 = vunpack.c.l.b16 %v2757
    %v3734 = vunpack.c.h.b16 %v2757
    %v3735 = vunpack.c.l.b16 %v2758
    %v3736 = vpack.c.b16 %v3163, %v3160
    %v3737 = vpack.c.b16 %v3164, %v3161
    %v3738 = vpack.c.b16 %v3165, %v3162
    %v3739 = vpack.c.b16 %v3169, %v3166
    %v3740 = vpack.c.b16 %v3170, %v3167
    %v3741 = vpack.c.b16 %v3171, %v3168
    %v3742 = vpack.c.b16 %v3175, %v3172
    %v3743 = vpack.c.b16 %v3176, %v3173
    %v3744 = vpack.c.b16 %v3177, %v3174
    %v3745 = vpack.c.b16 %v3181, %v3178
    %v3746 = vpack.c.b16 %v3182, %v3179
    %v3747 = vpack.c.b16 %v3183, %v3180
    %v3748 = vpack.c.b16 %v3187, %v3184
    %v3749 = vpack.c.b16 %v3188, %v3185
    %v3750 = vpack.c.b16 %v3189, %v3186
    %v3751 = vpack.c.b16 %v3193, %v3190
    %v3752 = vpack.c.b16 %v3194, %v3191
    %v3753 = vpack.c.b16 %v3195, %v3192
    %v3754 = vpack.c.b16 %v3199, %v3196
    %v3755 = vpack.c.b16 %v3200, %v3197
    %v3756 = vpack.c.b16 %v3201, %v3198
    %v3757 = vpack.c.b16 %v3205, %v3202
    %v3758 = vpack.c.b16 %v3206, %v3203
    %v3759 = vpack.c.b16 %v3207, %v3204
    %v3760 = vpack.c.b16 %v3211, %v3208
    %v3761 = vpack.c.b16 %v3212, %v3209
    %v3762 = vpack.c.b16 %v3213, %v3210
    %v3763 = vpack.c.b16 %v3217, %v3214
    %v3764 = vpack.c.b16 %v3218, %v3215
    %v3765 = vpack.c.b16 %v3219, %v3216
    %v3766 = vpack.c.b16 %v3223, %v3220
    %v3767 = vpack.c.b16 %v3224, %v3221
    %v3768 = vpack.c.b16 %v3225, %v3222
    %v3769 = vpack.c.b16 %v3229, %v3226
    %v3770 = vpack.c.b16 %v3230, %v3227
    %v3771 = vpack.c.b16 %v3231, %v3228
    %v3772 = vpack.c.b16 %v3235, %v3232
    %v3773 = vpack.c.b16 %v3236, %v3233
    %v3774 = vpack.c.b16 %v3237, %v3234
    %v3775 = vpack.c.b16 %v3241, %v3238
    %v3776 = vpack.c.b16 %v3242, %v3239
    %v3777 = vpack.c.b16 %v3243, %v3240
    %v3778 = vpack.c.b16 %v3247, %v3244
    %v3779 = vpack.c.b16 %v3248, %v3245
    %v3780 = vpack.c.b16 %v3249, %v3246
    %v3781 = vpack.c.b16 %v3253, %v3250
    %v3782 = vpack.c.b16 %v3254, %v3251
    %v3783 = vpack.c.b16 %v3255, %v3252
    %v3784 = vpack.c.b16 %v3259, %v3256
    %v3785 = vpack.c.b16 %v3260, %v3257
    %v3786 = vpack.c.b16 %v3261, %v3258
    %v3787 = vpack.c.b16 %v3265, %v3262
    %v3788 = vpack.c.b16 %v3266, %v3263
    %v3789 = vpack.c.b16 %v3267, %v3264
    %v3790 = vpack.c.b16 %v3271, %v3268
    %v3791 = vpack.c.b16 %v3272, %v3269
    %v3792 = vpack.c.b16 %v3273, %v3270
    %v3793 = vpack.c.b16 %v3277, %v3274
    %v3794 = vpack.c.b16 %v3278, %v3275
    %v3795 = vpack.c.b16 %v3279, %v3276
    %v3796 = vpack.c.b16 %v3283, %v3280
    %v3797 = vpack.c.b16 %v3284, %v3281
    %v3798 = vpack.c.b16 %v3285, %v3282
    %v3799 = vpack.c.b16 %v3289, %v3286
    %v3800 = vpack.c.b16 %v3290, %v3287
    %v3801 = vpack.c.b16 %v3291, %v3288
    %v3802 = vpack.c.b16 %v3295, %v3292
    %v3803 = vpack.c.b16 %v3296, %v3293
    %v3804 = vpack.c.b16 %v3297, %v3294
    %v3805 = vpack.c.b16 %v3301, %v3298
    %v3806 = vpack.c.b16 %v3302, %v3299
    %v3807 = vpack.c.b16 %v3303, %v3300
    %v3808 = vpack.c.b16 %v3307, %v3304
    %v3809 = vpack.c.b16 %v3308, %v3305
    %v3810 = vpack.c.b16 %v3309, %v3306
    %v3811 = vpack.c.b16 %v3313, %v3310
    %v3812 = vpack.c.b16 %v3314, %v3311
    %v3813 = vpack.c.b16 %v3315, %v3312
    %v3814 = vpack.c.b16 %v3319, %v3316
    %v3815 = vpack.c.b16 %v3320, %v3317
    %v3816 = vpack.c.b16 %v3321, %v3318
    %v3817 = vpack.c.b16 %v3325, %v3322
    %v3818 = vpack.c.b16 %v3326, %v3323
    %v3819 = vpack.c.b16 %v3327, %v3324
    %v3820 = vpack.c.b16 %v3331, %v3328
    %v3821 = vpack.c.b16 %v3332, %v3329
    %v3822 = vpack.c.b16 %v3333, %v3330
    %v3823 = vpack.c.b16 %v3337, %v3334
    %v3824 = vpack.c.b16 %v3338, %v3335
    %v3825 = vpack.c.b16 %v3339, %v3336
    %v3826 = vpack.c.b16 %v3343, %v3340
    %v3827 = vpack.c.b16 %v3344, %v3341
    %v3828 = vpack.c.b16 %v3345, %v3342
    %v3829 = vpack.c.b16 %v3349, %v3346
    %v3830 = vpack.c.b16 %v3350, %v3347
    %v3831 = vpack.c.b16 %v3351, %v3348
    %v3832 = vpack.c.b16 %v3355, %v3352
    %v3833 = vpack.c.b16 %v3356, %v3353
    %v3834 = vpack.c.b16 %v3357, %v3354
    %v3835 = vpack.c.b16 %v3361, %v3358
    %v3836 = vpack.c.b16 %v3362, %v3359
    %v3837 = vpack.c.b16 %v3363, %v3360
    %v3838 = vpack.c.b16 %v3367, %v3364
    %v3839 = vpack.c.b16 %v3368, %v3365
    %v3840 = vpack.c.b16 %v3369, %v3366
    %v3841 = vpack.c.b16 %v3373, %v3370
    %v3842 = vpack.c.b16 %v3374, %v3371
    %v3843 = vpack.c.b16 %v3375, %v3372
    %v3844 = vpack.c.b16 %v3379, %v3376
    %v3845 = vpack.c.b16 %v3380, %v3377
    %v3846 = vpack.c.b16 %v3381, %v3378
    %v3847 = vpack.c.b16 %v3385, %v3382
    %v3848 = vpack.c.b16 %v3386, %v3383
    %v3849 = vpack.c.b16 %v3387, %v3384
    %v3850 = vpack.c.b16 %v3391, %v3388
    %v3851 = vpack.c.b16 %v3392, %v3389
    %v3852 = vpack.c.b16 %v3393, %v3390
    %v3853 = vpack.c.b16 %v3397, %v3394
    %v3854 = vpack.c.b16 %v3398, %v3395
    %v3855 = vpack.c.b16 %v3399, %v3396
    %v3856 = vpack.c.b16 %v3403, %v3400
    %v3857 = vpack.c.b16 %v3404, %v3401
    %v3858 = vpack.c.b16 %v3405, %v3402
    %v3859 = vpack.c.b16 %v3409, %v3406
    %v3860 = vpack.c.b16 %v3410, %v3407
    %v3861 = vpack.c.b16 %v3411, %v3408
    %v3862 = vpack.c.b16 %v3415, %v3412
    %v3863 = vpack.c.b16 %v3416, %v3413
    %v3864 = vpack.c.b16 %v3417, %v3414
    %v3865 = vpack.c.b16 %v3421, %v3418
    %v3866 = vpack.c.b16 %v3422, %v3419
    %v3867 = vpack.c.b16 %v3423, %v3420
    %v3868 = vpack.c.b16 %v3427, %v3424
    %v3869 = vpack.c.b16 %v3428, %v3425
    %v3870 = vpack.c.b16 %v3429, %v3426
    %v3871 = vpack.c.b16 %v3433, %v3430
    %v3872 = vpack.c.b16 %v3434, %v3431
    %v3873 = vpack.c.b16 %v3435, %v3432
    %v3874 = vpack.c.b16 %v3439, %v3436
    %v3875 = vpack.c.b16 %v3440, %v3437
    %v3876 = vpack.c.b16 %v3441, %v3438
    %v3877 = vpack.c.b16 %v3445, %v3442
    %v3878 = vpack.c.b16 %v3446, %v3443
    %v3879 = vpack.c.b16 %v3447, %v3444
    %v3880 = vpack.c.b16 %v3451, %v3448
    %v3881 = vpack.c.b16 %v3452, %v3449
    %v3882 = vpack.c.b16 %v3453, %v3450
    %v3883 = vpack.c.b16 %v3457, %v3454
    %v3884 = vpack.c.b16 %v3458, %v3455
    %v3885 = vpack.c.b16 %v3459, %v3456
    %v3886 = vpack.c.b16 %v3463, %v3460
    %v3887 = vpack.c.b16 %v3464, %v3461
    %v3888 = vpack.c.b16 %v3465, %v3462
    %v3889 = vpack.c.b16 %v3469, %v3466
    %v3890 = vpack.c.b16 %v3470, %v3467
    %v3891 = vpack.c.b16 %v3471, %v3468
    %v3892 = vpack.c.b16 %v3475, %v3472
    %v3893 = vpack.c.b16 %v3476, %v3473
    %v3894 = vpack.c.b16 %v3477, %v3474
    %v3895 = vpack.c.b16 %v3481, %v3478
    %v3896 = vpack.c.b16 %v3482, %v3479
    %v3897 = vpack.c.b16 %v3483, %v3480
    %v3898 = vpack.c.b16 %v3487, %v3484
    %v3899 = vpack.c.b16 %v3488, %v3485
    %v3900 = vpack.c.b16 %v3489, %v3486
    %v3901 = vpack.c.b16 %v3493, %v3490
    %v3902 = vpack.c.b16 %v3494, %v3491
    %v3903 = vpack.c.b16 %v3495, %v3492
    %v3904 = vpack.c.b16 %v3499, %v3496
    %v3905 = vpack.c.b16 %v3500, %v3497
    %v3906 = vpack.c.b16 %v3501, %v3498
    %v3907 = vpack.c.b16 %v3505, %v3502
    %v3908 = vpack.c.b16 %v3506, %v3503
    %v3909 = vpack.c.b16 %v3507, %v3504
    %v3910 = vpack.c.b16 %v3511, %v3508
    %v3911 = vpack.c.b16 %v3512, %v3509
    %v3912 = vpack.c.b16 %v3513, %v3510
    %v3913 = vpack.c.b16 %v3517, %v3514
    %v3914 = vpack.c.b16 %v3518, %v3515
    %v3915 = vpack.c.b16 %v3519, %v3516
    %v3916 = vpack.c.b16 %v3523, %v3520
    %v3917 = vpack.c.b16 %v3524, %v3521
    %v3918 = vpack.c.b16 %v3525, %v3522
    %v3919 = vpack.c.b16 %v3529, %v3526
    %v3920 = vpack.c.b16 %v3530, %v3527
    %v3921 = vpack.c.b16 %v3531, %v3528
    %v3922 = vpack.c.b16 %v3535, %v3532
    %v3923 = vpack.c.b16 %v3536, %v3533
    %v3924 = vpack.c.b16 %v3537, %v3534
    %v3925 = vpack.c.b16 %v3541, %v3538
    %v3926 = vpack.c.b16 %v3542, %v3539
    %v3927 = vpack.c.b16 %v3543, %v3540
    %v3928 = vpack.c.b16 %v3547, %v3544
    %v3929 = vpack.c.b16 %v3548, %v3545
    %v3930 = vpack.c.b16 %v3549, %v3546
    %v3931 = vpack.c.b16 %v3553, %v3550
    %v3932 = vpack.c.b16 %v3554, %v3551
    %v3933 = vpack.c.b16 %v3555, %v3552
    %v3934 = vpack.c.b16 %v3559, %v3556
    %v3935 = vpack.c.b16 %v3560, %v3557
    %v3936 = vpack.c.b16 %v3561, %v3558
    %v3937 = vpack.c.b16 %v3565, %v3562
    %v3938 = vpack.c.b16 %v3566, %v3563
    %v3939 = vpack.c.b16 %v3567, %v3564
    %v3940 = vpack.c.b16 %v3571, %v3568
    %v3941 = vpack.c.b16 %v3572, %v3569
    %v3942 = vpack.c.b16 %v3573, %v3570
    %v3943 = vpack.c.b16 %v3577, %v3574
    %v3944 = vpack.c.b16 %v3578, %v3575
    %v3945 = vpack.c.b16 %v3579, %v3576
    %v3946 = vpack.c.b16 %v3583, %v3580
    %v3947 = vpack.c.b16 %v3584, %v3581
    %v3948 = vpack.c.b16 %v3585, %v3582
    %v3949 = vpack.c.b16 %v3589, %v3586
    %v3950 = vpack.c.b16 %v3590, %v3587
    %v3951 = vpack.c.b16 %v3591, %v3588
    %v3952 = vpack.c.b16 %v3595, %v3592
    %v3953 = vpack.c.b16 %v3596, %v3593
    %v3954 = vpack.c.b16 %v3597, %v3594
    %v3955 = vpack.c.b16 %v3601, %v3598
    %v3956 = vpack.c.b16 %v3602, %v3599
    %v3957 = vpack.c.b16 %v3603, %v3600
    %v3958 = vpack.c.b16 %v3607, %v3604
    %v3959 = vpack.c.b16 %v3608, %v3605
    %v3960 = vpack.c.b16 %v3609, %v3606
    %v3961 = vpack.c.b16 %v3613, %v3610
    %v3962 = vpack.c.b16 %v3614, %v3611
    %v3963 = vpack.c.b16 %v3615, %v3612
    %v3964 = vpack.c.b16 %v3619, %v3616
    %v3965 = vpack.c.b16 %v3620, %v3617
    %v3966 = vpack.c.b16 %v3621, %v3618
    %v3967 = vpack.c.b16 %v3625, %v3622
    %v3968 = vpack.c.b16 %v3626, %v3623
    %v3969 = vpack.c.b16 %v3627, %v3624
    %v3970 = vpack.c.b16 %v3631, %v3628
    %v3971 = vpack.c.b16 %v3632, %v3629
    %v3972 = vpack.c.b16 %v3633, %v3630
    %v3973 = vpack.c.b16 %v3637, %v3634
    %v3974 = vpack.c.b16 %v3638, %v3635
    %v3975 = vpack.c.b16 %v3639, %v3636
    %v3976 = vpack.c.b16 %v3643, %v3640
    %v3977 = vpack.c.b16 %v3644, %v3641
    %v3978 = vpack.c.b16 %v3645, %v3642
    %v3979 = vpack.c.b16 %v3649, %v3646
    %v3980 = vpack.c.b16 %v3650, %v3647
    %v3981 = vpack.c.b16 %v3651, %v3648
    %v3982 = vpack.c.b16 %v3655, %v3652
    %v3983 = vpack.c.b16 %v3656, %v3653
    %v3984 = vpack.c.b16 %v3657, %v3654
    %v3985 = vpack.c.b16 %v3661, %v3658
    %v3986 = vpack.c.b16 %v3662, %v3659
    %v3987 = vpack.c.b16 %v3663, %v3660
    %v3988 = vpack.c.b16 %v3667, %v3664
    %v3989 = vpack.c.b16 %v3668, %v3665
    %v3990 = vpack.c.b16 %v3669, %v3666
    %v3991 = vpack.c.b16 %v3673, %v3670
    %v3992 = vpack.c.b16 %v3674, %v3671
    %v3993 = vpack.c.b16 %v3675, %v3672
    %v3994 = vpack.c.b16 %v3679, %v3676
    %v3995 = vpack.c.b16 %v3680, %v3677
    %v3996 = vpack.c.b16 %v3681, %v3678
    %v3997 = vpack.c.b16 %v3685, %v3682
    %v3998 = vpack.c.b16 %v3686, %v3683
    %v3999 = vpack.c.b16 %v3687, %v3684
    %v4000 = vpack.c.b16 %v3691, %v3688
    %v4001 = vpack.c.b16 %v3692, %v3689
    %v4002 = vpack.c.b16 %v3693, %v3690
    %v4003 = vpack.c.b16 %v3697, %v3694
    %v4004 = vpack.c.b16 %v3698, %v3695
    %v4005 = vpack.c.b16 %v3699, %v3696
    %v4006 = vpack.c.b16 %v3703, %v3700
    %v4007 = vpack.c.b16 %v3704, %v3701
    %v4008 = vpack.c.b16 %v3705, %v3702
    %v4009 = vpack.c.b16 %v3709, %v3706
    %v4010 = vpack.c.b16 %v3710, %v3707
    %v4011 = vpack.c.b16 %v3711, %v3708
    %v4012 = vpack.c.b16 %v3715, %v3712
    %v4013 = vpack.c.b16 %v3716, %v3713
    %v4014 = vpack.c.b16 %v3717, %v3714
    %v4015 = vpack.c.b16 %v3721, %v3718
    %v4016 = vpack.c.b16 %v3722, %v3719
    %v4017 = vpack.c.b16 %v3723, %v3720
    %v4018 = vpack.c.b16 %v3727, %v3724
    %v4019 = vpack.c.b16 %v3728, %v3725
    %v4020 = vpack.c.b16 %v3729, %v3726
    %v4021 = vpack.c.b16 %v3733, %v3730
    %v4022 = vpack.c.b16 %v3734, %v3731
    %v4023 = vpack.c.b16 %v3735, %v3732
    %4312 = vmatprep.subr.bf16.mxu0 %v3737
    %4313 = vmatpush1.bf16.msra.mxu0 %v3736
    %4314 = vmatprep.subr.bf16.mxu0 %v3740
    %4315 = vmatpush1.bf16.msra.mxu0 %v3739
    %4316 = vmatprep.subr.bf16.mxu0 %v3743
    %4317 = vmatpush1.bf16.msra.mxu0 %v3742
    %4318 = vmatprep.subr.bf16.mxu0 %v3746
    %4319 = vmatpush1.bf16.msra.mxu0 %v3745
    %4320 = vmatprep.subr.bf16.mxu0 %v3749
    %4321 = vmatpush1.bf16.msra.mxu0 %v3748
    %4322 = vmatprep.subr.bf16.mxu0 %v3752
    %4323 = vmatpush1.bf16.msra.mxu0 %v3751
    %4324 = vmatprep.subr.bf16.mxu0 %v3755
    %4325 = vmatpush1.bf16.msra.mxu0 %v3754
    %4326 = vmatprep.subr.bf16.mxu0 %v3758
    %4327 = vmatpush1.bf16.msra.mxu0 %v3757
    %4328 = vmatprep.subr.bf16.mxu0 %v3761
    %4329 = vmatpush1.bf16.msra.mxu0 %v3760
    %4330 = vmatprep.subr.bf16.mxu0 %v3764
    %4331 = vmatpush1.bf16.msra.mxu0 %v3763
    %4332 = vmatprep.subr.bf16.mxu0 %v3767
    %4333 = vmatpush1.bf16.msra.mxu0 %v3766
    %4334 = vmatprep.subr.bf16.mxu0 %v3770
    %4335 = vmatpush1.bf16.msra.mxu0 %v3769
    %4336 = vmatprep.subr.bf16.mxu0 %v3773
    %4337 = vmatpush1.bf16.msra.mxu0 %v3772
    %4338 = vmatprep.subr.bf16.mxu0 %v3776
    %4339 = vmatpush1.bf16.msra.mxu0 %v3775
    %4340 = vmatprep.subr.bf16.mxu0 %v3779
    %4341 = vmatpush1.bf16.msra.mxu0 %v3778
    %4342 = vmatprep.subr.bf16.mxu0 %v3782
    %4343 = vmatpush1.bf16.msra.mxu0 %v3781
    %4344 = vmatprep.mubr.bf16.mxu0 %v2364
    %4345 = vmatmul.mubr.bf16.gmra.mrb[0].mxu0 %v2363
    %v4346 = vpop.f32.mrb[0].mxu0
    %v4347 = vadd.f32 %v2764, %v4346
    %v4348 = vpop.f32.mrb[0].mxu0
    %v4349 = vadd.f32 %v2768, %v4348
    %v4350 = vpop.f32.mrb[0].mxu0
    %v4351 = vadd.f32 %v2764, %v4350
    %v4352 = vpop.f32.mrb[0].mxu0
    %v4353 = vadd.f32 %v2768, %v4352
    %4354 = vdwg.mxu0
    %4355 = vmatprep.subr.bf16.mxu0 %v3785
    %4356 = vmatpush1.bf16.msra.mxu0 %v3784
    %4357 = vmatprep.subr.bf16.mxu0 %v3788
    %4358 = vmatpush1.bf16.msra.mxu0 %v3787
    %4359 = vmatprep.subr.bf16.mxu0 %v3791
    %4360 = vmatpush1.bf16.msra.mxu0 %v3790
    %4361 = vmatprep.subr.bf16.mxu0 %v3794
    %4362 = vmatpush1.bf16.msra.mxu0 %v3793
    %4363 = vmatprep.subr.bf16.mxu0 %v3797
    %4364 = vmatpush1.bf16.msra.mxu0 %v3796
    %4365 = vmatprep.subr.bf16.mxu0 %v3800
    %4366 = vmatpush1.bf16.msra.mxu0 %v3799
    %4367 = vmatprep.subr.bf16.mxu0 %v3803
    %4368 = vmatpush1.bf16.msra.mxu0 %v3802
    %4369 = vmatprep.subr.bf16.mxu0 %v3806
    %4370 = vmatpush1.bf16.msra.mxu0 %v3805
    %4371 = vmatprep.subr.bf16.mxu0 %v3809
    %4372 = vmatpush1.bf16.msra.mxu0 %v3808
    %4373 = vmatprep.subr.bf16.mxu0 %v3812
    %4374 = vmatpush1.bf16.msra.mxu0 %v3811
    %4375 = vmatprep.subr.bf16.mxu0 %v3815
    %4376 = vmatpush1.bf16.msra.mxu0 %v3814
    %4377 = vmatprep.subr.bf16.mxu0 %v3818
    %4378 = vmatpush1.bf16.msra.mxu0 %v3817
    %4379 = vmatprep.subr.bf16.mxu0 %v3821
    %4380 = vmatpush1.bf16.msra.mxu0 %v3820
    %4381 = vmatprep.subr.bf16.mxu0 %v3824
    %4382 = vmatpush1.bf16.msra.mxu0 %v3823
    %4383 = vmatprep.subr.bf16.mxu0 %v3827
    %4384 = vmatpush1.bf16.msra.mxu0 %v3826
    %4385 = vmatprep.subr.bf16.mxu0 %v3830
    %4386 = vmatpush1.bf16.msra.mxu0 %v3829
    %4387 = vmatprep.mubr.bf16.mxu0 %v2366
    %4388 = vmatmul.mubr.bf16.gmra.mrb[0].mxu0 %v2365
    %v4389 = vpop.f32.mrb[0].mxu0
    %v4390 = vadd.f32 %v4347, %v4389
    %v4391 = vpop.f32.mrb[0].mxu0
    %v4392 = vadd.f32 %v4349, %v4391
    %v4393 = vpop.f32.mrb[0].mxu0
    %v4394 = vadd.f32 %v4351, %v4393
    %v4395 = vpop.f32.mrb[0].mxu0
    %v4396 = vadd.f32 %v4353, %v4395
    %4397 = vdwg.mxu0
    %4398 = vmatprep.subr.bf16.mxu0 %v3833
    %4399 = vmatpush1.bf16.msra.mxu0 %v3832
    %4400 = vmatprep.subr.bf16.mxu0 %v3836
    %4401 = vmatpush1.bf16.msra.mxu0 %v3835
    %4402 = vmatprep.subr.bf16.mxu0 %v3839
    %4403 = vmatpush1.bf16.msra.mxu0 %v3838
    %4404 = vmatprep.subr.bf16.mxu0 %v3842
    %4405 = vmatpush1.bf16.msra.mxu0 %v3841
    %4406 = vmatprep.subr.bf16.mxu0 %v3845
    %4407 = vmatpush1.bf16.msra.mxu0 %v3844
    %4408 = vmatprep.subr.bf16.mxu0 %v3848
    %4409 = vmatpush1.bf16.msra.mxu0 %v3847
    %4410 = vmatprep.subr.bf16.mxu0 %v3851
    %4411 = vmatpush1.bf16.msra.mxu0 %v3850
    %4412 = vmatprep.subr.bf16.mxu0 %v3854
    %4413 = vmatpush1.bf16.msra.mxu0 %v3853
    %4414 = vmatprep.subr.bf16.mxu0 %v3857
    %4415 = vmatpush1.bf16.msra.mxu0 %v3856
    %4416 = vmatprep.subr.bf16.mxu0 %v3860
    %4417 = vmatpush1.bf16.msra.mxu0 %v3859
    %4418 = vmatprep.subr.bf16.mxu0 %v3863
    %4419 = vmatpush1.bf16.msra.mxu0 %v3862
    %4420 = vmatprep.subr.bf16.mxu0 %v3866
    %4421 = vmatpush1.bf16.msra.mxu0 %v3865
    %4422 = vmatprep.subr.bf16.mxu0 %v3869
    %4423 = vmatpush1.bf16.msra.mxu0 %v3868
    %4424 = vmatprep.subr.bf16.mxu0 %v3872
    %4425 = vmatpush1.bf16.msra.mxu0 %v3871
    %4426 = vmatprep.subr.bf16.mxu0 %v3875
    %4427 = vmatpush1.bf16.msra.mxu0 %v3874
    %4428 = vmatprep.subr.bf16.mxu0 %v3878
    %4429 = vmatpush1.bf16.msra.mxu0 %v3877
    %4430 = vmatprep.mubr.bf16.mxu0 %v2368
    %4431 = vmatmul.mubr.bf16.gmra.mrb[0].mxu0 %v2367
    %v4432 = vpop.f32.mrb[0].mxu0
    %v4433 = vadd.f32 %v4390, %v4432
    %v4434 = vpop.f32.mrb[0].mxu0
    %v4435 = vadd.f32 %v4392, %v4434
    %v4436 = vpop.f32.mrb[0].mxu0
    %v4437 = vadd.f32 %v4394, %v4436
    %v4438 = vpop.f32.mrb[0].mxu0
    %v4439 = vadd.f32 %v4396, %v4438
    %4440 = vdwg.mxu0
    %4441 = vmatprep.subr.bf16.mxu0 %v3881
    %4442 = vmatpush1.bf16.msra.mxu0 %v3880
    %4443 = vmatprep.subr.bf16.mxu0 %v3884
    %4444 = vmatpush1.bf16.msra.mxu0 %v3883
    %4445 = vmatprep.subr.bf16.mxu0 %v3887
    %4446 = vmatpush1.bf16.msra.mxu0 %v3886
    %4447 = vmatprep.subr.bf16.mxu0 %v3890
    %4448 = vmatpush1.bf16.msra.mxu0 %v3889
    %4449 = vmatprep.subr.bf16.mxu0 %v3893
    %4450 = vmatpush1.bf16.msra.mxu0 %v3892
    %4451 = vmatprep.subr.bf16.mxu0 %v3896
    %4452 = vmatpush1.bf16.msra.mxu0 %v3895
    %4453 = vmatprep.subr.bf16.mxu0 %v3899
    %4454 = vmatpush1.bf16.msra.mxu0 %v3898
    %4455 = vmatprep.subr.bf16.mxu0 %v3902
    %4456 = vmatpush1.bf16.msra.mxu0 %v3901
    %4457 = vmatprep.subr.bf16.mxu0 %v3905
    %4458 = vmatpush1.bf16.msra.mxu0 %v3904
    %4459 = vmatprep.subr.bf16.mxu0 %v3908
    %4460 = vmatpush1.bf16.msra.mxu0 %v3907
    %4461 = vmatprep.subr.bf16.mxu0 %v3911
    %4462 = vmatpush1.bf16.msra.mxu0 %v3910
    %4463 = vmatprep.subr.bf16.mxu0 %v3914
    %4464 = vmatpush1.bf16.msra.mxu0 %v3913
    %4465 = vmatprep.subr.bf16.mxu0 %v3917
    %4466 = vmatpush1.bf16.msra.mxu0 %v3916
    %4467 = vmatprep.subr.bf16.mxu0 %v3920
    %4468 = vmatpush1.bf16.msra.mxu0 %v3919
    %4469 = vmatprep.subr.bf16.mxu0 %v3923
    %4470 = vmatpush1.bf16.msra.mxu0 %v3922
    %4471 = vmatprep.subr.bf16.mxu0 %v3926
    %4472 = vmatpush1.bf16.msra.mxu0 %v3925
    %4473 = vmatprep.mubr.bf16.mxu0 %v2370
    %4474 = vmatmul.mubr.bf16.gmra.mrb[0].mxu0 %v2369
    %v4475 = vpop.f32.mrb[0].mxu0
    %v4476 = vadd.f32 %v4433, %v4475
    %v4477 = vpop.f32.mrb[0].mxu0
    %v4478 = vadd.f32 %v4435, %v4477
    %v4479 = vpop.f32.mrb[0].mxu0
    %v4480 = vadd.f32 %v4437, %v4479
    %v4481 = vpop.f32.mrb[0].mxu0
    %v4482 = vadd.f32 %v4439, %v4481
    %4483 = vdwg.mxu0
    %4484 = vmatprep.subr.bf16.mxu0 %v3929
    %4485 = vmatpush1.bf16.msra.mxu0 %v3928
    %4486 = vmatprep.subr.bf16.mxu0 %v3932
    %4487 = vmatpush1.bf16.msra.mxu0 %v3931
    %4488 = vmatprep.subr.bf16.mxu0 %v3935
    %4489 = vmatpush1.bf16.msra.mxu0 %v3934
    %4490 = vmatprep.subr.bf16.mxu0 %v3938
    %4491 = vmatpush1.bf16.msra.mxu0 %v3937
    %4492 = vmatprep.subr.bf16.mxu0 %v3941
    %4493 = vmatpush1.bf16.msra.mxu0 %v3940
    %4494 = vmatprep.subr.bf16.mxu0 %v3944
    %4495 = vmatpush1.bf16.msra.mxu0 %v3943
    %4496 = vmatprep.subr.bf16.mxu0 %v3947
    %4497 = vmatpush1.bf16.msra.mxu0 %v3946
    %4498 = vmatprep.subr.bf16.mxu0 %v3950
    %4499 = vmatpush1.bf16.msra.mxu0 %v3949
    %4500 = vmatprep.subr.bf16.mxu0 %v3953
    %4501 = vmatpush1.bf16.msra.mxu0 %v3952
    %4502 = vmatprep.subr.bf16.mxu0 %v3956
    %4503 = vmatpush1.bf16.msra.mxu0 %v3955
    %4504 = vmatprep.subr.bf16.mxu0 %v3959
    %4505 = vmatpush1.bf16.msra.mxu0 %v3958
    %4506 = vmatprep.subr.bf16.mxu0 %v3962
    %4507 = vmatpush1.bf16.msra.mxu0 %v3961
    %4508 = vmatprep.subr.bf16.mxu0 %v3965
    %4509 = vmatpush1.bf16.msra.mxu0 %v3964
    %4510 = vmatprep.subr.bf16.mxu0 %v3968
    %4511 = vmatpush1.bf16.msra.mxu0 %v3967
    %4512 = vmatprep.subr.bf16.mxu0 %v3971
    %4513 = vmatpush1.bf16.msra.mxu0 %v3970
    %4514 = vmatprep.subr.bf16.mxu0 %v3974
    %4515 = vmatpush1.bf16.msra.mxu0 %v3973
    %4516 = vmatprep.mubr.bf16.mxu0 %v2372
    %4517 = vmatmul.mubr.bf16.gmra.mrb[0].mxu0 %v2371
    %v4518 = vpop.f32.mrb[0].mxu0
    %v4519 = vadd.f32 %v4476, %v4518
    %v4520 = vpop.f32.mrb[0].mxu0
    %v4521 = vadd.f32 %v4478, %v4520
    %v4522 = vpop.f32.mrb[0].mxu0
    %v4523 = vadd.f32 %v4480, %v4522
    %v4524 = vpop.f32.mrb[0].mxu0
    %v4525 = vadd.f32 %v4482, %v4524
    %4526 = vdwg.mxu0
    %4527 = vmatprep.subr.bf16.mxu0 %v3977
    %4528 = vmatpush1.bf16.msra.mxu0 %v3976
    %4529 = vmatprep.subr.bf16.mxu0 %v3980
    %4530 = vmatpush1.bf16.msra.mxu0 %v3979
    %4531 = vmatprep.subr.bf16.mxu0 %v3983
    %4532 = vmatpush1.bf16.msra.mxu0 %v3982
    %4533 = vmatprep.subr.bf16.mxu0 %v3986
    %4534 = vmatpush1.bf16.msra.mxu0 %v3985
    %4535 = vmatprep.subr.bf16.mxu0 %v3989
    %4536 = vmatpush1.bf16.msra.mxu0 %v3988
    %4537 = vmatprep.subr.bf16.mxu0 %v3992
    %4538 = vmatpush1.bf16.msra.mxu0 %v3991
    %4539 = vmatprep.subr.bf16.mxu0 %v3995
    %4540 = vmatpush1.bf16.msra.mxu0 %v3994
    %4541 = vmatprep.subr.bf16.mxu0 %v3998
    %4542 = vmatpush1.bf16.msra.mxu0 %v3997
    %4543 = vmatprep.subr.bf16.mxu0 %v4001
    %4544 = vmatpush1.bf16.msra.mxu0 %v4000
    %4545 = vmatprep.subr.bf16.mxu0 %v4004
    %4546 = vmatpush1.bf16.msra.mxu0 %v4003
    %4547 = vmatprep.subr.bf16.mxu0 %v4007
    %4548 = vmatpush1.bf16.msra.mxu0 %v4006
    %4549 = vmatprep.subr.bf16.mxu0 %v4010
    %4550 = vmatpush1.bf16.msra.mxu0 %v4009
    %4551 = vmatprep.subr.bf16.mxu0 %v4013
    %4552 = vmatpush1.bf16.msra.mxu0 %v4012
    %4553 = vmatprep.subr.bf16.mxu0 %v4016
    %4554 = vmatpush1.bf16.msra.mxu0 %v4015
    %4555 = vmatprep.subr.bf16.mxu0 %v4019
    %4556 = vmatpush1.bf16.msra.mxu0 %v4018
    %4557 = vmatprep.subr.bf16.mxu0 %v4022
    %4558 = vmatpush1.bf16.msra.mxu0 %v4021
    %4559 = vmatprep.mubr.bf16.mxu0 %v2374
    %4560 = vmatmul.mubr.bf16.gmra.mrb[0].mxu0 %v2373
    %v4561 = vpop.f32.mrb[0].mxu0
    %v4562 = vadd.f32 %v4519, %v4561
    %v4563 = vpop.f32.mrb[0].mxu0
    %v4564 = vadd.f32 %v4521, %v4563
    %v4565 = vpop.f32.mrb[0].mxu0
    %v4566 = vadd.f32 %v4523, %v4565
    %v4567 = vpop.f32.mrb[0].mxu0
    %v4568 = vadd.f32 %v4525, %v4567
    %4569 = vdwg.mxu0
    %4570 = vmatprep.subr.bf16.mxu0 0
    %4571 = vmatpush1.bf16.msra.mxu0 %v3738
    %4572 = vmatprep.subr.bf16.mxu0 0
    %4573 = vmatpush1.bf16.msra.mxu0 %v3741
    %4574 = vmatprep.subr.bf16.mxu0 0
    %4575 = vmatpush1.bf16.msra.mxu0 %v3744
    %4576 = vmatprep.subr.bf16.mxu0 0
    %4577 = vmatpush1.bf16.msra.mxu0 %v3747
    %4578 = vmatprep.subr.bf16.mxu0 0
    %4579 = vmatpush1.bf16.msra.mxu0 %v3750
    %4580 = vmatprep.subr.bf16.mxu0 0
    %4581 = vmatpush1.bf16.msra.mxu0 %v3753
    %4582 = vmatprep.subr.bf16.mxu0 0
    %4583 = vmatpush1.bf16.msra.mxu0 %v3756
    %4584 = vmatprep.subr.bf16.mxu0 0
    %4585 = vmatpush1.bf16.msra.mxu0 %v3759
    %4586 = vmatprep.subr.bf16.mxu0 0
    %4587 = vmatpush1.bf16.msra.mxu0 %v3762
    %4588 = vmatprep.subr.bf16.mxu0 0
    %4589 = vmatpush1.bf16.msra.mxu0 %v3765
    %4590 = vmatprep.subr.bf16.mxu0 0
    %4591 = vmatpush1.bf16.msra.mxu0 %v3768
    %4592 = vmatprep.subr.bf16.mxu0 0
    %4593 = vmatpush1.bf16.msra.mxu0 %v3771
    %4594 = vmatprep.subr.bf16.mxu0 0
    %4595 = vmatpush1.bf16.msra.mxu0 %v3774
    %4596 = vmatprep.subr.bf16.mxu0 0
    %4597 = vmatpush1.bf16.msra.mxu0 %v3777
    %4598 = vmatprep.subr.bf16.mxu0 0
    %4599 = vmatpush1.bf16.msra.mxu0 %v3780
    %4600 = vmatprep.subr.bf16.mxu0 0
    %4601 = vmatpush1.bf16.msra.mxu0 %v3783
    %4602 = vmatprep.mubr.bf16.mxu0 %v2364
    %4603 = vmatmul.mubr.bf16.gmra.mrb[0].mxu0 %v2363
    %v4604 = vpop.f32.mrb[0].mxu0
    %v4605 = vadd.f32 %v2772, %v4604
    %v4606 = vpop.f32.mrb[0].mxu0
    %v4607 = vpop.f32.mrb[0].mxu0
    %v4608 = vadd.f32 %v2772, %v4607
    %v4609 = vpop.f32.mrb[0].mxu0
    %4610 = vdwg.mxu0
    %4611 = vmatprep.subr.bf16.mxu0 0
    %4612 = vmatpush1.bf16.msra.mxu0 %v3786
    %4613 = vmatprep.subr.bf16.mxu0 0
    %4614 = vmatpush1.bf16.msra.mxu0 %v3789
    %4615 = vmatprep.subr.bf16.mxu0 0
    %4616 = vmatpush1.bf16.msra.mxu0 %v3792
    %4617 = vmatprep.subr.bf16.mxu0 0
    %4618 = vmatpush1.bf16.msra.mxu0 %v3795
    %4619 = vmatprep.subr.bf16.mxu0 0
    %4620 = vmatpush1.bf16.msra.mxu0 %v3798
    %4621 = vmatprep.subr.bf16.mxu0 0
    %4622 = vmatpush1.bf16.msra.mxu0 %v3801
    %4623 = vmatprep.subr.bf16.mxu0 0
    %4624 = vmatpush1.bf16.msra.mxu0 %v3804
    %4625 = vmatprep.subr.bf16.mxu0 0
    %4626 = vmatpush1.bf16.msra.mxu0 %v3807
    %4627 = vmatprep.subr.bf16.mxu0 0
    %4628 = vmatpush1.bf16.msra.mxu0 %v3810
    %4629 = vmatprep.subr.bf16.mxu0 0
    %4630 = vmatpush1.bf16.msra.mxu0 %v3813
    %4631 = vmatprep.subr.bf16.mxu0 0
    %4632 = vmatpush1.bf16.msra.mxu0 %v3816
    %4633 = vmatprep.subr.bf16.mxu0 0
    %4634 = vmatpush1.bf16.msra.mxu0 %v3819
    %4635 = vmatprep.subr.bf16.mxu0 0
    %4636 = vmatpush1.bf16.msra.mxu0 %v3822
    %4637 = vmatprep.subr.bf16.mxu0 0
    %4638 = vmatpush1.bf16.msra.mxu0 %v3825
    %4639 = vmatprep.subr.bf16.mxu0 0
    %4640 = vmatpush1.bf16.msra.mxu0 %v3828
    %4641 = vmatprep.subr.bf16.mxu0 0
    %4642 = vmatpush1.bf16.msra.mxu0 %v3831
    %4643 = vmatprep.mubr.bf16.mxu0 %v2366
    %4644 = vmatmul.mubr.bf16.gmra.mrb[0].mxu0 %v2365
    %v4645 = vpop.f32.mrb[0].mxu0
    %v4646 = vadd.f32 %v4605, %v4645
    %v4647 = vpop.f32.mrb[0].mxu0
    %v4648 = vpop.f32.mrb[0].mxu0
    %v4649 = vadd.f32 %v4608, %v4648
    %v4650 = vpop.f32.mrb[0].mxu0
    %4651 = vdwg.mxu0
    %4652 = vmatprep.subr.bf16.mxu0 0
    %4653 = vmatpush1.bf16.msra.mxu0 %v3834
    %4654 = vmatprep.subr.bf16.mxu0 0
    %4655 = vmatpush1.bf16.msra.mxu0 %v3837
    %4656 = vmatprep.subr.bf16.mxu0 0
    %4657 = vmatpush1.bf16.msra.mxu0 %v3840
    %4658 = vmatprep.subr.bf16.mxu0 0
    %4659 = vmatpush1.bf16.msra.mxu0 %v3843
    %4660 = vmatprep.subr.bf16.mxu0 0
    %4661 = vmatpush1.bf16.msra.mxu0 %v3846
    %4662 = vmatprep.subr.bf16.mxu0 0
    %4663 = vmatpush1.bf16.msra.mxu0 %v3849
    %4664 = vmatprep.subr.bf16.mxu0 0
    %4665 = vmatpush1.bf16.msra.mxu0 %v3852
    %4666 = vmatprep.subr.bf16.mxu0 0
    %4667 = vmatpush1.bf16.msra.mxu0 %v3855
    %4668 = vmatprep.subr.bf16.mxu0 0
    %4669 = vmatpush1.bf16.msra.mxu0 %v3858
    %4670 = vmatprep.subr.bf16.mxu0 0
    %4671 = vmatpush1.bf16.msra.mxu0 %v3861
    %4672 = vmatprep.subr.bf16.mxu0 0
    %4673 = vmatpush1.bf16.msra.mxu0 %v3864
    %4674 = vmatprep.subr.bf16.mxu0 0
    %4675 = vmatpush1.bf16.msra.mxu0 %v3867
    %4676 = vmatprep.subr.bf16.mxu0 0
    %4677 = vmatpush1.bf16.msra.mxu0 %v3870
    %4678 = vmatprep.subr.bf16.mxu0 0
    %4679 = vmatpush1.bf16.msra.mxu0 %v3873
    %4680 = vmatprep.subr.bf16.mxu0 0
    %4681 = vmatpush1.bf16.msra.mxu0 %v3876
    %4682 = vmatprep.subr.bf16.mxu0 0
    %4683 = vmatpush1.bf16.msra.mxu0 %v3879
    %4684 = vmatprep.mubr.bf16.mxu0 %v2368
    %4685 = vmatmul.mubr.bf16.gmra.mrb[0].mxu0 %v2367
    %v4686 = vpop.f32.mrb[0].mxu0
    %v4687 = vadd.f32 %v4646, %v4686
    %v4688 = vpop.f32.mrb[0].mxu0
    %v4689 = vpop.f32.mrb[0].mxu0
    %v4690 = vadd.f32 %v4649, %v4689
    %v4691 = vpop.f32.mrb[0].mxu0
    %4692 = vdwg.mxu0
    %4693 = vmatprep.subr.bf16.mxu0 0
    %4694 = vmatpush1.bf16.msra.mxu0 %v3882
    %4695 = vmatprep.subr.bf16.mxu0 0
    %4696 = vmatpush1.bf16.msra.mxu0 %v3885
    %4697 = vmatprep.subr.bf16.mxu0 0
    %4698 = vmatpush1.bf16.msra.mxu0 %v3888
    %4699 = vmatprep.subr.bf16.mxu0 0
    %4700 = vmatpush1.bf16.msra.mxu0 %v3891
    %4701 = vmatprep.subr.bf16.mxu0 0
    %4702 = vmatpush1.bf16.msra.mxu0 %v3894
    %4703 = vmatprep.subr.bf16.mxu0 0
    %4704 = vmatpush1.bf16.msra.mxu0 %v3897
    %4705 = vmatprep.subr.bf16.mxu0 0
    %4706 = vmatpush1.bf16.msra.mxu0 %v3900
    %4707 = vmatprep.subr.bf16.mxu0 0
    %4708 = vmatpush1.bf16.msra.mxu0 %v3903
    %4709 = vmatprep.subr.bf16.mxu0 0
    %4710 = vmatpush1.bf16.msra.mxu0 %v3906
    %4711 = vmatprep.subr.bf16.mxu0 0
    %4712 = vmatpush1.bf16.msra.mxu0 %v3909
    %4713 = vmatprep.subr.bf16.mxu0 0
    %4714 = vmatpush1.bf16.msra.mxu0 %v3912
    %4715 = vmatprep.subr.bf16.mxu0 0
    %4716 = vmatpush1.bf16.msra.mxu0 %v3915
    %4717 = vmatprep.subr.bf16.mxu0 0
    %4718 = vmatpush1.bf16.msra.mxu0 %v3918
    %4719 = vmatprep.subr.bf16.mxu0 0
    %4720 = vmatpush1.bf16.msra.mxu0 %v3921
    %4721 = vmatprep.subr.bf16.mxu0 0
    %4722 = vmatpush1.bf16.msra.mxu0 %v3924
    %4723 = vmatprep.subr.bf16.mxu0 0
    %4724 = vmatpush1.bf16.msra.mxu0 %v3927
    %4725 = vmatprep.mubr.bf16.mxu0 %v2370
    %4726 = vmatmul.mubr.bf16.gmra.mrb[0].mxu0 %v2369
    %v4727 = vpop.f32.mrb[0].mxu0
    %v4728 = vadd.f32 %v4687, %v4727
    %v4729 = vpop.f32.mrb[0].mxu0
    %v4730 = vpop.f32.mrb[0].mxu0
    %v4731 = vadd.f32 %v4690, %v4730
    %v4732 = vpop.f32.mrb[0].mxu0
    %4733 = vdwg.mxu0
    %4734 = vmatprep.subr.bf16.mxu0 0
    %4735 = vmatpush1.bf16.msra.mxu0 %v3930
    %4736 = vmatprep.subr.bf16.mxu0 0
    %4737 = vmatpush1.bf16.msra.mxu0 %v3933
    %4738 = vmatprep.subr.bf16.mxu0 0
    %4739 = vmatpush1.bf16.msra.mxu0 %v3936
    %4740 = vmatprep.subr.bf16.mxu0 0
    %4741 = vmatpush1.bf16.msra.mxu0 %v3939
    %4742 = vmatprep.subr.bf16.mxu0 0
    %4743 = vmatpush1.bf16.msra.mxu0 %v3942
    %4744 = vmatprep.subr.bf16.mxu0 0
    %4745 = vmatpush1.bf16.msra.mxu0 %v3945
    %4746 = vmatprep.subr.bf16.mxu0 0
    %4747 = vmatpush1.bf16.msra.mxu0 %v3948
    %4748 = vmatprep.subr.bf16.mxu0 0
    %4749 = vmatpush1.bf16.msra.mxu0 %v3951
    %4750 = vmatprep.subr.bf16.mxu0 0
    %4751 = vmatpush1.bf16.msra.mxu0 %v3954
    %4752 = vmatprep.subr.bf16.mxu0 0
    %4753 = vmatpush1.bf16.msra.mxu0 %v3957
    %4754 = vmatprep.subr.bf16.mxu0 0
    %4755 = vmatpush1.bf16.msra.mxu0 %v3960
    %4756 = vmatprep.subr.bf16.mxu0 0
    %4757 = vmatpush1.bf16.msra.mxu0 %v3963
    %4758 = vmatprep.subr.bf16.mxu0 0
    %4759 = vmatpush1.bf16.msra.mxu0 %v3966
    %4760 = vmatprep.subr.bf16.mxu0 0
    %4761 = vmatpush1.bf16.msra.mxu0 %v3969
    %4762 = vmatprep.subr.bf16.mxu0 0
    %4763 = vmatpush1.bf16.msra.mxu0 %v3972
    %4764 = vmatprep.subr.bf16.mxu0 0
    %4765 = vmatpush1.bf16.msra.mxu0 %v3975
    %4766 = vmatprep.mubr.bf16.mxu0 %v2372
    %4767 = vmatmul.mubr.bf16.gmra.mrb[0].mxu0 %v2371
    %v4768 = vpop.f32.mrb[0].mxu0
    %v4769 = vadd.f32 %v4728, %v4768
    %v4770 = vpop.f32.mrb[0].mxu0
    %v4771 = vpop.f32.mrb[0].mxu0
    %v4772 = vadd.f32 %v4731, %v4771
    %v4773 = vpop.f32.mrb[0].mxu0
    %4774 = vdwg.mxu0
    %4775 = vmatprep.subr.bf16.mxu0 0
    %4776 = vmatpush1.bf16.msra.mxu0 %v3978
    %4777 = vmatprep.subr.bf16.mxu0 0
    %4778 = vmatpush1.bf16.msra.mxu0 %v3981
    %4779 = vmatprep.subr.bf16.mxu0 0
    %4780 = vmatpush1.bf16.msra.mxu0 %v3984
    %4781 = vmatprep.subr.bf16.mxu0 0
    %4782 = vmatpush1.bf16.msra.mxu0 %v3987
    %4783 = vmatprep.subr.bf16.mxu0 0
    %4784 = vmatpush1.bf16.msra.mxu0 %v3990
    %4785 = vmatprep.subr.bf16.mxu0 0
    %4786 = vmatpush1.bf16.msra.mxu0 %v3993
    %4787 = vmatprep.subr.bf16.mxu0 0
    %4788 = vmatpush1.bf16.msra.mxu0 %v3996
    %4789 = vmatprep.subr.bf16.mxu0 0
    %4790 = vmatpush1.bf16.msra.mxu0 %v3999
    %4791 = vmatprep.subr.bf16.mxu0 0
    %4792 = vmatpush1.bf16.msra.mxu0 %v4002
    %4793 = vmatprep.subr.bf16.mxu0 0
    %4794 = vmatpush1.bf16.msra.mxu0 %v4005
    %4795 = vmatprep.subr.bf16.mxu0 0
    %4796 = vmatpush1.bf16.msra.mxu0 %v4008
    %4797 = vmatprep.subr.bf16.mxu0 0
    %4798 = vmatpush1.bf16.msra.mxu0 %v4011
    %4799 = vmatprep.subr.bf16.mxu0 0
    %4800 = vmatpush1.bf16.msra.mxu0 %v4014
    %4801 = vmatprep.subr.bf16.mxu0 0
    %4802 = vmatpush1.bf16.msra.mxu0 %v4017
    %4803 = vmatprep.subr.bf16.mxu0 0
    %4804 = vmatpush1.bf16.msra.mxu0 %v4020
    %4805 = vmatprep.subr.bf16.mxu0 0
    %4806 = vmatpush1.bf16.msra.mxu0 %v4023
    %4807 = vmatprep.mubr.bf16.mxu0 %v2374
    %4808 = vmatmul.mubr.bf16.gmra.mrb[0].mxu0 %v2373
    %v4809 = vpop.f32.mrb[0].mxu0
    %v4810 = vadd.f32 %v4769, %v4809
    %v4811 = vpop.f32.mrb[0].mxu0
    %v4812 = vpop.f32.mrb[0].mxu0
    %v4813 = vadd.f32 %v4772, %v4812
    %v4814 = vpop.f32.mrb[0].mxu0
    %4815 = vdwg.mxu0
    %4816 = vst [vmem:[#allocation2] sm:$0xff] %v4562
    %4817 = vst [vmem:[#allocation2 + $0x8] sm:$0xff] %v4564
    %4818 = vst [vmem:[#allocation2 + $0x10] sm:$0xff] %v4810
    %4819 = vst [vmem:[#allocation2 + $0x18] sm:$0xff] %v4566
    %4820 = vst [vmem:[#allocation2 + $0x20] sm:$0xff] %v4568
    %4821 = vst [vmem:[#allocation2 + $0x28] sm:$0xff] %v4813
    // Predicated region
    $region22: #{feed_forward.1} parent=1 // pred_check
      _
    $region23: #{feed_forward.1} parent=1 // pred_check_branch
      %4823 = sbr.rel (0) target = $region25
    $region24: #{feed_forward.1} parent=1 // pred_region
      %s4825 = ssub.s32 768, 768
      %4826 = vsyncadd [#allocation3], %s4825
      %s4827 = sshll.u32 [#allocation2], 4
      %s4828 = int_to_ptr.vmem [resolvable:$true] %s4827
      %4833 = dma.vmem_to_hbm [thread:$0]  %s4828, 768, %s5, [#allocation3], 384, 384, 24
    $region25: #{feed_forward.1} parent=1 // pred_fallthru
      _
    // Predicated region
    $region26: #{feed_forward.1} parent=1 // pred_check
      _
    $region27: #{feed_forward.1} parent=1 // pred_check_branch
      %4835 = sbr.rel (0) target = $region29
    $region28: #{feed_forward.1} parent=1 // pred_region
      %4836 = dma.done [#allocation3], 768
    $region29: #{feed_forward.1} parent=1 // pred_fallthru
      _
    %4837 = vsyncpa [#allocation3], 1

</llo_original>
